<compile_context>
chip_gen: v5e
topology: v5e:2x2
jax: 0.10.0
libtpu: 0.0.40
codegen_flags: <defaults>
</compile_context>

<pallas_src>
import jax
import jax.numpy as jnp
from jax.experimental import pallas as pl
from jax.experimental.pallas import tpu as pltpu

IN_FEATURES = 28 * 28   # 784
K_PAD = 896             # 7 * 128, lane-aligned K for the first matmul
HIDDEN = 512
OUT_FEATURES = 10
OUT_PAD = 128           # lane-dense output width


def mlp_kernel(x_ref, w1_ref, b1_ref, w2_ref, b2_ref, w3_ref, b3_ref, o_ref):
    # Three MXU matmuls (bf16 operands, f32 accumulation) + f32 bias/ReLU on the VPU.
    x = x_ref[...]                                                       # bf16 [TB, 896]
    h1 = jnp.dot(x, w1_ref[...], preferred_element_type=jnp.float32) + b1_ref[...]
    h1 = jnp.maximum(h1, 0.0)
    h2 = jnp.dot(h1.astype(jnp.bfloat16), w2_ref[...],
                 preferred_element_type=jnp.float32) + b2_ref[...]
    h2 = jnp.maximum(h2, 0.0)
    o_ref[...] = jnp.dot(h2.astype(jnp.bfloat16), w3_ref[...],
                         preferred_element_type=jnp.float32) + b3_ref[...]


def _round_up(x, m):
    return (x + m - 1) // m * m


def prepare_params(params):
    """Pad + cast f32 params (layout [in, out], biases [1, out]) for the kernel:
    w1 K-padded to 896, w3/b3 N-padded to 128 (zeros), weights bf16, biases f32."""
    w1, b1, w2, b2, w3, b3 = params
    w1p = (jnp.zeros((K_PAD, HIDDEN), jnp.float32)
           .at[:IN_FEATURES, :].set(w1).astype(jnp.bfloat16))
    w2p = w2.astype(jnp.bfloat16)
    w3p = (jnp.zeros((HIDDEN, OUT_PAD), jnp.float32)
           .at[:, :OUT_FEATURES].set(w3).astype(jnp.bfloat16))
    b3p = jnp.zeros((1, OUT_PAD), jnp.float32).at[:, :OUT_FEATURES].set(b3)
    return w1p, b1.astype(jnp.float32), w2p, b2.astype(jnp.float32), w3p, b3p


def neural_network_forward(x_nchw, prepared_params, *, tb=256):
    """x_nchw: [B, 1, 28, 28] float32 -> logits [B, 10] float32."""
    w1, b1, w2, b2, w3, b3 = prepared_params
    B = x_nchw.shape[0]

    # nn.Flatten(): flatten all dims except batch (row-major, same as torch).
    x_flat = x_nchw.reshape(B, -1).astype(jnp.bfloat16)                  # [B, 784]
    k = x_flat.shape[1]

    # Batch tile: multiple of 8 sublanes, capped so tiny batches stay one tile.
    tb_eff = min(tb, _round_up(B, 8))
    b_pad = _round_up(B, tb_eff)
    n_tiles = b_pad // tb_eff

    # Zero-pad the tail batch tile and the K dimension (784 -> 896).
    x_p = jnp.zeros((b_pad, K_PAD), jnp.bfloat16).at[:B, :k].set(x_flat)

    flops = 2 * b_pad * (K_PAD * HIDDEN + HIDDEN * HIDDEN + HIDDEN * OUT_PAD)
    bytes_accessed = (x_p.size * 2                       # bf16 activations in
                      + (w1.size + w2.size + w3.size) * 2  # bf16 weights
                      + (b1.size + b2.size + b3.size) * 4  # f32 biases
                      + b_pad * OUT_PAD * 4)               # f32 logits out

    def resident(arr):
        # Weights/biases: same block for every grid step -> DMA'd once, VMEM-resident.
        return pl.BlockSpec(arr.shape, lambda i: (0, 0))

    out = pl.pallas_call(
        mlp_kernel,
        out_shape=jax.ShapeDtypeStruct((b_pad, OUT_PAD), jnp.float32),
        grid=(n_tiles,),
        in_specs=[
            pl.BlockSpec((tb_eff, K_PAD), lambda i: (i, 0)),   # streamed activations
            resident(w1), resident(b1),
            resident(w2), resident(b2),
            resident(w3), resident(b3),
        ],
        out_specs=pl.BlockSpec((tb_eff, OUT_PAD), lambda i: (i, 0)),
        compiler_params=pltpu.CompilerParams(
            dimension_semantics=("parallel",),
            vmem_limit_bytes=32 << 20,
        ),
        cost_estimate=pl.CostEstimate(
            flops=flops, transcendentals=0, bytes_accessed=bytes_accessed),
    )(x_p, w1, b1, w2, b2, w3, b3)

    # Strip batch padding and the lane-padding of the output (columns 10..127 are zero-weight).
    return out[:B, :OUT_FEATURES]


def init_params(key):
    """Deterministic init mirroring PyTorch nn.Linear default:
    U(-1/sqrt(fan_in), 1/sqrt(fan_in)) for both weight and bias.
    Weights stored as [in, out] (transposed vs. torch) so matmuls are x @ W."""
    dims = [(IN_FEATURES, HIDDEN), (HIDDEN, HIDDEN), (HIDDEN, OUT_FEATURES)]
    params = []
    for fan_in, fan_out in dims:
        key, kw, kb = jax.random.split(key, 3)
        bound = 1.0 / jnp.sqrt(fan_in)
        w = jax.random.uniform(kw, (fan_in, fan_out), jnp.float32, -bound, bound)
        b = jax.random.uniform(kb, (1, fan_out), jnp.float32, -bound, bound)
        params.extend([w, b])
    return tuple(params)


if __name__ == "__main__":
    key = jax.random.PRNGKey(0)
    key, kx = jax.random.split(key)

    # B=200 is not a multiple of the tile -> exercises batch padding + 2-step grid (TB=128).
    B = 200
    x = jax.random.normal(kx, (B, 1, 28, 28), jnp.float32)  # NCHW, like PyTorch

    params = init_params(key)
    prepared = prepare_params(params)

    out = neural_network_forward(x, prepared, tb=128)
    out = jax.block_until_ready(out)
    assert out.shape == (B, OUT_FEATURES)

    # Reference: same bf16 weights / f32 accumulation, plain JAX (untiled, unpadded batch).
    w1p, b1p, w2p, b2p, w3p, b3p = prepared
    xf = x.reshape(B, -1).astype(jnp.bfloat16)
    xfp = jnp.zeros((B, K_PAD), jnp.bfloat16).at[:, :IN_FEATURES].set(xf)
    h = jnp.maximum(jnp.dot(xfp, w1p, preferred_element_type=jnp.float32) + b1p, 0.0)
    h = jnp.maximum(jnp.dot(h.astype(jnp.bfloat16), w2p,
                            preferred_element_type=jnp.float32) + b2p, 0.0)
    ref = (jnp.dot(h.astype(jnp.bfloat16), w3p,
                   preferred_element_type=jnp.float32) + b3p)[:, :OUT_FEATURES]
    assert jnp.allclose(out, ref, atol=1e-2, rtol=1e-2)

    print("KERNEL_OK")
</pallas_src>

<mosaic_0001>
module attributes {stable_mosaic.version = 11 : i64} {
  func.func @mlp_kernel(%arg0: i32, %arg1: memref<128x896xbf16, #tpu.memory_space<vmem>>, %arg2: memref<896x512xbf16, #tpu.memory_space<vmem>>, %arg3: memref<1x512xf32, #tpu.memory_space<vmem>>, %arg4: memref<512x512xbf16, #tpu.memory_space<vmem>>, %arg5: memref<1x512xf32, #tpu.memory_space<vmem>>, %arg6: memref<512x128xbf16, #tpu.memory_space<vmem>>, %arg7: memref<1x128xf32, #tpu.memory_space<vmem>>, %arg8: memref<128x128xf32, #tpu.memory_space<vmem>>) attributes {dimension_semantics = [#tpu.dimension_semantics<parallel>], iteration_bounds = array<i64: 2>, scalar_prefetch = 0 : i64, scratch_operands = 0 : i64, tpu.core_type = #tpu.core_type<tc>, window_params = [{transform_indices = @transform_0, window_bounds = array<i64: 128, 896>}, {pipeline_mode = #tpu.pipeline_mode<synchronous>, transform_indices = @transform_1, window_bounds = array<i64: 896, 512>}, {pipeline_mode = #tpu.pipeline_mode<synchronous>, transform_indices = @transform_2, window_bounds = array<i64: 1, 512>}, {pipeline_mode = #tpu.pipeline_mode<synchronous>, transform_indices = @transform_3, window_bounds = array<i64: 512, 512>}, {pipeline_mode = #tpu.pipeline_mode<synchronous>, transform_indices = @transform_4, window_bounds = array<i64: 1, 512>}, {pipeline_mode = #tpu.pipeline_mode<synchronous>, transform_indices = @transform_5, window_bounds = array<i64: 512, 128>}, {pipeline_mode = #tpu.pipeline_mode<synchronous>, transform_indices = @transform_6, window_bounds = array<i64: 1, 128>}, {transform_indices = @transform_7, window_bounds = array<i64: 128, 128>}]} {
    %c0 = arith.constant 0 : index
    %c0_0 = arith.constant 0 : index
    %0 = vector.load %arg1[%c0, %c0_0] : memref<128x896xbf16, #tpu.memory_space<vmem>>, vector<128x896xbf16>
    %c0_1 = arith.constant 0 : index
    %c0_2 = arith.constant 0 : index
    %1 = vector.load %arg2[%c0_1, %c0_2] : memref<896x512xbf16, #tpu.memory_space<vmem>>, vector<896x512xbf16>
    %cst = arith.constant dense<0.000000e+00> : vector<128x512xf32>
    %2 = tpu.matmul %0, %1, %cst {dimension_numbers = #tpu.dot_dimension_numbers<[1], [0], [0], [1], [0, 0, 1, 1], [], []>} : vector<128x896xbf16>, vector<896x512xbf16>, vector<128x512xf32> -> vector<128x512xf32>
    %c0_3 = arith.constant 0 : index
    %c0_4 = arith.constant 0 : index
    %3 = vector.load %arg3[%c0_3, %c0_4] : memref<1x512xf32, #tpu.memory_space<vmem>>, vector<1x512xf32>
    %4 = vector.broadcast %3 : vector<1x512xf32> to vector<128x512xf32>
    %5 = arith.addf %2, %4 : vector<128x512xf32>
    %cst_5 = arith.constant 0.000000e+00 : f32
    %6 = vector.broadcast %cst_5 : f32 to vector<128x512xf32>
    %7 = arith.maximumf %5, %6 : vector<128x512xf32>
    %8 = arith.truncf %7 : vector<128x512xf32> to vector<128x512xbf16>
    %c0_6 = arith.constant 0 : index
    %c0_7 = arith.constant 0 : index
    %9 = vector.load %arg4[%c0_6, %c0_7] : memref<512x512xbf16, #tpu.memory_space<vmem>>, vector<512x512xbf16>
    %cst_8 = arith.constant dense<0.000000e+00> : vector<128x512xf32>
    %10 = tpu.matmul %8, %9, %cst_8 {dimension_numbers = #tpu.dot_dimension_numbers<[1], [0], [0], [1], [0, 0, 1, 1], [], []>} : vector<128x512xbf16>, vector<512x512xbf16>, vector<128x512xf32> -> vector<128x512xf32>
    %c0_9 = arith.constant 0 : index
    %c0_10 = arith.constant 0 : index
    %11 = vector.load %arg5[%c0_9, %c0_10] : memref<1x512xf32, #tpu.memory_space<vmem>>, vector<1x512xf32>
    %12 = vector.broadcast %11 : vector<1x512xf32> to vector<128x512xf32>
    %13 = arith.addf %10, %12 : vector<128x512xf32>
    %cst_11 = arith.constant 0.000000e+00 : f32
    %14 = vector.broadcast %cst_11 : f32 to vector<128x512xf32>
    %15 = arith.maximumf %13, %14 : vector<128x512xf32>
    %16 = arith.truncf %15 : vector<128x512xf32> to vector<128x512xbf16>
    %c0_12 = arith.constant 0 : index
    %c0_13 = arith.constant 0 : index
    %17 = vector.load %arg6[%c0_12, %c0_13] : memref<512x128xbf16, #tpu.memory_space<vmem>>, vector<512x128xbf16>
    %cst_14 = arith.constant dense<0.000000e+00> : vector<128x128xf32>
    %18 = tpu.matmul %16, %17, %cst_14 {dimension_numbers = #tpu.dot_dimension_numbers<[1], [0], [0], [1], [0, 0, 1, 1], [], []>} : vector<128x512xbf16>, vector<512x128xbf16>, vector<128x128xf32> -> vector<128x128xf32>
    %c0_15 = arith.constant 0 : index
    %c0_16 = arith.constant 0 : index
    %19 = vector.load %arg7[%c0_15, %c0_16] : memref<1x128xf32, #tpu.memory_space<vmem>>, vector<1x128xf32>
    %20 = vector.broadcast %19 : vector<1x128xf32> to vector<128x128xf32>
    %21 = arith.addf %18, %20 : vector<128x128xf32>
    %c0_17 = arith.constant 0 : index
    %c0_18 = arith.constant 0 : index
    %22 = vector.load %arg8[%c0_17, %c0_18] : memref<128x128xf32, #tpu.memory_space<vmem>>, vector<128x128xf32>
    tpu.vector_store %arg8[%c0_17, %c0_18], %21 {strides = array<i32>} : memref<128x128xf32, #tpu.memory_space<vmem>>, vector<128x128xf32>,
    return
  }
  func.func @transform_0(%arg0: i32) -> (i32, i32) {
    %c0_i32 = arith.constant 0 : i32
    %c0_i32_0 = arith.constant 0 : i32
    return %arg0, %c0_i32 : i32, i32
  }
  func.func @transform_1(%arg0: i32) -> (i32, i32) {
    %c0_i32 = arith.constant 0 : i32
    %c0_i32_0 = arith.constant 0 : i32
    %c0_i32_1 = arith.constant 0 : i32
    return %c0_i32, %c0_i32_0 : i32, i32
  }
  func.func @transform_2(%arg0: i32) -> (i32, i32) {
    %c0_i32 = arith.constant 0 : i32
    %c0_i32_0 = arith.constant 0 : i32
    %c0_i32_1 = arith.constant 0 : i32
    return %c0_i32, %c0_i32_0 : i32, i32
  }
  func.func @transform_3(%arg0: i32) -> (i32, i32) {
    %c0_i32 = arith.constant 0 : i32
    %c0_i32_0 = arith.constant 0 : i32
    %c0_i32_1 = arith.constant 0 : i32
    return %c0_i32, %c0_i32_0 : i32, i32
  }
  func.func @transform_4(%arg0: i32) -> (i32, i32) {
    %c0_i32 = arith.constant 0 : i32
    %c0_i32_0 = arith.constant 0 : i32
    %c0_i32_1 = arith.constant 0 : i32
    return %c0_i32, %c0_i32_0 : i32, i32
  }
  func.func @transform_5(%arg0: i32) -> (i32, i32) {
    %c0_i32 = arith.constant 0 : i32
    %c0_i32_0 = arith.constant 0 : i32
    %c0_i32_1 = arith.constant 0 : i32
    return %c0_i32, %c0_i32_0 : i32, i32
  }
  func.func @transform_6(%arg0: i32) -> (i32, i32) {
    %c0_i32 = arith.constant 0 : i32
    %c0_i32_0 = arith.constant 0 : i32
    %c0_i32_1 = arith.constant 0 : i32
    return %c0_i32, %c0_i32_0 : i32, i32
  }
  func.func @transform_7(%arg0: i32) -> (i32, i32) {
    %c0_i32 = arith.constant 0 : i32
    %c0_i32_0 = arith.constant 0 : i32
    return %arg0, %c0_i32 : i32, i32
  }
}

</mosaic_0001>

<llo_original>
// kernel: tpu_custom_call.1
$region0: #{tpu_custom_call.1}
  #allocation0 [shape = 'u32[]', space=smem, size = 0x4, offset = 0x4, fixed_abs, tag = 'smem constant byte address 0x4 - core index']
  #allocation1 [shape = 'u32[72,128]{1,0:T(1,128)}', space=vmem, size = 0x9000, scoped, tag = 'internal scratch']
  %s0 = inlined_call_operand.hbm [shape: bf16[256,896], index: 0, kind: input, shape index: {}]
  %s1 = inlined_call_operand.hbm [shape: bf16[896,512], index: 1, kind: input, shape index: {}]
  %s2 = inlined_call_operand.hbm [shape: f32[1,512], index: 2, kind: input, shape index: {}]
  %s3 = inlined_call_operand.hbm [shape: bf16[512,512], index: 3, kind: input, shape index: {}]
  %s4 = inlined_call_operand.hbm [shape: f32[1,512], index: 4, kind: input, shape index: {}]
  %s5 = inlined_call_operand.hbm [shape: bf16[512,128], index: 5, kind: input, shape index: {}]
  %s6 = inlined_call_operand.vmem [shape: f32[1,128], index: 6, kind: input, shape index: {}]
  %s7 = inlined_call_operand.hbm [shape: f32[256,128], index: 7, kind: output, shape index: {}]
  %s8 = sld [smem:[#allocation0]]
  $region85: #{tpu_custom_call.1} parent=0
    _
  %s10 = ssub.s32 1, %s8
  %s11 = scalar_select 0, %s10, %s8
  $region1: #{tpu_custom_call.1} parent=0
    #allocation2 [shape = 'u8[458752]{0}', space=vmem, size = 0x70000, scoped, tag = 'input window, operand 0']
    #allocation3 [shape = 's32[2]{0}', space=sflag, size = 0x8, scoped, tag = 'scoped memory for tpu_custom_call.1']
    #allocation4 [shape = 's32[2]{0}', space=sflag, size = 0x8, scoped, tag = 'scoped memory for tpu_custom_call.1']
    #allocation5 [shape = 'u8[917504]{0}', space=vmem, size = 0xe0000, scoped, tag = 'input window, operand 1, single buffered']
    #allocation6 [shape = 's32[1]{0}', space=sflag, size = 0x4, scoped, tag = 'scoped memory for tpu_custom_call.1']
    #allocation7 [shape = 'u8[2048]{0}', space=vmem, size = 0x800, scoped, tag = 'input window, operand 2, single buffered']
    #allocation8 [shape = 'u8[524288]{0}', space=vmem, size = 0x80000, scoped, tag = 'input window, operand 3, single buffered']
    #allocation9 [shape = 's32[1]{0}', space=sflag, size = 0x4, scoped, tag = 'scoped memory for tpu_custom_call.1']
    #allocation10 [shape = 'u8[2048]{0}', space=vmem, size = 0x800, scoped, tag = 'input window, operand 4, single buffered']
    #allocation11 [shape = 'u8[131072]{0}', space=vmem, size = 0x20000, scoped, tag = 'input window, operand 5, single buffered']
    #allocation12 [shape = 's32[1]{0}', space=sflag, size = 0x4, scoped, tag = 'scoped memory for tpu_custom_call.1']
    #allocation13 [shape = 'u8[131072]{0}', space=vmem, size = 0x20000, scoped, tag = 'output window, operand 0']
    %12 = vsyncpa [#allocation3], 0
    %s13 = scalar_lea.sflag [#allocation3], 1
    %14 = vsyncpa %s13, 0
    %15 = vsyncpa [#allocation6], 0
    %16 = vsyncpa [#allocation9], 0
    %17 = vsyncpa [#allocation12], 0
    %18 = vsyncpa [#allocation4], 0
    %s19 = scalar_lea.sflag [#allocation4], 1
    %20 = vsyncpa %s19, 0
    loop: start=0, step=1, limit=4
    $region2: #{tpu_custom_call.1} parent=1 // loop_pre_header
      _
    $region3: #{tpu_custom_call.1} parent=1 // loop_header
      %s22 = sphi 0, %s26
      %p23 = scmp.ge.s32.totalorder %s22, 4
      %s32 = sphi 0, %s34
      %s35 = sphi 0, %s32
      %s36 = sphi 0, %s35
      %s52 = sphi 0, %s36
      %s56 = sphi 0, %s56
      %s58 = sphi 0, %s56
      %s59 = sphi 0, %s58
      %s73 = sphi 0, %s59
      %s77 = sphi 0, %s77
      %s79 = sphi 0, %s77
      %s80 = sphi 0, %s79
      %s94 = sphi 0, %s80
      %s98 = sphi 0, %s98
      %s100 = sphi 0, %s98
      %s101 = sphi 0, %s100
      %s115 = sphi 0, %s101
      %s119 = sphi 0, %s119
      %s121 = sphi 0, %s119
      %s122 = sphi 0, %s121
      %s136 = sphi 0, %s122
      %s140 = sphi 0, %s140
      %s142 = sphi 0, %s140
      %s143 = sphi 0, %s142
      %s157 = sphi 0, %s143
      %s161 = sphi 0, %s161
      %s163 = sphi 0, %s161
      %s164 = sphi 0, %s163
      %s178 = sphi 0, %s164
      %s184 = sphi 0, %s186
      %s187 = sphi 0, %s184
      %s188 = sphi 0, %s187
      %s204 = sphi 0, %s188
    $region4: #{tpu_custom_call.1} parent=1 // loop_header_branch
      %25 = sbr.rel (%p23) target = $region8
    $region5: #{tpu_custom_call.1} parent=1 // loop_body
      %s27 = ssub.s32 %s22, 1
      %s28 = ssub.s32 %s22, 2
      %s29 = sadd.s32 %s22, 1
      %s30 = ssub.s32 %s22, %s29
      %p31 = scmp.eq.s32.totalorder %s30, 0
      %s33 = sadd.s32 %s32, 1
      %s34 = scalar_select %p31, %s32, %s33
      %p37 = pneg %p31
      %p38 = scmp.eq.s32.totalorder %s22, 1
      %p39 = por %p37, %p38
      %p40 = scmp.ne.s32.totalorder %s32, %s35
      %p41 = scmp.eq.s32.totalorder %s22, 0
      %p42 = por %p40, %p41
      %p43 = scmp.ne.s32.totalorder %s32, %s35
      %p44 = scmp.eq.s32.totalorder %s27, 1
      %p45 = por %p43, %p44
      %p46 = scmp.ne.s32.totalorder %s35, %s36
      %p47 = scmp.eq.s32.totalorder %s27, 0
      %p48 = por %p46, %p47
      %p49 = scmp.ne.s32.totalorder %s35, %s36
      %p50 = scmp.eq.s32.totalorder %s28, 1
      %p51 = por %p49, %p50
      %p53 = scmp.ne.s32.totalorder %s36, %s52
      %p54 = scmp.eq.s32.totalorder %s28, 0
      %p55 = por %p53, %p54
      %s57 = sadd.s32 %s56, 1
      %p60 = scmp.eq.s32.totalorder %s22, 1
      %p61 = scmp.ne.s32.totalorder %s56, %s58
      %p62 = scmp.eq.s32.totalorder %s22, 0
      %p63 = por %p61, %p62
      %p64 = scmp.ne.s32.totalorder %s56, %s58
      %p65 = scmp.eq.s32.totalorder %s27, 1
      %p66 = por %p64, %p65
      %p67 = scmp.ne.s32.totalorder %s58, %s59
      %p68 = scmp.eq.s32.totalorder %s27, 0
      %p69 = por %p67, %p68
      %p70 = scmp.ne.s32.totalorder %s58, %s59
      %p71 = scmp.eq.s32.totalorder %s28, 1
      %p72 = por %p70, %p71
      %p74 = scmp.ne.s32.totalorder %s59, %s73
      %p75 = scmp.eq.s32.totalorder %s28, 0
      %p76 = por %p74, %p75
      %s78 = sadd.s32 %s77, 1
      %p81 = scmp.eq.s32.totalorder %s22, 1
      %p82 = scmp.ne.s32.totalorder %s77, %s79
      %p83 = scmp.eq.s32.totalorder %s22, 0
      %p84 = por %p82, %p83
      %p85 = scmp.ne.s32.totalorder %s77, %s79
      %p86 = scmp.eq.s32.totalorder %s27, 1
      %p87 = por %p85, %p86
      %p88 = scmp.ne.s32.totalorder %s79, %s80
      %p89 = scmp.eq.s32.totalorder %s27, 0
      %p90 = por %p88, %p89
      %p91 = scmp.ne.s32.totalorder %s79, %s80
      %p92 = scmp.eq.s32.totalorder %s28, 1
      %p93 = por %p91, %p92
      %p95 = scmp.ne.s32.totalorder %s80, %s94
      %p96 = scmp.eq.s32.totalorder %s28, 0
      %p97 = por %p95, %p96
      %s99 = sadd.s32 %s98, 1
      %p102 = scmp.eq.s32.totalorder %s22, 1
      %p103 = scmp.ne.s32.totalorder %s98, %s100
      %p104 = scmp.eq.s32.totalorder %s22, 0
      %p105 = por %p103, %p104
      %p106 = scmp.ne.s32.totalorder %s98, %s100
      %p107 = scmp.eq.s32.totalorder %s27, 1
      %p108 = por %p106, %p107
      %p109 = scmp.ne.s32.totalorder %s100, %s101
      %p110 = scmp.eq.s32.totalorder %s27, 0
      %p111 = por %p109, %p110
      %p112 = scmp.ne.s32.totalorder %s100, %s101
      %p113 = scmp.eq.s32.totalorder %s28, 1
      %p114 = por %p112, %p113
      %p116 = scmp.ne.s32.totalorder %s101, %s115
      %p117 = scmp.eq.s32.totalorder %s28, 0
      %p118 = por %p116, %p117
      %s120 = sadd.s32 %s119, 1
      %p123 = scmp.eq.s32.totalorder %s22, 1
      %p124 = scmp.ne.s32.totalorder %s119, %s121
      %p125 = scmp.eq.s32.totalorder %s22, 0
      %p126 = por %p124, %p125
      %p127 = scmp.ne.s32.totalorder %s119, %s121
      %p128 = scmp.eq.s32.totalorder %s27, 1
      %p129 = por %p127, %p128
      %p130 = scmp.ne.s32.totalorder %s121, %s122
      %p131 = scmp.eq.s32.totalorder %s27, 0
      %p132 = por %p130, %p131
      %p133 = scmp.ne.s32.totalorder %s121, %s122
      %p134 = scmp.eq.s32.totalorder %s28, 1
      %p135 = por %p133, %p134
      %p137 = scmp.ne.s32.totalorder %s122, %s136
      %p138 = scmp.eq.s32.totalorder %s28, 0
      %p139 = por %p137, %p138
      %s141 = sadd.s32 %s140, 1
      %p144 = scmp.eq.s32.totalorder %s22, 1
      %p145 = scmp.ne.s32.totalorder %s140, %s142
      %p146 = scmp.eq.s32.totalorder %s22, 0
      %p147 = por %p145, %p146
      %p148 = scmp.ne.s32.totalorder %s140, %s142
      %p149 = scmp.eq.s32.totalorder %s27, 1
      %p150 = por %p148, %p149
      %p151 = scmp.ne.s32.totalorder %s142, %s143
      %p152 = scmp.eq.s32.totalorder %s27, 0
      %p153 = por %p151, %p152
      %p154 = scmp.ne.s32.totalorder %s142, %s143
      %p155 = scmp.eq.s32.totalorder %s28, 1
      %p156 = por %p154, %p155
      %p158 = scmp.ne.s32.totalorder %s143, %s157
      %p159 = scmp.eq.s32.totalorder %s28, 0
      %p160 = por %p158, %p159
      %s162 = sadd.s32 %s161, 1
      %p165 = scmp.eq.s32.totalorder %s22, 1
      %p166 = scmp.ne.s32.totalorder %s161, %s163
      %p167 = scmp.eq.s32.totalorder %s22, 0
      %p168 = por %p166, %p167
      %p169 = scmp.ne.s32.totalorder %s161, %s163
      %p170 = scmp.eq.s32.totalorder %s27, 1
      %p171 = por %p169, %p170
      %p172 = scmp.ne.s32.totalorder %s163, %s164
      %p173 = scmp.eq.s32.totalorder %s27, 0
      %p174 = por %p172, %p173
      %p175 = scmp.ne.s32.totalorder %s163, %s164
      %p176 = scmp.eq.s32.totalorder %s28, 1
      %p177 = por %p175, %p176
      %p179 = scmp.ne.s32.totalorder %s164, %s178
      %p180 = scmp.eq.s32.totalorder %s28, 0
      %p181 = por %p179, %p180
      %s182 = ssub.s32 %s22, %s29
      %p183 = scmp.eq.s32.totalorder %s182, 0
      %s185 = sadd.s32 %s184, 1
      %s186 = scalar_select %p183, %s184, %s185
      %p189 = pneg %p183
      %p190 = scmp.eq.s32.totalorder %s22, 1
      %p191 = por %p189, %p190
      %p192 = scmp.ne.s32.totalorder %s184, %s187
      %p193 = scmp.eq.s32.totalorder %s22, 0
      %p194 = por %p192, %p193
      %p195 = scmp.ne.s32.totalorder %s184, %s187
      %p196 = scmp.eq.s32.totalorder %s27, 1
      %p197 = por %p195, %p196
      %p198 = scmp.ne.s32.totalorder %s187, %s188
      %p199 = scmp.eq.s32.totalorder %s27, 0
      %p200 = por %p198, %p199
      %p201 = scmp.ne.s32.totalorder %s187, %s188
      %p202 = scmp.eq.s32.totalorder %s28, 1
      %p203 = por %p201, %p202
      %p205 = scmp.ne.s32.totalorder %s188, %s204
      %p206 = scmp.eq.s32.totalorder %s28, 0
      %p207 = por %p205, %p206
      %p208 = scmp.le.s32.totalorder 1, %s22
      %p209 = scmp.lt.s32.totalorder %s22, 3
      %p210 = pnand %p208, %p209
      %p211 = pneg %p210
      // Predicated region
      $region9: #{tpu_custom_call.1} parent=5 // pred_check
        _
      $region10: #{tpu_custom_call.1} parent=5 // pred_check_branch
        %213 = sbr.rel (%p210) target = $region12
      $region11: #{tpu_custom_call.1} parent=5 // pred_region
        %s214 = ssub.s32 %s22, 1
        // Predicated region
        $region13: #{tpu_custom_call.1} parent=11 // pred_check
          %p215 = pneg %p69
        $region14: #{tpu_custom_call.1} parent=11 // pred_check_branch
          %217 = sbr.rel (%p215) target = $region16
        $region15: #{tpu_custom_call.1} parent=11 // pred_region
          %219 = vsyncadd [#allocation6], 0
          %s220 = sshll.u32 %s1, 4
          %s221 = int_to_ptr.hbm [resolvable:$true] %s220
          %s222 = sshll.u32 [#allocation5], 4
          %s223 = int_to_ptr.vmem [resolvable:$true] %s222
          %228 = dma.hbm_to_vmem [thread:$0]  %s221, 28672, %s223, [#allocation6], 256, 256, 16
        $region16: #{tpu_custom_call.1} parent=11 // pred_fallthru
          _
        // Predicated region
        $region17: #{tpu_custom_call.1} parent=11 // pred_check
          %p229 = pneg %p90
        $region18: #{tpu_custom_call.1} parent=11 // pred_check_branch
          %231 = sbr.rel (%p229) target = $region20
        $region19: #{tpu_custom_call.1} parent=11 // pred_region
          %233 = vsyncadd [#allocation6], 0
          %s235 = sshll.u32 %s2, 4
          %s236 = int_to_ptr.hbm [resolvable:$true] %s235
          %s237 = sshll.u32 [#allocation7], 4
          %s238 = int_to_ptr.vmem [resolvable:$true] %s237
          %240 = dma.hbm_to_vmem [thread:$0]  %s236, 64, %s238, [#allocation6]
        $region20: #{tpu_custom_call.1} parent=11 // pred_fallthru
          _
        // Predicated region
        $region21: #{tpu_custom_call.1} parent=11 // pred_check
          %p241 = pneg %p111
        $region22: #{tpu_custom_call.1} parent=11 // pred_check_branch
          %243 = sbr.rel (%p241) target = $region24
        $region23: #{tpu_custom_call.1} parent=11 // pred_region
          %245 = vsyncadd [#allocation9], 0
          %s246 = sshll.u32 %s3, 4
          %s247 = int_to_ptr.hbm [resolvable:$true] %s246
          %s248 = sshll.u32 [#allocation8], 4
          %s249 = int_to_ptr.vmem [resolvable:$true] %s248
          %254 = dma.hbm_to_vmem [thread:$0]  %s247, 16384, %s249, [#allocation9], 256, 256, 16
        $region24: #{tpu_custom_call.1} parent=11 // pred_fallthru
          _
        // Predicated region
        $region25: #{tpu_custom_call.1} parent=11 // pred_check
          %p255 = pneg %p132
        $region26: #{tpu_custom_call.1} parent=11 // pred_check_branch
          %257 = sbr.rel (%p255) target = $region28
        $region27: #{tpu_custom_call.1} parent=11 // pred_region
          %259 = vsyncadd [#allocation9], 0
          %s261 = sshll.u32 %s4, 4
          %s262 = int_to_ptr.hbm [resolvable:$true] %s261
          %s263 = sshll.u32 [#allocation10], 4
          %s264 = int_to_ptr.vmem [resolvable:$true] %s263
          %266 = dma.hbm_to_vmem [thread:$0]  %s262, 64, %s264, [#allocation9]
        $region28: #{tpu_custom_call.1} parent=11 // pred_fallthru
          _
        // Predicated region
        $region29: #{tpu_custom_call.1} parent=11 // pred_check
          %p267 = pneg %p153
        $region30: #{tpu_custom_call.1} parent=11 // pred_check_branch
          %269 = sbr.rel (%p267) target = $region32
        $region31: #{tpu_custom_call.1} parent=11 // pred_region
          %271 = vsyncadd [#allocation12], 0
          %s272 = sshll.u32 %s5, 4
          %s273 = int_to_ptr.hbm [resolvable:$true] %s272
          %s274 = sshll.u32 [#allocation11], 4
          %s275 = int_to_ptr.vmem [resolvable:$true] %s274
          %280 = dma.hbm_to_vmem [thread:$0]  %s273, 4096, %s275, [#allocation12], 64, 64, 4
        $region32: #{tpu_custom_call.1} parent=11 // pred_fallthru
          _
        // Predicated region
        $region33: #{tpu_custom_call.1} parent=11 // pred_check
          %p281 = pneg %p174
        $region34: #{tpu_custom_call.1} parent=11 // pred_check_branch
          %283 = sbr.rel (%p281) target = $region36
        $region35: #{tpu_custom_call.1} parent=11 // pred_region
          _
        $region36: #{tpu_custom_call.1} parent=11 // pred_fallthru
          _
      $region12: #{tpu_custom_call.1} parent=5 // pred_fallthru
        _
      %p284 = scmp.lt.s32.totalorder %s22, 2
      // Predicated region
      $region37: #{tpu_custom_call.1} parent=5 // pred_check
        %p285 = pneg %p284
      $region38: #{tpu_custom_call.1} parent=5 // pred_check_branch
        %287 = sbr.rel (%p285) target = $region40
      $region39: #{tpu_custom_call.1} parent=5 // pred_region
        // Predicated region
        $region41: #{tpu_custom_call.1} parent=39 // pred_check
          %p288 = pneg %p42
        $region42: #{tpu_custom_call.1} parent=39 // pred_check_branch
          %290 = sbr.rel (%p288) target = $region44
        $region43: #{tpu_custom_call.1} parent=39 // pred_region
          %s291 = sand.u32 %s32, 1
          %s292 = scalar_lea.sflag [#allocation3], %s291
          %s293 = sand.u32 %s32, 1
          %s294 = smul.addr %s293, 448
          %s295 = scalar_lea.vmem [#allocation2], %s294
          %s296 = smul.u32 16, %s22
          %298 = vsyncadd %s292, 0
          %s299 = smul.addr %s296, 7
          %s300 = smul.addr %s299, 4
          %s301 = scalar_lea.hbm %s0, %s300
          %s302 = sshll.u32 %s301, 4
          %s303 = int_to_ptr.hbm [resolvable:$true] %s302
          %s304 = sshll.u32 %s295, 4
          %s305 = int_to_ptr.vmem [resolvable:$true] %s304
          %310 = dma.hbm_to_vmem [thread:$0]  %s303, 7168, %s305, %s292, 448, 448, 28
        $region44: #{tpu_custom_call.1} parent=39 // pred_fallthru
          _
      $region40: #{tpu_custom_call.1} parent=5 // pred_fallthru
        _
      %p311 = scmp.le.s32.totalorder 1, %s22
      %p312 = scmp.lt.s32.totalorder %s22, 3
      %p313 = pnand %p311, %p312
      %p314 = pneg %p313
      // Predicated region
      $region45: #{tpu_custom_call.1} parent=5 // pred_check
        _
      $region46: #{tpu_custom_call.1} parent=5 // pred_check_branch
        %316 = sbr.rel (%p313) target = $region48
      $region47: #{tpu_custom_call.1} parent=5 // pred_region
        %s317 = ssub.s32 %s22, 1
        %s318 = sand.u32 %s35, 1
        %s319 = scalar_lea.sflag [#allocation3], %s318
        %s320 = sand.u32 %s35, 1
        %s321 = smul.addr %s320, 448
        %s322 = scalar_lea.vmem [#allocation2], %s321
        // Predicated region
        $region49: #{tpu_custom_call.1} parent=47 // pred_check
          %p323 = pneg %p48
        $region50: #{tpu_custom_call.1} parent=47 // pred_check_branch
          %325 = sbr.rel (%p323) target = $region52
        $region51: #{tpu_custom_call.1} parent=47 // pred_region
          %327 = dma.done %s319, 7168
        $region52: #{tpu_custom_call.1} parent=47 // pred_fallthru
          _
        // Predicated region
        $region53: #{tpu_custom_call.1} parent=47 // pred_check
          %p328 = pneg %p69
        $region54: #{tpu_custom_call.1} parent=47 // pred_check_branch
          %330 = sbr.rel (%p328) target = $region56
        $region55: #{tpu_custom_call.1} parent=47 // pred_region
          %332 = dma.done [#allocation6], 28672
        $region56: #{tpu_custom_call.1} parent=47 // pred_fallthru
          _
        // Predicated region
        $region57: #{tpu_custom_call.1} parent=47 // pred_check
          %p333 = pneg %p90
        $region58: #{tpu_custom_call.1} parent=47 // pred_check_branch
          %335 = sbr.rel (%p333) target = $region60
        $region59: #{tpu_custom_call.1} parent=47 // pred_region
          %337 = dma.done [#allocation6], 64
        $region60: #{tpu_custom_call.1} parent=47 // pred_fallthru
          _
        // Predicated region
        $region61: #{tpu_custom_call.1} parent=47 // pred_check
          %p338 = pneg %p111
        $region62: #{tpu_custom_call.1} parent=47 // pred_check_branch
          %340 = sbr.rel (%p338) target = $region64
        $region63: #{tpu_custom_call.1} parent=47 // pred_region
          %342 = dma.done [#allocation9], 16384
        $region64: #{tpu_custom_call.1} parent=47 // pred_fallthru
          _
        // Predicated region
        $region65: #{tpu_custom_call.1} parent=47 // pred_check
          %p343 = pneg %p132
        $region66: #{tpu_custom_call.1} parent=47 // pred_check_branch
          %345 = sbr.rel (%p343) target = $region68
        $region67: #{tpu_custom_call.1} parent=47 // pred_region
          %347 = dma.done [#allocation9], 64
        $region68: #{tpu_custom_call.1} parent=47 // pred_fallthru
          _
        // Predicated region
        $region69: #{tpu_custom_call.1} parent=47 // pred_check
          %p348 = pneg %p153
        $region70: #{tpu_custom_call.1} parent=47 // pred_check_branch
          %350 = sbr.rel (%p348) target = $region72
        $region71: #{tpu_custom_call.1} parent=47 // pred_region
          %352 = dma.done [#allocation12], 4096
        $region72: #{tpu_custom_call.1} parent=47 // pred_fallthru
          _
        %s353 = sand.u32 %s35, 1
        %s354 = scalar_lea.sflag [#allocation3], %s353
        %s355 = sand.u32 %s35, 1
        %s356 = smul.addr %s355, 448
        %s357 = scalar_lea.vmem [#allocation2], %s356
        %p358 = pneg %p48
        %p359 = pneg %p45
        %p360 = pneg %p69
        %p361 = pneg %p66
        %p362 = pneg %p90
        %p363 = pneg %p87
        %p364 = pneg %p111
        %p365 = pneg %p108
        %p366 = pneg %p132
        %p367 = pneg %p129
        %p368 = pneg %p153
        %p369 = pneg %p150
        %p370 = pneg %p174
        %p371 = pneg %p171
        %p372 = pneg %p200
        %p373 = pneg %p197
        %s374 = sand.u32 %s187, 1
        %s375 = scalar_lea.sflag [#allocation4], %s374
        %s376 = sand.u32 %s187, 1
        %s377 = smul.addr %s376, 128
        %s378 = scalar_lea.vmem [#allocation13], %s377
        %s379 = smul.u32 16, %s27
        %s380 = smul.u32 16, %s27
        %v381 = vld [vmem:[%s322] sm:$0xff]
        %v382 = vld [vmem:[%s322 + $0x8] sm:$0xff]
        %v383 = vld [vmem:[%s322 + $0x10] sm:$0xff]
        %v384 = vld [vmem:[%s322 + $0x18] sm:$0xf]
        %v385 = vld [vmem:[%s322 + $0x1c] sm:$0xff]
        %v386 = vld [vmem:[%s322 + $0x24] sm:$0xff]
        %v387 = vld [vmem:[%s322 + $0x2c] sm:$0xff]
        %v388 = vld [vmem:[%s322 + $0x34] sm:$0xf]
        %v389 = vld [vmem:[%s322 + $0x38] sm:$0xff]
        %v390 = vld [vmem:[%s322 + $0x40] sm:$0xff]
        %v391 = vld [vmem:[%s322 + $0x48] sm:$0xff]
        %v392 = vld [vmem:[%s322 + $0x50] sm:$0xf]
        %v393 = vld [vmem:[%s322 + $0x54] sm:$0xff]
        %v394 = vld [vmem:[%s322 + $0x5c] sm:$0xff]
        %v395 = vld [vmem:[%s322 + $0x64] sm:$0xff]
        %v396 = vld [vmem:[%s322 + $0x6c] sm:$0xf]
        %v397 = vld [vmem:[%s322 + $0x70] sm:$0xff]
        %v398 = vld [vmem:[%s322 + $0x78] sm:$0xff]
        %v399 = vld [vmem:[%s322 + $0x80] sm:$0xff]
        %v400 = vld [vmem:[%s322 + $0x88] sm:$0xf]
        %v401 = vld [vmem:[%s322 + $0x8c] sm:$0xff]
        %v402 = vld [vmem:[%s322 + $0x94] sm:$0xff]
        %v403 = vld [vmem:[%s322 + $0x9c] sm:$0xff]
        %v404 = vld [vmem:[%s322 + $0xa4] sm:$0xf]
        %v405 = vld [vmem:[%s322 + $0xa8] sm:$0xff]
        %v406 = vld [vmem:[%s322 + $0xb0] sm:$0xff]
        %v407 = vld [vmem:[%s322 + $0xb8] sm:$0xff]
        %v408 = vld [vmem:[%s322 + $0xc0] sm:$0xf]
        %v409 = vld [vmem:[%s322 + $0xc4] sm:$0xff]
        %v410 = vld [vmem:[%s322 + $0xcc] sm:$0xff]
        %v411 = vld [vmem:[%s322 + $0xd4] sm:$0xff]
        %v412 = vld [vmem:[%s322 + $0xdc] sm:$0xf]
        %v413 = vld [vmem:[%s322 + $0xe0] sm:$0xff]
        %v414 = vld [vmem:[%s322 + $0xe8] sm:$0xff]
        %v415 = vld [vmem:[%s322 + $0xf0] sm:$0xff]
        %v416 = vld [vmem:[%s322 + $0xf8] sm:$0xf]
        %v417 = vld [vmem:[%s322 + $0xfc] sm:$0xff]
        %v418 = vld [vmem:[%s322 + $0x104] sm:$0xff]
        %v419 = vld [vmem:[%s322 + $0x10c] sm:$0xff]
        %v420 = vld [vmem:[%s322 + $0x114] sm:$0xf]
        %v421 = vld [vmem:[%s322 + $0x118] sm:$0xff]
        %v422 = vld [vmem:[%s322 + $0x120] sm:$0xff]
        %v423 = vld [vmem:[%s322 + $0x128] sm:$0xff]
        %v424 = vld [vmem:[%s322 + $0x130] sm:$0xf]
        %v425 = vld [vmem:[%s322 + $0x134] sm:$0xff]
        %v426 = vld [vmem:[%s322 + $0x13c] sm:$0xff]
        %v427 = vld [vmem:[%s322 + $0x144] sm:$0xff]
        %v428 = vld [vmem:[%s322 + $0x14c] sm:$0xf]
        %v429 = vld [vmem:[%s322 + $0x150] sm:$0xff]
        %v430 = vld [vmem:[%s322 + $0x158] sm:$0xff]
        %v431 = vld [vmem:[%s322 + $0x160] sm:$0xff]
        %v432 = vld [vmem:[%s322 + $0x168] sm:$0xf]
        %v433 = vld [vmem:[%s322 + $0x16c] sm:$0xff]
        %v434 = vld [vmem:[%s322 + $0x174] sm:$0xff]
        %v435 = vld [vmem:[%s322 + $0x17c] sm:$0xff]
        %v436 = vld [vmem:[%s322 + $0x184] sm:$0xf]
        %v437 = vld [vmem:[%s322 + $0x188] sm:$0xff]
        %v438 = vld [vmem:[%s322 + $0x190] sm:$0xff]
        %v439 = vld [vmem:[%s322 + $0x198] sm:$0xff]
        %v440 = vld [vmem:[%s322 + $0x1a0] sm:$0xf]
        %v441 = vld [vmem:[%s322 + $0x1a4] sm:$0xff]
        %v442 = vld [vmem:[%s322 + $0x1ac] sm:$0xff]
        %v443 = vld [vmem:[%s322 + $0x1b4] sm:$0xff]
        %v444 = vld [vmem:[%s322 + $0x1bc] sm:$0xf]
        %v445 = vld [vmem:[#allocation5] sm:$0xff]
        %v446 = vld [vmem:[#allocation5 + $0x8] sm:$0xff]
        %v447 = vld [vmem:[#allocation5 + $0x10] sm:$0xff]
        %v448 = vld [vmem:[#allocation5 + $0x18] sm:$0xff]
        %v449 = vld [vmem:[#allocation5 + $0x20] sm:$0xff]
        %v450 = vld [vmem:[#allocation5 + $0x28] sm:$0xff]
        %v451 = vld [vmem:[#allocation5 + $0x30] sm:$0xff]
        %v452 = vld [vmem:[#allocation5 + $0x38] sm:$0xff]
        %v453 = vld [vmem:[#allocation5 + $0x40] sm:$0xff]
        %v454 = vld [vmem:[#allocation5 + $0x48] sm:$0xff]
        %v455 = vld [vmem:[#allocation5 + $0x50] sm:$0xff]
        %v456 = vld [vmem:[#allocation5 + $0x58] sm:$0xff]
        %v457 = vld [vmem:[#allocation5 + $0x60] sm:$0xff]
        %v458 = vld [vmem:[#allocation5 + $0x68] sm:$0xff]
        %v459 = vld [vmem:[#allocation5 + $0x70] sm:$0xff]
        %v460 = vld [vmem:[#allocation5 + $0x78] sm:$0xff]
        %v461 = vld [vmem:[#allocation5 + $0x80] sm:$0xff]
        %v462 = vld [vmem:[#allocation5 + $0x88] sm:$0xff]
        %v463 = vld [vmem:[#allocation5 + $0x90] sm:$0xff]
        %v464 = vld [vmem:[#allocation5 + $0x98] sm:$0xff]
        %v465 = vld [vmem:[#allocation5 + $0xa0] sm:$0xff]
        %v466 = vld [vmem:[#allocation5 + $0xa8] sm:$0xff]
        %v467 = vld [vmem:[#allocation5 + $0xb0] sm:$0xff]
        %v468 = vld [vmem:[#allocation5 + $0xb8] sm:$0xff]
        %v469 = vld [vmem:[#allocation5 + $0xc0] sm:$0xff]
        %v470 = vld [vmem:[#allocation5 + $0xc8] sm:$0xff]
        %v471 = vld [vmem:[#allocation5 + $0xd0] sm:$0xff]
        %v472 = vld [vmem:[#allocation5 + $0xd8] sm:$0xff]
        %v473 = vld [vmem:[#allocation5 + $0xe0] sm:$0xff]
        %v474 = vld [vmem:[#allocation5 + $0xe8] sm:$0xff]
        %v475 = vld [vmem:[#allocation5 + $0xf0] sm:$0xff]
        %v476 = vld [vmem:[#allocation5 + $0xf8] sm:$0xff]
        %v477 = vld [vmem:[#allocation5 + $0x100] sm:$0xff]
        %v478 = vld [vmem:[#allocation5 + $0x108] sm:$0xff]
        %v479 = vld [vmem:[#allocation5 + $0x110] sm:$0xff]
        %v480 = vld [vmem:[#allocation5 + $0x118] sm:$0xff]
        %v481 = vld [vmem:[#allocation5 + $0x120] sm:$0xff]
        %v482 = vld [vmem:[#allocation5 + $0x128] sm:$0xff]
        %v483 = vld [vmem:[#allocation5 + $0x130] sm:$0xff]
        %v484 = vld [vmem:[#allocation5 + $0x138] sm:$0xff]
        %v485 = vld [vmem:[#allocation5 + $0x140] sm:$0xff]
        %v486 = vld [vmem:[#allocation5 + $0x148] sm:$0xff]
        %v487 = vld [vmem:[#allocation5 + $0x150] sm:$0xff]
        %v488 = vld [vmem:[#allocation5 + $0x158] sm:$0xff]
        %v489 = vld [vmem:[#allocation5 + $0x160] sm:$0xff]
        %v490 = vld [vmem:[#allocation5 + $0x168] sm:$0xff]
        %v491 = vld [vmem:[#allocation5 + $0x170] sm:$0xff]
        %v492 = vld [vmem:[#allocation5 + $0x178] sm:$0xff]
        %v493 = vld [vmem:[#allocation5 + $0x180] sm:$0xff]
        %v494 = vld [vmem:[#allocation5 + $0x188] sm:$0xff]
        %v495 = vld [vmem:[#allocation5 + $0x190] sm:$0xff]
        %v496 = vld [vmem:[#allocation5 + $0x198] sm:$0xff]
        %v497 = vld [vmem:[#allocation5 + $0x1a0] sm:$0xff]
        %v498 = vld [vmem:[#allocation5 + $0x1a8] sm:$0xff]
        %v499 = vld [vmem:[#allocation5 + $0x1b0] sm:$0xff]
        %v500 = vld [vmem:[#allocation5 + $0x1b8] sm:$0xff]
        %v501 = vld [vmem:[#allocation5 + $0x1c0] sm:$0xff]
        %v502 = vld [vmem:[#allocation5 + $0x1c8] sm:$0xff]
        %v503 = vld [vmem:[#allocation5 + $0x1d0] sm:$0xff]
        %v504 = vld [vmem:[#allocation5 + $0x1d8] sm:$0xff]
        %v505 = vld [vmem:[#allocation5 + $0x1e0] sm:$0xff]
        %v506 = vld [vmem:[#allocation5 + $0x1e8] sm:$0xff]
        %v507 = vld [vmem:[#allocation5 + $0x1f0] sm:$0xff]
        %v508 = vld [vmem:[#allocation5 + $0x1f8] sm:$0xff]
        %v509 = vld [vmem:[#allocation5 + $0x200] sm:$0xff]
        %v510 = vld [vmem:[#allocation5 + $0x208] sm:$0xff]
        %v511 = vld [vmem:[#allocation5 + $0x210] sm:$0xff]
        %v512 = vld [vmem:[#allocation5 + $0x218] sm:$0xff]
        %v513 = vld [vmem:[#allocation5 + $0x220] sm:$0xff]
        %v514 = vld [vmem:[#allocation5 + $0x228] sm:$0xff]
        %v515 = vld [vmem:[#allocation5 + $0x230] sm:$0xff]
        %v516 = vld [vmem:[#allocation5 + $0x238] sm:$0xff]
        %v517 = vld [vmem:[#allocation5 + $0x240] sm:$0xff]
        %v518 = vld [vmem:[#allocation5 + $0x248] sm:$0xff]
        %v519 = vld [vmem:[#allocation5 + $0x250] sm:$0xff]
        %v520 = vld [vmem:[#allocation5 + $0x258] sm:$0xff]
        %v521 = vld [vmem:[#allocation5 + $0x260] sm:$0xff]
        %v522 = vld [vmem:[#allocation5 + $0x268] sm:$0xff]
        %v523 = vld [vmem:[#allocation5 + $0x270] sm:$0xff]
        %v524 = vld [vmem:[#allocation5 + $0x278] sm:$0xff]
        %v525 = vld [vmem:[#allocation5 + $0x280] sm:$0xff]
        %v526 = vld [vmem:[#allocation5 + $0x288] sm:$0xff]
        %v527 = vld [vmem:[#allocation5 + $0x290] sm:$0xff]
        %v528 = vld [vmem:[#allocation5 + $0x298] sm:$0xff]
        %v529 = vld [vmem:[#allocation5 + $0x2a0] sm:$0xff]
        %v530 = vld [vmem:[#allocation5 + $0x2a8] sm:$0xff]
        %v531 = vld [vmem:[#allocation5 + $0x2b0] sm:$0xff]
        %v532 = vld [vmem:[#allocation5 + $0x2b8] sm:$0xff]
        %v533 = vld [vmem:[#allocation5 + $0x2c0] sm:$0xff]
        %v534 = vld [vmem:[#allocation5 + $0x2c8] sm:$0xff]
        %v535 = vld [vmem:[#allocation5 + $0x2d0] sm:$0xff]
        %v536 = vld [vmem:[#allocation5 + $0x2d8] sm:$0xff]
        %v537 = vld [vmem:[#allocation5 + $0x2e0] sm:$0xff]
        %v538 = vld [vmem:[#allocation5 + $0x2e8] sm:$0xff]
        %v539 = vld [vmem:[#allocation5 + $0x2f0] sm:$0xff]
        %v540 = vld [vmem:[#allocation5 + $0x2f8] sm:$0xff]
        %v541 = vld [vmem:[#allocation5 + $0x300] sm:$0xff]
        %v542 = vld [vmem:[#allocation5 + $0x308] sm:$0xff]
        %v543 = vld [vmem:[#allocation5 + $0x310] sm:$0xff]
        %v544 = vld [vmem:[#allocation5 + $0x318] sm:$0xff]
        %v545 = vld [vmem:[#allocation5 + $0x320] sm:$0xff]
        %v546 = vld [vmem:[#allocation5 + $0x328] sm:$0xff]
        %v547 = vld [vmem:[#allocation5 + $0x330] sm:$0xff]
        %v548 = vld [vmem:[#allocation5 + $0x338] sm:$0xff]
        %v549 = vld [vmem:[#allocation5 + $0x340] sm:$0xff]
        %v550 = vld [vmem:[#allocation5 + $0x348] sm:$0xff]
        %v551 = vld [vmem:[#allocation5 + $0x350] sm:$0xff]
        %v552 = vld [vmem:[#allocation5 + $0x358] sm:$0xff]
        %v553 = vld [vmem:[#allocation5 + $0x360] sm:$0xff]
        %v554 = vld [vmem:[#allocation5 + $0x368] sm:$0xff]
        %v555 = vld [vmem:[#allocation5 + $0x370] sm:$0xff]
        %v556 = vld [vmem:[#allocation5 + $0x378] sm:$0xff]
        %v557 = vld [vmem:[#allocation5 + $0x380] sm:$0xff]
        %v558 = vld [vmem:[#allocation5 + $0x388] sm:$0xff]
        %v559 = vld [vmem:[#allocation5 + $0x390] sm:$0xff]
        %v560 = vld [vmem:[#allocation5 + $0x398] sm:$0xff]
        %v561 = vld [vmem:[#allocation5 + $0x3a0] sm:$0xff]
        %v562 = vld [vmem:[#allocation5 + $0x3a8] sm:$0xff]
        %v563 = vld [vmem:[#allocation5 + $0x3b0] sm:$0xff]
        %v564 = vld [vmem:[#allocation5 + $0x3b8] sm:$0xff]
        %v565 = vld [vmem:[#allocation5 + $0x3c0] sm:$0xff]
        %v566 = vld [vmem:[#allocation5 + $0x3c8] sm:$0xff]
        %v567 = vld [vmem:[#allocation5 + $0x3d0] sm:$0xff]
        %v568 = vld [vmem:[#allocation5 + $0x3d8] sm:$0xff]
        %v569 = vld [vmem:[#allocation5 + $0x3e0] sm:$0xff]
        %v570 = vld [vmem:[#allocation5 + $0x3e8] sm:$0xff]
        %v571 = vld [vmem:[#allocation5 + $0x3f0] sm:$0xff]
        %v572 = vld [vmem:[#allocation5 + $0x3f8] sm:$0xff]
        %v573 = vld [vmem:[#allocation5 + $0x400] sm:$0xff]
        %v574 = vld [vmem:[#allocation5 + $0x408] sm:$0xff]
        %v575 = vld [vmem:[#allocation5 + $0x410] sm:$0xff]
        %v576 = vld [vmem:[#allocation5 + $0x418] sm:$0xff]
        %v577 = vld [vmem:[#allocation5 + $0x420] sm:$0xff]
        %v578 = vld [vmem:[#allocation5 + $0x428] sm:$0xff]
        %v579 = vld [vmem:[#allocation5 + $0x430] sm:$0xff]
        %v580 = vld [vmem:[#allocation5 + $0x438] sm:$0xff]
        %v581 = vld [vmem:[#allocation5 + $0x440] sm:$0xff]
        %v582 = vld [vmem:[#allocation5 + $0x448] sm:$0xff]
        %v583 = vld [vmem:[#allocation5 + $0x450] sm:$0xff]
        %v584 = vld [vmem:[#allocation5 + $0x458] sm:$0xff]
        %v585 = vld [vmem:[#allocation5 + $0x460] sm:$0xff]
        %v586 = vld [vmem:[#allocation5 + $0x468] sm:$0xff]
        %v587 = vld [vmem:[#allocation5 + $0x470] sm:$0xff]
        %v588 = vld [vmem:[#allocation5 + $0x478] sm:$0xff]
        %v589 = vld [vmem:[#allocation5 + $0x480] sm:$0xff]
        %v590 = vld [vmem:[#allocation5 + $0x488] sm:$0xff]
        %v591 = vld [vmem:[#allocation5 + $0x490] sm:$0xff]
        %v592 = vld [vmem:[#allocation5 + $0x498] sm:$0xff]
        %v593 = vld [vmem:[#allocation5 + $0x4a0] sm:$0xff]
        %v594 = vld [vmem:[#allocation5 + $0x4a8] sm:$0xff]
        %v595 = vld [vmem:[#allocation5 + $0x4b0] sm:$0xff]
        %v596 = vld [vmem:[#allocation5 + $0x4b8] sm:$0xff]
        %v597 = vld [vmem:[#allocation5 + $0x4c0] sm:$0xff]
        %v598 = vld [vmem:[#allocation5 + $0x4c8] sm:$0xff]
        %v599 = vld [vmem:[#allocation5 + $0x4d0] sm:$0xff]
        %v600 = vld [vmem:[#allocation5 + $0x4d8] sm:$0xff]
        %v601 = vld [vmem:[#allocation5 + $0x4e0] sm:$0xff]
        %v602 = vld [vmem:[#allocation5 + $0x4e8] sm:$0xff]
        %v603 = vld [vmem:[#allocation5 + $0x4f0] sm:$0xff]
        %v604 = vld [vmem:[#allocation5 + $0x4f8] sm:$0xff]
        %v605 = vld [vmem:[#allocation5 + $0x500] sm:$0xff]
        %v606 = vld [vmem:[#allocation5 + $0x508] sm:$0xff]
        %v607 = vld [vmem:[#allocation5 + $0x510] sm:$0xff]
        %v608 = vld [vmem:[#allocation5 + $0x518] sm:$0xff]
        %v609 = vld [vmem:[#allocation5 + $0x520] sm:$0xff]
        %v610 = vld [vmem:[#allocation5 + $0x528] sm:$0xff]
        %v611 = vld [vmem:[#allocation5 + $0x530] sm:$0xff]
        %v612 = vld [vmem:[#allocation5 + $0x538] sm:$0xff]
        %v613 = vld [vmem:[#allocation5 + $0x540] sm:$0xff]
        %v614 = vld [vmem:[#allocation5 + $0x548] sm:$0xff]
        %v615 = vld [vmem:[#allocation5 + $0x550] sm:$0xff]
        %v616 = vld [vmem:[#allocation5 + $0x558] sm:$0xff]
        %v617 = vld [vmem:[#allocation5 + $0x560] sm:$0xff]
        %v618 = vld [vmem:[#allocation5 + $0x568] sm:$0xff]
        %v619 = vld [vmem:[#allocation5 + $0x570] sm:$0xff]
        %v620 = vld [vmem:[#allocation5 + $0x578] sm:$0xff]
        %v621 = vld [vmem:[#allocation5 + $0x580] sm:$0xff]
        %v622 = vld [vmem:[#allocation5 + $0x588] sm:$0xff]
        %v623 = vld [vmem:[#allocation5 + $0x590] sm:$0xff]
        %v624 = vld [vmem:[#allocation5 + $0x598] sm:$0xff]
        %v625 = vld [vmem:[#allocation5 + $0x5a0] sm:$0xff]
        %v626 = vld [vmem:[#allocation5 + $0x5a8] sm:$0xff]
        %v627 = vld [vmem:[#allocation5 + $0x5b0] sm:$0xff]
        %v628 = vld [vmem:[#allocation5 + $0x5b8] sm:$0xff]
        %v629 = vld [vmem:[#allocation5 + $0x5c0] sm:$0xff]
        %v630 = vld [vmem:[#allocation5 + $0x5c8] sm:$0xff]
        %v631 = vld [vmem:[#allocation5 + $0x5d0] sm:$0xff]
        %v632 = vld [vmem:[#allocation5 + $0x5d8] sm:$0xff]
        %v633 = vld [vmem:[#allocation5 + $0x5e0] sm:$0xff]
        %v634 = vld [vmem:[#allocation5 + $0x5e8] sm:$0xff]
        %v635 = vld [vmem:[#allocation5 + $0x5f0] sm:$0xff]
        %v636 = vld [vmem:[#allocation5 + $0x5f8] sm:$0xff]
        %v637 = vld [vmem:[#allocation5 + $0x600] sm:$0xff]
        %v638 = vld [vmem:[#allocation5 + $0x608] sm:$0xff]
        %v639 = vld [vmem:[#allocation5 + $0x610] sm:$0xff]
        %v640 = vld [vmem:[#allocation5 + $0x618] sm:$0xff]
        %v641 = vld [vmem:[#allocation5 + $0x620] sm:$0xff]
        %v642 = vld [vmem:[#allocation5 + $0x628] sm:$0xff]
        %v643 = vld [vmem:[#allocation5 + $0x630] sm:$0xff]
        %v644 = vld [vmem:[#allocation5 + $0x638] sm:$0xff]
        %v645 = vld [vmem:[#allocation5 + $0x640] sm:$0xff]
        %v646 = vld [vmem:[#allocation5 + $0x648] sm:$0xff]
        %v647 = vld [vmem:[#allocation5 + $0x650] sm:$0xff]
        %v648 = vld [vmem:[#allocation5 + $0x658] sm:$0xff]
        %v649 = vld [vmem:[#allocation5 + $0x660] sm:$0xff]
        %v650 = vld [vmem:[#allocation5 + $0x668] sm:$0xff]
        %v651 = vld [vmem:[#allocation5 + $0x670] sm:$0xff]
        %v652 = vld [vmem:[#allocation5 + $0x678] sm:$0xff]
        %v653 = vld [vmem:[#allocation5 + $0x680] sm:$0xff]
        %v654 = vld [vmem:[#allocation5 + $0x688] sm:$0xff]
        %v655 = vld [vmem:[#allocation5 + $0x690] sm:$0xff]
        %v656 = vld [vmem:[#allocation5 + $0x698] sm:$0xff]
        %v657 = vld [vmem:[#allocation5 + $0x6a0] sm:$0xff]
        %v658 = vld [vmem:[#allocation5 + $0x6a8] sm:$0xff]
        %v659 = vld [vmem:[#allocation5 + $0x6b0] sm:$0xff]
        %v660 = vld [vmem:[#allocation5 + $0x6b8] sm:$0xff]
        %v661 = vld [vmem:[#allocation5 + $0x6c0] sm:$0xff]
        %v662 = vld [vmem:[#allocation5 + $0x6c8] sm:$0xff]
        %v663 = vld [vmem:[#allocation5 + $0x6d0] sm:$0xff]
        %v664 = vld [vmem:[#allocation5 + $0x6d8] sm:$0xff]
        %v665 = vld [vmem:[#allocation5 + $0x6e0] sm:$0xff]
        %v666 = vld [vmem:[#allocation5 + $0x6e8] sm:$0xff]
        %v667 = vld [vmem:[#allocation5 + $0x6f0] sm:$0xff]
        %v668 = vld [vmem:[#allocation5 + $0x6f8] sm:$0xff]
        %v669 = vld [vmem:[#allocation7] sm:$0xf]
        %v671 = vperm.slane %v669, 0
        %v672 = vperm.slane %v669, 1
        %v673 = vperm.slane %v669, 2
        %v674 = vperm.slane %v669, 3
        %v743 = vunpack.c.l.b16 %v381
        %v744 = vunpack.c.h.b16 %v381
        %v745 = vunpack.c.l.b16 %v382
        %v746 = vunpack.c.h.b16 %v382
        %v747 = vunpack.c.l.b16 %v383
        %v748 = vunpack.c.h.b16 %v383
        %v749 = vunpack.c.l.b16 %v384
        %v750 = vunpack.c.l.b16 %v385
        %v751 = vunpack.c.h.b16 %v385
        %v752 = vunpack.c.l.b16 %v386
        %v753 = vunpack.c.h.b16 %v386
        %v754 = vunpack.c.l.b16 %v387
        %v755 = vunpack.c.h.b16 %v387
        %v756 = vunpack.c.l.b16 %v388
        %v757 = vunpack.c.l.b16 %v389
        %v758 = vunpack.c.h.b16 %v389
        %v759 = vunpack.c.l.b16 %v390
        %v760 = vunpack.c.h.b16 %v390
        %v761 = vunpack.c.l.b16 %v391
        %v762 = vunpack.c.h.b16 %v391
        %v763 = vunpack.c.l.b16 %v392
        %v764 = vunpack.c.l.b16 %v393
        %v765 = vunpack.c.h.b16 %v393
        %v766 = vunpack.c.l.b16 %v394
        %v767 = vunpack.c.h.b16 %v394
        %v768 = vunpack.c.l.b16 %v395
        %v769 = vunpack.c.h.b16 %v395
        %v770 = vunpack.c.l.b16 %v396
        %v771 = vunpack.c.l.b16 %v397
        %v772 = vunpack.c.h.b16 %v397
        %v773 = vunpack.c.l.b16 %v398
        %v774 = vunpack.c.h.b16 %v398
        %v775 = vunpack.c.l.b16 %v399
        %v776 = vunpack.c.h.b16 %v399
        %v777 = vunpack.c.l.b16 %v400
        %v778 = vunpack.c.l.b16 %v401
        %v779 = vunpack.c.h.b16 %v401
        %v780 = vunpack.c.l.b16 %v402
        %v781 = vunpack.c.h.b16 %v402
        %v782 = vunpack.c.l.b16 %v403
        %v783 = vunpack.c.h.b16 %v403
        %v784 = vunpack.c.l.b16 %v404
        %v785 = vunpack.c.l.b16 %v405
        %v786 = vunpack.c.h.b16 %v405
        %v787 = vunpack.c.l.b16 %v406
        %v788 = vunpack.c.h.b16 %v406
        %v789 = vunpack.c.l.b16 %v407
        %v790 = vunpack.c.h.b16 %v407
        %v791 = vunpack.c.l.b16 %v408
        %v792 = vunpack.c.l.b16 %v409
        %v793 = vunpack.c.h.b16 %v409
        %v794 = vunpack.c.l.b16 %v410
        %v795 = vunpack.c.h.b16 %v410
        %v796 = vunpack.c.l.b16 %v411
        %v797 = vunpack.c.h.b16 %v411
        %v798 = vunpack.c.l.b16 %v412
        %v799 = vunpack.c.l.b16 %v413
        %v800 = vunpack.c.h.b16 %v413
        %v801 = vunpack.c.l.b16 %v414
        %v802 = vunpack.c.h.b16 %v414
        %v803 = vunpack.c.l.b16 %v415
        %v804 = vunpack.c.h.b16 %v415
        %v805 = vunpack.c.l.b16 %v416
        %v806 = vunpack.c.l.b16 %v417
        %v807 = vunpack.c.h.b16 %v417
        %v808 = vunpack.c.l.b16 %v418
        %v809 = vunpack.c.h.b16 %v418
        %v810 = vunpack.c.l.b16 %v419
        %v811 = vunpack.c.h.b16 %v419
        %v812 = vunpack.c.l.b16 %v420
        %v813 = vunpack.c.l.b16 %v421
        %v814 = vunpack.c.h.b16 %v421
        %v815 = vunpack.c.l.b16 %v422
        %v816 = vunpack.c.h.b16 %v422
        %v817 = vunpack.c.l.b16 %v423
        %v818 = vunpack.c.h.b16 %v423
        %v819 = vunpack.c.l.b16 %v424
        %v820 = vunpack.c.l.b16 %v425
        %v821 = vunpack.c.h.b16 %v425
        %v822 = vunpack.c.l.b16 %v426
        %v823 = vunpack.c.h.b16 %v426
        %v824 = vunpack.c.l.b16 %v427
        %v825 = vunpack.c.h.b16 %v427
        %v826 = vunpack.c.l.b16 %v428
        %v827 = vunpack.c.l.b16 %v429
        %v828 = vunpack.c.h.b16 %v429
        %v829 = vunpack.c.l.b16 %v430
        %v830 = vunpack.c.h.b16 %v430
        %v831 = vunpack.c.l.b16 %v431
        %v832 = vunpack.c.h.b16 %v431
        %v833 = vunpack.c.l.b16 %v432
        %v834 = vunpack.c.l.b16 %v433
        %v835 = vunpack.c.h.b16 %v433
        %v836 = vunpack.c.l.b16 %v434
        %v837 = vunpack.c.h.b16 %v434
        %v838 = vunpack.c.l.b16 %v435
        %v839 = vunpack.c.h.b16 %v435
        %v840 = vunpack.c.l.b16 %v436
        %v841 = vunpack.c.l.b16 %v437
        %v842 = vunpack.c.h.b16 %v437
        %v843 = vunpack.c.l.b16 %v438
        %v844 = vunpack.c.h.b16 %v438
        %v845 = vunpack.c.l.b16 %v439
        %v846 = vunpack.c.h.b16 %v439
        %v847 = vunpack.c.l.b16 %v440
        %v848 = vunpack.c.l.b16 %v441
        %v849 = vunpack.c.h.b16 %v441
        %v850 = vunpack.c.l.b16 %v442
        %v851 = vunpack.c.h.b16 %v442
        %v852 = vunpack.c.l.b16 %v443
        %v853 = vunpack.c.h.b16 %v443
        %v854 = vunpack.c.l.b16 %v444
        %v855 = vpack.c.b16 %v750, %v743
        %v856 = vpack.c.b16 %v751, %v744
        %v857 = vpack.c.b16 %v752, %v745
        %v858 = vpack.c.b16 %v753, %v746
        %v859 = vpack.c.b16 %v754, %v747
        %v860 = vpack.c.b16 %v755, %v748
        %v861 = vpack.c.b16 %v756, %v749
        %v862 = vpack.c.b16 %v764, %v757
        %v863 = vpack.c.b16 %v765, %v758
        %v864 = vpack.c.b16 %v766, %v759
        %v865 = vpack.c.b16 %v767, %v760
        %v866 = vpack.c.b16 %v768, %v761
        %v867 = vpack.c.b16 %v769, %v762
        %v868 = vpack.c.b16 %v770, %v763
        %v869 = vpack.c.b16 %v778, %v771
        %v870 = vpack.c.b16 %v779, %v772
        %v871 = vpack.c.b16 %v780, %v773
        %v872 = vpack.c.b16 %v781, %v774
        %v873 = vpack.c.b16 %v782, %v775
        %v874 = vpack.c.b16 %v783, %v776
        %v875 = vpack.c.b16 %v784, %v777
        %v876 = vpack.c.b16 %v792, %v785
        %v877 = vpack.c.b16 %v793, %v786
        %v878 = vpack.c.b16 %v794, %v787
        %v879 = vpack.c.b16 %v795, %v788
        %v880 = vpack.c.b16 %v796, %v789
        %v881 = vpack.c.b16 %v797, %v790
        %v882 = vpack.c.b16 %v798, %v791
        %v883 = vpack.c.b16 %v806, %v799
        %v884 = vpack.c.b16 %v807, %v800
        %v885 = vpack.c.b16 %v808, %v801
        %v886 = vpack.c.b16 %v809, %v802
        %v887 = vpack.c.b16 %v810, %v803
        %v888 = vpack.c.b16 %v811, %v804
        %v889 = vpack.c.b16 %v812, %v805
        %v890 = vpack.c.b16 %v820, %v813
        %v891 = vpack.c.b16 %v821, %v814
        %v892 = vpack.c.b16 %v822, %v815
        %v893 = vpack.c.b16 %v823, %v816
        %v894 = vpack.c.b16 %v824, %v817
        %v895 = vpack.c.b16 %v825, %v818
        %v896 = vpack.c.b16 %v826, %v819
        %v897 = vpack.c.b16 %v834, %v827
        %v898 = vpack.c.b16 %v835, %v828
        %v899 = vpack.c.b16 %v836, %v829
        %v900 = vpack.c.b16 %v837, %v830
        %v901 = vpack.c.b16 %v838, %v831
        %v902 = vpack.c.b16 %v839, %v832
        %v903 = vpack.c.b16 %v840, %v833
        %v904 = vpack.c.b16 %v848, %v841
        %v905 = vpack.c.b16 %v849, %v842
        %v906 = vpack.c.b16 %v850, %v843
        %v907 = vpack.c.b16 %v851, %v844
        %v908 = vpack.c.b16 %v852, %v845
        %v909 = vpack.c.b16 %v853, %v846
        %v910 = vpack.c.b16 %v854, %v847
        %v1191 = vunpack.c.l.b16 %v445
        %v1192 = vunpack.c.h.b16 %v445
        %v1193 = vunpack.c.l.b16 %v446
        %v1194 = vunpack.c.h.b16 %v446
        %v1195 = vunpack.c.l.b16 %v447
        %v1196 = vunpack.c.h.b16 %v447
        %v1197 = vunpack.c.l.b16 %v448
        %v1198 = vunpack.c.h.b16 %v448
        %v1199 = vunpack.c.l.b16 %v449
        %v1200 = vunpack.c.h.b16 %v449
        %v1201 = vunpack.c.l.b16 %v450
        %v1202 = vunpack.c.h.b16 %v450
        %v1203 = vunpack.c.l.b16 %v451
        %v1204 = vunpack.c.h.b16 %v451
        %v1205 = vunpack.c.l.b16 %v452
        %v1206 = vunpack.c.h.b16 %v452
        %v1207 = vunpack.c.l.b16 %v453
        %v1208 = vunpack.c.h.b16 %v453
        %v1209 = vunpack.c.l.b16 %v454
        %v1210 = vunpack.c.h.b16 %v454
        %v1211 = vunpack.c.l.b16 %v455
        %v1212 = vunpack.c.h.b16 %v455
        %v1213 = vunpack.c.l.b16 %v456
        %v1214 = vunpack.c.h.b16 %v456
        %v1215 = vunpack.c.l.b16 %v457
        %v1216 = vunpack.c.h.b16 %v457
        %v1217 = vunpack.c.l.b16 %v458
        %v1218 = vunpack.c.h.b16 %v458
        %v1219 = vunpack.c.l.b16 %v459
        %v1220 = vunpack.c.h.b16 %v459
        %v1221 = vunpack.c.l.b16 %v460
        %v1222 = vunpack.c.h.b16 %v460
        %v1223 = vunpack.c.l.b16 %v461
        %v1224 = vunpack.c.h.b16 %v461
        %v1225 = vunpack.c.l.b16 %v462
        %v1226 = vunpack.c.h.b16 %v462
        %v1227 = vunpack.c.l.b16 %v463
        %v1228 = vunpack.c.h.b16 %v463
        %v1229 = vunpack.c.l.b16 %v464
        %v1230 = vunpack.c.h.b16 %v464
        %v1231 = vunpack.c.l.b16 %v465
        %v1232 = vunpack.c.h.b16 %v465
        %v1233 = vunpack.c.l.b16 %v466
        %v1234 = vunpack.c.h.b16 %v466
        %v1235 = vunpack.c.l.b16 %v467
        %v1236 = vunpack.c.h.b16 %v467
        %v1237 = vunpack.c.l.b16 %v468
        %v1238 = vunpack.c.h.b16 %v468
        %v1239 = vunpack.c.l.b16 %v469
        %v1240 = vunpack.c.h.b16 %v469
        %v1241 = vunpack.c.l.b16 %v470
        %v1242 = vunpack.c.h.b16 %v470
        %v1243 = vunpack.c.l.b16 %v471
        %v1244 = vunpack.c.h.b16 %v471
        %v1245 = vunpack.c.l.b16 %v472
        %v1246 = vunpack.c.h.b16 %v472
        %v1247 = vunpack.c.l.b16 %v473
        %v1248 = vunpack.c.h.b16 %v473
        %v1249 = vunpack.c.l.b16 %v474
        %v1250 = vunpack.c.h.b16 %v474
        %v1251 = vunpack.c.l.b16 %v475
        %v1252 = vunpack.c.h.b16 %v475
        %v1253 = vunpack.c.l.b16 %v476
        %v1254 = vunpack.c.h.b16 %v476
        %v1255 = vunpack.c.l.b16 %v477
        %v1256 = vunpack.c.h.b16 %v477
        %v1257 = vunpack.c.l.b16 %v478
        %v1258 = vunpack.c.h.b16 %v478
        %v1259 = vunpack.c.l.b16 %v479
        %v1260 = vunpack.c.h.b16 %v479
        %v1261 = vunpack.c.l.b16 %v480
        %v1262 = vunpack.c.h.b16 %v480
        %v1263 = vunpack.c.l.b16 %v481
        %v1264 = vunpack.c.h.b16 %v481
        %v1265 = vunpack.c.l.b16 %v482
        %v1266 = vunpack.c.h.b16 %v482
        %v1267 = vunpack.c.l.b16 %v483
        %v1268 = vunpack.c.h.b16 %v483
        %v1269 = vunpack.c.l.b16 %v484
        %v1270 = vunpack.c.h.b16 %v484
        %v1271 = vunpack.c.l.b16 %v485
        %v1272 = vunpack.c.h.b16 %v485
        %v1273 = vunpack.c.l.b16 %v486
        %v1274 = vunpack.c.h.b16 %v486
        %v1275 = vunpack.c.l.b16 %v487
        %v1276 = vunpack.c.h.b16 %v487
        %v1277 = vunpack.c.l.b16 %v488
        %v1278 = vunpack.c.h.b16 %v488
        %v1279 = vunpack.c.l.b16 %v489
        %v1280 = vunpack.c.h.b16 %v489
        %v1281 = vunpack.c.l.b16 %v490
        %v1282 = vunpack.c.h.b16 %v490
        %v1283 = vunpack.c.l.b16 %v491
        %v1284 = vunpack.c.h.b16 %v491
        %v1285 = vunpack.c.l.b16 %v492
        %v1286 = vunpack.c.h.b16 %v492
        %v1287 = vunpack.c.l.b16 %v493
        %v1288 = vunpack.c.h.b16 %v493
        %v1289 = vunpack.c.l.b16 %v494
        %v1290 = vunpack.c.h.b16 %v494
        %v1291 = vunpack.c.l.b16 %v495
        %v1292 = vunpack.c.h.b16 %v495
        %v1293 = vunpack.c.l.b16 %v496
        %v1294 = vunpack.c.h.b16 %v496
        %v1295 = vunpack.c.l.b16 %v497
        %v1296 = vunpack.c.h.b16 %v497
        %v1297 = vunpack.c.l.b16 %v498
        %v1298 = vunpack.c.h.b16 %v498
        %v1299 = vunpack.c.l.b16 %v499
        %v1300 = vunpack.c.h.b16 %v499
        %v1301 = vunpack.c.l.b16 %v500
        %v1302 = vunpack.c.h.b16 %v500
        %v1303 = vunpack.c.l.b16 %v501
        %v1304 = vunpack.c.h.b16 %v501
        %v1305 = vunpack.c.l.b16 %v502
        %v1306 = vunpack.c.h.b16 %v502
        %v1307 = vunpack.c.l.b16 %v503
        %v1308 = vunpack.c.h.b16 %v503
        %v1309 = vunpack.c.l.b16 %v504
        %v1310 = vunpack.c.h.b16 %v504
        %v1311 = vunpack.c.l.b16 %v505
        %v1312 = vunpack.c.h.b16 %v505
        %v1313 = vunpack.c.l.b16 %v506
        %v1314 = vunpack.c.h.b16 %v506
        %v1315 = vunpack.c.l.b16 %v507
        %v1316 = vunpack.c.h.b16 %v507
        %v1317 = vunpack.c.l.b16 %v508
        %v1318 = vunpack.c.h.b16 %v508
        %v1319 = vunpack.c.l.b16 %v509
        %v1320 = vunpack.c.h.b16 %v509
        %v1321 = vunpack.c.l.b16 %v510
        %v1322 = vunpack.c.h.b16 %v510
        %v1323 = vunpack.c.l.b16 %v511
        %v1324 = vunpack.c.h.b16 %v511
        %v1325 = vunpack.c.l.b16 %v512
        %v1326 = vunpack.c.h.b16 %v512
        %v1327 = vunpack.c.l.b16 %v513
        %v1328 = vunpack.c.h.b16 %v513
        %v1329 = vunpack.c.l.b16 %v514
        %v1330 = vunpack.c.h.b16 %v514
        %v1331 = vunpack.c.l.b16 %v515
        %v1332 = vunpack.c.h.b16 %v515
        %v1333 = vunpack.c.l.b16 %v516
        %v1334 = vunpack.c.h.b16 %v516
        %v1335 = vunpack.c.l.b16 %v517
        %v1336 = vunpack.c.h.b16 %v517
        %v1337 = vunpack.c.l.b16 %v518
        %v1338 = vunpack.c.h.b16 %v518
        %v1339 = vunpack.c.l.b16 %v519
        %v1340 = vunpack.c.h.b16 %v519
        %v1341 = vunpack.c.l.b16 %v520
        %v1342 = vunpack.c.h.b16 %v520
        %v1343 = vunpack.c.l.b16 %v521
        %v1344 = vunpack.c.h.b16 %v521
        %v1345 = vunpack.c.l.b16 %v522
        %v1346 = vunpack.c.h.b16 %v522
        %v1347 = vunpack.c.l.b16 %v523
        %v1348 = vunpack.c.h.b16 %v523
        %v1349 = vunpack.c.l.b16 %v524
        %v1350 = vunpack.c.h.b16 %v524
        %v1351 = vunpack.c.l.b16 %v525
        %v1352 = vunpack.c.h.b16 %v525
        %v1353 = vunpack.c.l.b16 %v526
        %v1354 = vunpack.c.h.b16 %v526
        %v1355 = vunpack.c.l.b16 %v527
        %v1356 = vunpack.c.h.b16 %v527
        %v1357 = vunpack.c.l.b16 %v528
        %v1358 = vunpack.c.h.b16 %v528
        %v1359 = vunpack.c.l.b16 %v529
        %v1360 = vunpack.c.h.b16 %v529
        %v1361 = vunpack.c.l.b16 %v530
        %v1362 = vunpack.c.h.b16 %v530
        %v1363 = vunpack.c.l.b16 %v531
        %v1364 = vunpack.c.h.b16 %v531
        %v1365 = vunpack.c.l.b16 %v532
        %v1366 = vunpack.c.h.b16 %v532
        %v1367 = vunpack.c.l.b16 %v533
        %v1368 = vunpack.c.h.b16 %v533
        %v1369 = vunpack.c.l.b16 %v534
        %v1370 = vunpack.c.h.b16 %v534
        %v1371 = vunpack.c.l.b16 %v535
        %v1372 = vunpack.c.h.b16 %v535
        %v1373 = vunpack.c.l.b16 %v536
        %v1374 = vunpack.c.h.b16 %v536
        %v1375 = vunpack.c.l.b16 %v537
        %v1376 = vunpack.c.h.b16 %v537
        %v1377 = vunpack.c.l.b16 %v538
        %v1378 = vunpack.c.h.b16 %v538
        %v1379 = vunpack.c.l.b16 %v539
        %v1380 = vunpack.c.h.b16 %v539
        %v1381 = vunpack.c.l.b16 %v540
        %v1382 = vunpack.c.h.b16 %v540
        %v1383 = vunpack.c.l.b16 %v541
        %v1384 = vunpack.c.h.b16 %v541
        %v1385 = vunpack.c.l.b16 %v542
        %v1386 = vunpack.c.h.b16 %v542
        %v1387 = vunpack.c.l.b16 %v543
        %v1388 = vunpack.c.h.b16 %v543
        %v1389 = vunpack.c.l.b16 %v544
        %v1390 = vunpack.c.h.b16 %v544
        %v1391 = vunpack.c.l.b16 %v545
        %v1392 = vunpack.c.h.b16 %v545
        %v1393 = vunpack.c.l.b16 %v546
        %v1394 = vunpack.c.h.b16 %v546
        %v1395 = vunpack.c.l.b16 %v547
        %v1396 = vunpack.c.h.b16 %v547
        %v1397 = vunpack.c.l.b16 %v548
        %v1398 = vunpack.c.h.b16 %v548
        %v1399 = vunpack.c.l.b16 %v549
        %v1400 = vunpack.c.h.b16 %v549
        %v1401 = vunpack.c.l.b16 %v550
        %v1402 = vunpack.c.h.b16 %v550
        %v1403 = vunpack.c.l.b16 %v551
        %v1404 = vunpack.c.h.b16 %v551
        %v1405 = vunpack.c.l.b16 %v552
        %v1406 = vunpack.c.h.b16 %v552
        %v1407 = vunpack.c.l.b16 %v553
        %v1408 = vunpack.c.h.b16 %v553
        %v1409 = vunpack.c.l.b16 %v554
        %v1410 = vunpack.c.h.b16 %v554
        %v1411 = vunpack.c.l.b16 %v555
        %v1412 = vunpack.c.h.b16 %v555
        %v1413 = vunpack.c.l.b16 %v556
        %v1414 = vunpack.c.h.b16 %v556
        %v1415 = vunpack.c.l.b16 %v557
        %v1416 = vunpack.c.h.b16 %v557
        %v1417 = vunpack.c.l.b16 %v558
        %v1418 = vunpack.c.h.b16 %v558
        %v1419 = vunpack.c.l.b16 %v559
        %v1420 = vunpack.c.h.b16 %v559
        %v1421 = vunpack.c.l.b16 %v560
        %v1422 = vunpack.c.h.b16 %v560
        %v1423 = vunpack.c.l.b16 %v561
        %v1424 = vunpack.c.h.b16 %v561
        %v1425 = vunpack.c.l.b16 %v562
        %v1426 = vunpack.c.h.b16 %v562
        %v1427 = vunpack.c.l.b16 %v563
        %v1428 = vunpack.c.h.b16 %v563
        %v1429 = vunpack.c.l.b16 %v564
        %v1430 = vunpack.c.h.b16 %v564
        %v1431 = vunpack.c.l.b16 %v565
        %v1432 = vunpack.c.h.b16 %v565
        %v1433 = vunpack.c.l.b16 %v566
        %v1434 = vunpack.c.h.b16 %v566
        %v1435 = vunpack.c.l.b16 %v567
        %v1436 = vunpack.c.h.b16 %v567
        %v1437 = vunpack.c.l.b16 %v568
        %v1438 = vunpack.c.h.b16 %v568
        %v1439 = vunpack.c.l.b16 %v569
        %v1440 = vunpack.c.h.b16 %v569
        %v1441 = vunpack.c.l.b16 %v570
        %v1442 = vunpack.c.h.b16 %v570
        %v1443 = vunpack.c.l.b16 %v571
        %v1444 = vunpack.c.h.b16 %v571
        %v1445 = vunpack.c.l.b16 %v572
        %v1446 = vunpack.c.h.b16 %v572
        %v1447 = vunpack.c.l.b16 %v573
        %v1448 = vunpack.c.h.b16 %v573
        %v1449 = vunpack.c.l.b16 %v574
        %v1450 = vunpack.c.h.b16 %v574
        %v1451 = vunpack.c.l.b16 %v575
        %v1452 = vunpack.c.h.b16 %v575
        %v1453 = vunpack.c.l.b16 %v576
        %v1454 = vunpack.c.h.b16 %v576
        %v1455 = vunpack.c.l.b16 %v577
        %v1456 = vunpack.c.h.b16 %v577
        %v1457 = vunpack.c.l.b16 %v578
        %v1458 = vunpack.c.h.b16 %v578
        %v1459 = vunpack.c.l.b16 %v579
        %v1460 = vunpack.c.h.b16 %v579
        %v1461 = vunpack.c.l.b16 %v580
        %v1462 = vunpack.c.h.b16 %v580
        %v1463 = vunpack.c.l.b16 %v581
        %v1464 = vunpack.c.h.b16 %v581
        %v1465 = vunpack.c.l.b16 %v582
        %v1466 = vunpack.c.h.b16 %v582
        %v1467 = vunpack.c.l.b16 %v583
        %v1468 = vunpack.c.h.b16 %v583
        %v1469 = vunpack.c.l.b16 %v584
        %v1470 = vunpack.c.h.b16 %v584
        %v1471 = vunpack.c.l.b16 %v585
        %v1472 = vunpack.c.h.b16 %v585
        %v1473 = vunpack.c.l.b16 %v586
        %v1474 = vunpack.c.h.b16 %v586
        %v1475 = vunpack.c.l.b16 %v587
        %v1476 = vunpack.c.h.b16 %v587
        %v1477 = vunpack.c.l.b16 %v588
        %v1478 = vunpack.c.h.b16 %v588
        %v1479 = vunpack.c.l.b16 %v589
        %v1480 = vunpack.c.h.b16 %v589
        %v1481 = vunpack.c.l.b16 %v590
        %v1482 = vunpack.c.h.b16 %v590
        %v1483 = vunpack.c.l.b16 %v591
        %v1484 = vunpack.c.h.b16 %v591
        %v1485 = vunpack.c.l.b16 %v592
        %v1486 = vunpack.c.h.b16 %v592
        %v1487 = vunpack.c.l.b16 %v593
        %v1488 = vunpack.c.h.b16 %v593
        %v1489 = vunpack.c.l.b16 %v594
        %v1490 = vunpack.c.h.b16 %v594
        %v1491 = vunpack.c.l.b16 %v595
        %v1492 = vunpack.c.h.b16 %v595
        %v1493 = vunpack.c.l.b16 %v596
        %v1494 = vunpack.c.h.b16 %v596
        %v1495 = vunpack.c.l.b16 %v597
        %v1496 = vunpack.c.h.b16 %v597
        %v1497 = vunpack.c.l.b16 %v598
        %v1498 = vunpack.c.h.b16 %v598
        %v1499 = vunpack.c.l.b16 %v599
        %v1500 = vunpack.c.h.b16 %v599
        %v1501 = vunpack.c.l.b16 %v600
        %v1502 = vunpack.c.h.b16 %v600
        %v1503 = vunpack.c.l.b16 %v601
        %v1504 = vunpack.c.h.b16 %v601
        %v1505 = vunpack.c.l.b16 %v602
        %v1506 = vunpack.c.h.b16 %v602
        %v1507 = vunpack.c.l.b16 %v603
        %v1508 = vunpack.c.h.b16 %v603
        %v1509 = vunpack.c.l.b16 %v604
        %v1510 = vunpack.c.h.b16 %v604
        %v1511 = vunpack.c.l.b16 %v605
        %v1512 = vunpack.c.h.b16 %v605
        %v1513 = vunpack.c.l.b16 %v606
        %v1514 = vunpack.c.h.b16 %v606
        %v1515 = vunpack.c.l.b16 %v607
        %v1516 = vunpack.c.h.b16 %v607
        %v1517 = vunpack.c.l.b16 %v608
        %v1518 = vunpack.c.h.b16 %v608
        %v1519 = vunpack.c.l.b16 %v609
        %v1520 = vunpack.c.h.b16 %v609
        %v1521 = vunpack.c.l.b16 %v610
        %v1522 = vunpack.c.h.b16 %v610
        %v1523 = vunpack.c.l.b16 %v611
        %v1524 = vunpack.c.h.b16 %v611
        %v1525 = vunpack.c.l.b16 %v612
        %v1526 = vunpack.c.h.b16 %v612
        %v1527 = vunpack.c.l.b16 %v613
        %v1528 = vunpack.c.h.b16 %v613
        %v1529 = vunpack.c.l.b16 %v614
        %v1530 = vunpack.c.h.b16 %v614
        %v1531 = vunpack.c.l.b16 %v615
        %v1532 = vunpack.c.h.b16 %v615
        %v1533 = vunpack.c.l.b16 %v616
        %v1534 = vunpack.c.h.b16 %v616
        %v1535 = vunpack.c.l.b16 %v617
        %v1536 = vunpack.c.h.b16 %v617
        %v1537 = vunpack.c.l.b16 %v618
        %v1538 = vunpack.c.h.b16 %v618
        %v1539 = vunpack.c.l.b16 %v619
        %v1540 = vunpack.c.h.b16 %v619
        %v1541 = vunpack.c.l.b16 %v620
        %v1542 = vunpack.c.h.b16 %v620
        %v1543 = vunpack.c.l.b16 %v621
        %v1544 = vunpack.c.h.b16 %v621
        %v1545 = vunpack.c.l.b16 %v622
        %v1546 = vunpack.c.h.b16 %v622
        %v1547 = vunpack.c.l.b16 %v623
        %v1548 = vunpack.c.h.b16 %v623
        %v1549 = vunpack.c.l.b16 %v624
        %v1550 = vunpack.c.h.b16 %v624
        %v1551 = vunpack.c.l.b16 %v625
        %v1552 = vunpack.c.h.b16 %v625
        %v1553 = vunpack.c.l.b16 %v626
        %v1554 = vunpack.c.h.b16 %v626
        %v1555 = vunpack.c.l.b16 %v627
        %v1556 = vunpack.c.h.b16 %v627
        %v1557 = vunpack.c.l.b16 %v628
        %v1558 = vunpack.c.h.b16 %v628
        %v1559 = vunpack.c.l.b16 %v629
        %v1560 = vunpack.c.h.b16 %v629
        %v1561 = vunpack.c.l.b16 %v630
        %v1562 = vunpack.c.h.b16 %v630
        %v1563 = vunpack.c.l.b16 %v631
        %v1564 = vunpack.c.h.b16 %v631
        %v1565 = vunpack.c.l.b16 %v632
        %v1566 = vunpack.c.h.b16 %v632
        %v1567 = vunpack.c.l.b16 %v633
        %v1568 = vunpack.c.h.b16 %v633
        %v1569 = vunpack.c.l.b16 %v634
        %v1570 = vunpack.c.h.b16 %v634
        %v1571 = vunpack.c.l.b16 %v635
        %v1572 = vunpack.c.h.b16 %v635
        %v1573 = vunpack.c.l.b16 %v636
        %v1574 = vunpack.c.h.b16 %v636
        %v1575 = vunpack.c.l.b16 %v637
        %v1576 = vunpack.c.h.b16 %v637
        %v1577 = vunpack.c.l.b16 %v638
        %v1578 = vunpack.c.h.b16 %v638
        %v1579 = vunpack.c.l.b16 %v639
        %v1580 = vunpack.c.h.b16 %v639
        %v1581 = vunpack.c.l.b16 %v640
        %v1582 = vunpack.c.h.b16 %v640
        %v1583 = vunpack.c.l.b16 %v641
        %v1584 = vunpack.c.h.b16 %v641
        %v1585 = vunpack.c.l.b16 %v642
        %v1586 = vunpack.c.h.b16 %v642
        %v1587 = vunpack.c.l.b16 %v643
        %v1588 = vunpack.c.h.b16 %v643
        %v1589 = vunpack.c.l.b16 %v644
        %v1590 = vunpack.c.h.b16 %v644
        %v1591 = vunpack.c.l.b16 %v645
        %v1592 = vunpack.c.h.b16 %v645
        %v1593 = vunpack.c.l.b16 %v646
        %v1594 = vunpack.c.h.b16 %v646
        %v1595 = vunpack.c.l.b16 %v647
        %v1596 = vunpack.c.h.b16 %v647
        %v1597 = vunpack.c.l.b16 %v648
        %v1598 = vunpack.c.h.b16 %v648
        %v1599 = vunpack.c.l.b16 %v649
        %v1600 = vunpack.c.h.b16 %v649
        %v1601 = vunpack.c.l.b16 %v650
        %v1602 = vunpack.c.h.b16 %v650
        %v1603 = vunpack.c.l.b16 %v651
        %v1604 = vunpack.c.h.b16 %v651
        %v1605 = vunpack.c.l.b16 %v652
        %v1606 = vunpack.c.h.b16 %v652
        %v1607 = vunpack.c.l.b16 %v653
        %v1608 = vunpack.c.h.b16 %v653
        %v1609 = vunpack.c.l.b16 %v654
        %v1610 = vunpack.c.h.b16 %v654
        %v1611 = vunpack.c.l.b16 %v655
        %v1612 = vunpack.c.h.b16 %v655
        %v1613 = vunpack.c.l.b16 %v656
        %v1614 = vunpack.c.h.b16 %v656
        %v1615 = vunpack.c.l.b16 %v657
        %v1616 = vunpack.c.h.b16 %v657
        %v1617 = vunpack.c.l.b16 %v658
        %v1618 = vunpack.c.h.b16 %v658
        %v1619 = vunpack.c.l.b16 %v659
        %v1620 = vunpack.c.h.b16 %v659
        %v1621 = vunpack.c.l.b16 %v660
        %v1622 = vunpack.c.h.b16 %v660
        %v1623 = vunpack.c.l.b16 %v661
        %v1624 = vunpack.c.h.b16 %v661
        %v1625 = vunpack.c.l.b16 %v662
        %v1626 = vunpack.c.h.b16 %v662
        %v1627 = vunpack.c.l.b16 %v663
        %v1628 = vunpack.c.h.b16 %v663
        %v1629 = vunpack.c.l.b16 %v664
        %v1630 = vunpack.c.h.b16 %v664
        %v1631 = vunpack.c.l.b16 %v665
        %v1632 = vunpack.c.h.b16 %v665
        %v1633 = vunpack.c.l.b16 %v666
        %v1634 = vunpack.c.h.b16 %v666
        %v1635 = vunpack.c.l.b16 %v667
        %v1636 = vunpack.c.h.b16 %v667
        %v1637 = vunpack.c.l.b16 %v668
        %v1638 = vunpack.c.h.b16 %v668
        %v1639 = vpack.c.b16 %v1195, %v1191
        %v1640 = vpack.c.b16 %v1196, %v1192
        %v1641 = vpack.c.b16 %v1197, %v1193
        %v1642 = vpack.c.b16 %v1198, %v1194
        %v1643 = vpack.c.b16 %v1203, %v1199
        %v1644 = vpack.c.b16 %v1204, %v1200
        %v1645 = vpack.c.b16 %v1205, %v1201
        %v1646 = vpack.c.b16 %v1206, %v1202
        %v1647 = vpack.c.b16 %v1211, %v1207
        %v1648 = vpack.c.b16 %v1212, %v1208
        %v1649 = vpack.c.b16 %v1213, %v1209
        %v1650 = vpack.c.b16 %v1214, %v1210
        %v1651 = vpack.c.b16 %v1219, %v1215
        %v1652 = vpack.c.b16 %v1220, %v1216
        %v1653 = vpack.c.b16 %v1221, %v1217
        %v1654 = vpack.c.b16 %v1222, %v1218
        %v1655 = vpack.c.b16 %v1227, %v1223
        %v1656 = vpack.c.b16 %v1228, %v1224
        %v1657 = vpack.c.b16 %v1229, %v1225
        %v1658 = vpack.c.b16 %v1230, %v1226
        %v1659 = vpack.c.b16 %v1235, %v1231
        %v1660 = vpack.c.b16 %v1236, %v1232
        %v1661 = vpack.c.b16 %v1237, %v1233
        %v1662 = vpack.c.b16 %v1238, %v1234
        %v1663 = vpack.c.b16 %v1243, %v1239
        %v1664 = vpack.c.b16 %v1244, %v1240
        %v1665 = vpack.c.b16 %v1245, %v1241
        %v1666 = vpack.c.b16 %v1246, %v1242
        %v1667 = vpack.c.b16 %v1251, %v1247
        %v1668 = vpack.c.b16 %v1252, %v1248
        %v1669 = vpack.c.b16 %v1253, %v1249
        %v1670 = vpack.c.b16 %v1254, %v1250
        %v1671 = vpack.c.b16 %v1259, %v1255
        %v1672 = vpack.c.b16 %v1260, %v1256
        %v1673 = vpack.c.b16 %v1261, %v1257
        %v1674 = vpack.c.b16 %v1262, %v1258
        %v1675 = vpack.c.b16 %v1267, %v1263
        %v1676 = vpack.c.b16 %v1268, %v1264
        %v1677 = vpack.c.b16 %v1269, %v1265
        %v1678 = vpack.c.b16 %v1270, %v1266
        %v1679 = vpack.c.b16 %v1275, %v1271
        %v1680 = vpack.c.b16 %v1276, %v1272
        %v1681 = vpack.c.b16 %v1277, %v1273
        %v1682 = vpack.c.b16 %v1278, %v1274
        %v1683 = vpack.c.b16 %v1283, %v1279
        %v1684 = vpack.c.b16 %v1284, %v1280
        %v1685 = vpack.c.b16 %v1285, %v1281
        %v1686 = vpack.c.b16 %v1286, %v1282
        %v1687 = vpack.c.b16 %v1291, %v1287
        %v1688 = vpack.c.b16 %v1292, %v1288
        %v1689 = vpack.c.b16 %v1293, %v1289
        %v1690 = vpack.c.b16 %v1294, %v1290
        %v1691 = vpack.c.b16 %v1299, %v1295
        %v1692 = vpack.c.b16 %v1300, %v1296
        %v1693 = vpack.c.b16 %v1301, %v1297
        %v1694 = vpack.c.b16 %v1302, %v1298
        %v1695 = vpack.c.b16 %v1307, %v1303
        %v1696 = vpack.c.b16 %v1308, %v1304
        %v1697 = vpack.c.b16 %v1309, %v1305
        %v1698 = vpack.c.b16 %v1310, %v1306
        %v1699 = vpack.c.b16 %v1315, %v1311
        %v1700 = vpack.c.b16 %v1316, %v1312
        %v1701 = vpack.c.b16 %v1317, %v1313
        %v1702 = vpack.c.b16 %v1318, %v1314
        %v1703 = vpack.c.b16 %v1323, %v1319
        %v1704 = vpack.c.b16 %v1324, %v1320
        %v1705 = vpack.c.b16 %v1325, %v1321
        %v1706 = vpack.c.b16 %v1326, %v1322
        %v1707 = vpack.c.b16 %v1331, %v1327
        %v1708 = vpack.c.b16 %v1332, %v1328
        %v1709 = vpack.c.b16 %v1333, %v1329
        %v1710 = vpack.c.b16 %v1334, %v1330
        %v1711 = vpack.c.b16 %v1339, %v1335
        %v1712 = vpack.c.b16 %v1340, %v1336
        %v1713 = vpack.c.b16 %v1341, %v1337
        %v1714 = vpack.c.b16 %v1342, %v1338
        %v1715 = vpack.c.b16 %v1347, %v1343
        %v1716 = vpack.c.b16 %v1348, %v1344
        %v1717 = vpack.c.b16 %v1349, %v1345
        %v1718 = vpack.c.b16 %v1350, %v1346
        %v1719 = vpack.c.b16 %v1355, %v1351
        %v1720 = vpack.c.b16 %v1356, %v1352
        %v1721 = vpack.c.b16 %v1357, %v1353
        %v1722 = vpack.c.b16 %v1358, %v1354
        %v1723 = vpack.c.b16 %v1363, %v1359
        %v1724 = vpack.c.b16 %v1364, %v1360
        %v1725 = vpack.c.b16 %v1365, %v1361
        %v1726 = vpack.c.b16 %v1366, %v1362
        %v1727 = vpack.c.b16 %v1371, %v1367
        %v1728 = vpack.c.b16 %v1372, %v1368
        %v1729 = vpack.c.b16 %v1373, %v1369
        %v1730 = vpack.c.b16 %v1374, %v1370
        %v1731 = vpack.c.b16 %v1379, %v1375
        %v1732 = vpack.c.b16 %v1380, %v1376
        %v1733 = vpack.c.b16 %v1381, %v1377
        %v1734 = vpack.c.b16 %v1382, %v1378
        %v1735 = vpack.c.b16 %v1387, %v1383
        %v1736 = vpack.c.b16 %v1388, %v1384
        %v1737 = vpack.c.b16 %v1389, %v1385
        %v1738 = vpack.c.b16 %v1390, %v1386
        %v1739 = vpack.c.b16 %v1395, %v1391
        %v1740 = vpack.c.b16 %v1396, %v1392
        %v1741 = vpack.c.b16 %v1397, %v1393
        %v1742 = vpack.c.b16 %v1398, %v1394
        %v1743 = vpack.c.b16 %v1403, %v1399
        %v1744 = vpack.c.b16 %v1404, %v1400
        %v1745 = vpack.c.b16 %v1405, %v1401
        %v1746 = vpack.c.b16 %v1406, %v1402
        %v1747 = vpack.c.b16 %v1411, %v1407
        %v1748 = vpack.c.b16 %v1412, %v1408
        %v1749 = vpack.c.b16 %v1413, %v1409
        %v1750 = vpack.c.b16 %v1414, %v1410
        %v1751 = vpack.c.b16 %v1419, %v1415
        %v1752 = vpack.c.b16 %v1420, %v1416
        %v1753 = vpack.c.b16 %v1421, %v1417
        %v1754 = vpack.c.b16 %v1422, %v1418
        %v1755 = vpack.c.b16 %v1427, %v1423
        %v1756 = vpack.c.b16 %v1428, %v1424
        %v1757 = vpack.c.b16 %v1429, %v1425
        %v1758 = vpack.c.b16 %v1430, %v1426
        %v1759 = vpack.c.b16 %v1435, %v1431
        %v1760 = vpack.c.b16 %v1436, %v1432
        %v1761 = vpack.c.b16 %v1437, %v1433
        %v1762 = vpack.c.b16 %v1438, %v1434
        %v1763 = vpack.c.b16 %v1443, %v1439
        %v1764 = vpack.c.b16 %v1444, %v1440
        %v1765 = vpack.c.b16 %v1445, %v1441
        %v1766 = vpack.c.b16 %v1446, %v1442
        %v1767 = vpack.c.b16 %v1451, %v1447
        %v1768 = vpack.c.b16 %v1452, %v1448
        %v1769 = vpack.c.b16 %v1453, %v1449
        %v1770 = vpack.c.b16 %v1454, %v1450
        %v1771 = vpack.c.b16 %v1459, %v1455
        %v1772 = vpack.c.b16 %v1460, %v1456
        %v1773 = vpack.c.b16 %v1461, %v1457
        %v1774 = vpack.c.b16 %v1462, %v1458
        %v1775 = vpack.c.b16 %v1467, %v1463
        %v1776 = vpack.c.b16 %v1468, %v1464
        %v1777 = vpack.c.b16 %v1469, %v1465
        %v1778 = vpack.c.b16 %v1470, %v1466
        %v1779 = vpack.c.b16 %v1475, %v1471
        %v1780 = vpack.c.b16 %v1476, %v1472
        %v1781 = vpack.c.b16 %v1477, %v1473
        %v1782 = vpack.c.b16 %v1478, %v1474
        %v1783 = vpack.c.b16 %v1483, %v1479
        %v1784 = vpack.c.b16 %v1484, %v1480
        %v1785 = vpack.c.b16 %v1485, %v1481
        %v1786 = vpack.c.b16 %v1486, %v1482
        %v1787 = vpack.c.b16 %v1491, %v1487
        %v1788 = vpack.c.b16 %v1492, %v1488
        %v1789 = vpack.c.b16 %v1493, %v1489
        %v1790 = vpack.c.b16 %v1494, %v1490
        %v1791 = vpack.c.b16 %v1499, %v1495
        %v1792 = vpack.c.b16 %v1500, %v1496
        %v1793 = vpack.c.b16 %v1501, %v1497
        %v1794 = vpack.c.b16 %v1502, %v1498
        %v1795 = vpack.c.b16 %v1507, %v1503
        %v1796 = vpack.c.b16 %v1508, %v1504
        %v1797 = vpack.c.b16 %v1509, %v1505
        %v1798 = vpack.c.b16 %v1510, %v1506
        %v1799 = vpack.c.b16 %v1515, %v1511
        %v1800 = vpack.c.b16 %v1516, %v1512
        %v1801 = vpack.c.b16 %v1517, %v1513
        %v1802 = vpack.c.b16 %v1518, %v1514
        %v1803 = vpack.c.b16 %v1523, %v1519
        %v1804 = vpack.c.b16 %v1524, %v1520
        %v1805 = vpack.c.b16 %v1525, %v1521
        %v1806 = vpack.c.b16 %v1526, %v1522
        %v1807 = vpack.c.b16 %v1531, %v1527
        %v1808 = vpack.c.b16 %v1532, %v1528
        %v1809 = vpack.c.b16 %v1533, %v1529
        %v1810 = vpack.c.b16 %v1534, %v1530
        %v1811 = vpack.c.b16 %v1539, %v1535
        %v1812 = vpack.c.b16 %v1540, %v1536
        %v1813 = vpack.c.b16 %v1541, %v1537
        %v1814 = vpack.c.b16 %v1542, %v1538
        %v1815 = vpack.c.b16 %v1547, %v1543
        %v1816 = vpack.c.b16 %v1548, %v1544
        %v1817 = vpack.c.b16 %v1549, %v1545
        %v1818 = vpack.c.b16 %v1550, %v1546
        %v1819 = vpack.c.b16 %v1555, %v1551
        %v1820 = vpack.c.b16 %v1556, %v1552
        %v1821 = vpack.c.b16 %v1557, %v1553
        %v1822 = vpack.c.b16 %v1558, %v1554
        %v1823 = vpack.c.b16 %v1563, %v1559
        %v1824 = vpack.c.b16 %v1564, %v1560
        %v1825 = vpack.c.b16 %v1565, %v1561
        %v1826 = vpack.c.b16 %v1566, %v1562
        %v1827 = vpack.c.b16 %v1571, %v1567
        %v1828 = vpack.c.b16 %v1572, %v1568
        %v1829 = vpack.c.b16 %v1573, %v1569
        %v1830 = vpack.c.b16 %v1574, %v1570
        %v1831 = vpack.c.b16 %v1579, %v1575
        %v1832 = vpack.c.b16 %v1580, %v1576
        %v1833 = vpack.c.b16 %v1581, %v1577
        %v1834 = vpack.c.b16 %v1582, %v1578
        %v1835 = vpack.c.b16 %v1587, %v1583
        %v1836 = vpack.c.b16 %v1588, %v1584
        %v1837 = vpack.c.b16 %v1589, %v1585
        %v1838 = vpack.c.b16 %v1590, %v1586
        %v1839 = vpack.c.b16 %v1595, %v1591
        %v1840 = vpack.c.b16 %v1596, %v1592
        %v1841 = vpack.c.b16 %v1597, %v1593
        %v1842 = vpack.c.b16 %v1598, %v1594
        %v1843 = vpack.c.b16 %v1603, %v1599
        %v1844 = vpack.c.b16 %v1604, %v1600
        %v1845 = vpack.c.b16 %v1605, %v1601
        %v1846 = vpack.c.b16 %v1606, %v1602
        %v1847 = vpack.c.b16 %v1611, %v1607
        %v1848 = vpack.c.b16 %v1612, %v1608
        %v1849 = vpack.c.b16 %v1613, %v1609
        %v1850 = vpack.c.b16 %v1614, %v1610
        %v1851 = vpack.c.b16 %v1619, %v1615
        %v1852 = vpack.c.b16 %v1620, %v1616
        %v1853 = vpack.c.b16 %v1621, %v1617
        %v1854 = vpack.c.b16 %v1622, %v1618
        %v1855 = vpack.c.b16 %v1627, %v1623
        %v1856 = vpack.c.b16 %v1628, %v1624
        %v1857 = vpack.c.b16 %v1629, %v1625
        %v1858 = vpack.c.b16 %v1630, %v1626
        %v1859 = vpack.c.b16 %v1635, %v1631
        %v1860 = vpack.c.b16 %v1636, %v1632
        %v1861 = vpack.c.b16 %v1637, %v1633
        %v1862 = vpack.c.b16 %v1638, %v1634
        %2087 = vmatpush.bf16.msra.mxu0 %v1667
        %2088 = vmatpush.bf16.msra.mxu0 %v1663
        %2089 = vmatpush.bf16.msra.mxu0 %v1659
        %2090 = vmatpush.bf16.msra.mxu0 %v1655
        %2091 = vmatpush.bf16.msra.mxu0 %v1651
        %2092 = vmatpush.bf16.msra.mxu0 %v1647
        %2093 = vmatpush.bf16.msra.mxu0 %v1643
        %2094 = vmatpush.bf16.msra.mxu0 %v1639
        %2095 = vmatmul.bf16.gmra.mxu0 %v855
        %v2096 = vpop.f32.mrf.mxu0
        %v2097 = vadd.f32 %v671, %v2096
        %v2098 = vpop.f32.mrf.mxu0
        %v2099 = vadd.f32 %v671, %v2098
        %2100 = vmatmul.bf16.gmra.mxu0 %v862
        %v2101 = vpop.f32.mrf.mxu0
        %v2102 = vadd.f32 %v671, %v2101
        %v2103 = vpop.f32.mrf.mxu0
        %v2104 = vadd.f32 %v671, %v2103
        %2105 = vmatmul.bf16.gmra.mxu0 %v869
        %v2106 = vpop.f32.mrf.mxu0
        %v2107 = vadd.f32 %v671, %v2106
        %v2108 = vpop.f32.mrf.mxu0
        %v2109 = vadd.f32 %v671, %v2108
        %2110 = vmatmul.bf16.gmra.mxu0 %v876
        %v2111 = vpop.f32.mrf.mxu0
        %v2112 = vadd.f32 %v671, %v2111
        %v2113 = vpop.f32.mrf.mxu0
        %v2114 = vadd.f32 %v671, %v2113
        %2115 = vmatmul.bf16.gmra.mxu0 %v883
        %v2116 = vpop.f32.mrf.mxu0
        %v2117 = vadd.f32 %v671, %v2116
        %v2118 = vpop.f32.mrf.mxu0
        %v2119 = vadd.f32 %v671, %v2118
        %2120 = vmatmul.bf16.gmra.mxu0 %v890
        %v2121 = vpop.f32.mrf.mxu0
        %v2122 = vadd.f32 %v671, %v2121
        %v2123 = vpop.f32.mrf.mxu0
        %v2124 = vadd.f32 %v671, %v2123
        %2125 = vmatmul.bf16.gmra.mxu0 %v897
        %v2126 = vpop.f32.mrf.mxu0
        %v2127 = vadd.f32 %v671, %v2126
        %v2128 = vpop.f32.mrf.mxu0
        %v2129 = vadd.f32 %v671, %v2128
        %2130 = vmatmul.bf16.gmra.mxu0 %v904
        %v2131 = vpop.f32.mrf.mxu0
        %v2132 = vadd.f32 %v671, %v2131
        %v2133 = vpop.f32.mrf.mxu0
        %v2134 = vadd.f32 %v671, %v2133
        %2135 = vdwg.mxu0
        %2136 = vmatpush.bf16.msra.mxu0 %v1699
        %2137 = vmatpush.bf16.msra.mxu0 %v1695
        %2138 = vmatpush.bf16.msra.mxu0 %v1691
        %2139 = vmatpush.bf16.msra.mxu0 %v1687
        %2140 = vmatpush.bf16.msra.mxu0 %v1683
        %2141 = vmatpush.bf16.msra.mxu0 %v1679
        %2142 = vmatpush.bf16.msra.mxu0 %v1675
        %2143 = vmatpush.bf16.msra.mxu0 %v1671
        %2144 = vmatmul.bf16.gmra.mxu0 %v856
        %v2145 = vpop.f32.mrf.mxu0
        %v2146 = vadd.f32 %v2097, %v2145
        %v2147 = vpop.f32.mrf.mxu0
        %v2148 = vadd.f32 %v2099, %v2147
        %2149 = vmatmul.bf16.gmra.mxu0 %v863
        %v2150 = vpop.f32.mrf.mxu0
        %v2151 = vadd.f32 %v2102, %v2150
        %v2152 = vpop.f32.mrf.mxu0
        %v2153 = vadd.f32 %v2104, %v2152
        %2154 = vmatmul.bf16.gmra.mxu0 %v870
        %v2155 = vpop.f32.mrf.mxu0
        %v2156 = vadd.f32 %v2107, %v2155
        %v2157 = vpop.f32.mrf.mxu0
        %v2158 = vadd.f32 %v2109, %v2157
        %2159 = vmatmul.bf16.gmra.mxu0 %v877
        %v2160 = vpop.f32.mrf.mxu0
        %v2161 = vadd.f32 %v2112, %v2160
        %v2162 = vpop.f32.mrf.mxu0
        %v2163 = vadd.f32 %v2114, %v2162
        %2164 = vmatmul.bf16.gmra.mxu0 %v884
        %v2165 = vpop.f32.mrf.mxu0
        %v2166 = vadd.f32 %v2117, %v2165
        %v2167 = vpop.f32.mrf.mxu0
        %v2168 = vadd.f32 %v2119, %v2167
        %2169 = vmatmul.bf16.gmra.mxu0 %v891
        %v2170 = vpop.f32.mrf.mxu0
        %v2171 = vadd.f32 %v2122, %v2170
        %v2172 = vpop.f32.mrf.mxu0
        %v2173 = vadd.f32 %v2124, %v2172
        %2174 = vmatmul.bf16.gmra.mxu0 %v898
        %v2175 = vpop.f32.mrf.mxu0
        %v2176 = vadd.f32 %v2127, %v2175
        %v2177 = vpop.f32.mrf.mxu0
        %v2178 = vadd.f32 %v2129, %v2177
        %2179 = vmatmul.bf16.gmra.mxu0 %v905
        %v2180 = vpop.f32.mrf.mxu0
        %v2181 = vadd.f32 %v2132, %v2180
        %v2182 = vpop.f32.mrf.mxu0
        %v2183 = vadd.f32 %v2134, %v2182
        %2184 = vdwg.mxu0
        %2185 = vmatpush.bf16.msra.mxu0 %v1731
        %2186 = vmatpush.bf16.msra.mxu0 %v1727
        %2187 = vmatpush.bf16.msra.mxu0 %v1723
        %2188 = vmatpush.bf16.msra.mxu0 %v1719
        %2189 = vmatpush.bf16.msra.mxu0 %v1715
        %2190 = vmatpush.bf16.msra.mxu0 %v1711
        %2191 = vmatpush.bf16.msra.mxu0 %v1707
        %2192 = vmatpush.bf16.msra.mxu0 %v1703
        %2193 = vmatmul.bf16.gmra.mxu0 %v857
        %v2194 = vpop.f32.mrf.mxu0
        %v2195 = vadd.f32 %v2146, %v2194
        %v2196 = vpop.f32.mrf.mxu0
        %v2197 = vadd.f32 %v2148, %v2196
        %2198 = vmatmul.bf16.gmra.mxu0 %v864
        %v2199 = vpop.f32.mrf.mxu0
        %v2200 = vadd.f32 %v2151, %v2199
        %v2201 = vpop.f32.mrf.mxu0
        %v2202 = vadd.f32 %v2153, %v2201
        %2203 = vmatmul.bf16.gmra.mxu0 %v871
        %v2204 = vpop.f32.mrf.mxu0
        %v2205 = vadd.f32 %v2156, %v2204
        %v2206 = vpop.f32.mrf.mxu0
        %v2207 = vadd.f32 %v2158, %v2206
        %2208 = vmatmul.bf16.gmra.mxu0 %v878
        %v2209 = vpop.f32.mrf.mxu0
        %v2210 = vadd.f32 %v2161, %v2209
        %v2211 = vpop.f32.mrf.mxu0
        %v2212 = vadd.f32 %v2163, %v2211
        %2213 = vmatmul.bf16.gmra.mxu0 %v885
        %v2214 = vpop.f32.mrf.mxu0
        %v2215 = vadd.f32 %v2166, %v2214
        %v2216 = vpop.f32.mrf.mxu0
        %v2217 = vadd.f32 %v2168, %v2216
        %2218 = vmatmul.bf16.gmra.mxu0 %v892
        %v2219 = vpop.f32.mrf.mxu0
        %v2220 = vadd.f32 %v2171, %v2219
        %v2221 = vpop.f32.mrf.mxu0
        %v2222 = vadd.f32 %v2173, %v2221
        %2223 = vmatmul.bf16.gmra.mxu0 %v899
        %v2224 = vpop.f32.mrf.mxu0
        %v2225 = vadd.f32 %v2176, %v2224
        %v2226 = vpop.f32.mrf.mxu0
        %v2227 = vadd.f32 %v2178, %v2226
        %2228 = vmatmul.bf16.gmra.mxu0 %v906
        %v2229 = vpop.f32.mrf.mxu0
        %v2230 = vadd.f32 %v2181, %v2229
        %v2231 = vpop.f32.mrf.mxu0
        %v2232 = vadd.f32 %v2183, %v2231
        %2233 = vdwg.mxu0
        %2234 = vmatpush.bf16.msra.mxu0 %v1763
        %2235 = vmatpush.bf16.msra.mxu0 %v1759
        %2236 = vmatpush.bf16.msra.mxu0 %v1755
        %2237 = vmatpush.bf16.msra.mxu0 %v1751
        %2238 = vmatpush.bf16.msra.mxu0 %v1747
        %2239 = vmatpush.bf16.msra.mxu0 %v1743
        %2240 = vmatpush.bf16.msra.mxu0 %v1739
        %2241 = vmatpush.bf16.msra.mxu0 %v1735
        %2242 = vmatmul.bf16.gmra.mxu0 %v858
        %v2243 = vpop.f32.mrf.mxu0
        %v2244 = vadd.f32 %v2195, %v2243
        %v2245 = vpop.f32.mrf.mxu0
        %v2246 = vadd.f32 %v2197, %v2245
        %2247 = vmatmul.bf16.gmra.mxu0 %v865
        %v2248 = vpop.f32.mrf.mxu0
        %v2249 = vadd.f32 %v2200, %v2248
        %v2250 = vpop.f32.mrf.mxu0
        %v2251 = vadd.f32 %v2202, %v2250
        %2252 = vmatmul.bf16.gmra.mxu0 %v872
        %v2253 = vpop.f32.mrf.mxu0
        %v2254 = vadd.f32 %v2205, %v2253
        %v2255 = vpop.f32.mrf.mxu0
        %v2256 = vadd.f32 %v2207, %v2255
        %2257 = vmatmul.bf16.gmra.mxu0 %v879
        %v2258 = vpop.f32.mrf.mxu0
        %v2259 = vadd.f32 %v2210, %v2258
        %v2260 = vpop.f32.mrf.mxu0
        %v2261 = vadd.f32 %v2212, %v2260
        %2262 = vmatmul.bf16.gmra.mxu0 %v886
        %v2263 = vpop.f32.mrf.mxu0
        %v2264 = vadd.f32 %v2215, %v2263
        %v2265 = vpop.f32.mrf.mxu0
        %v2266 = vadd.f32 %v2217, %v2265
        %2267 = vmatmul.bf16.gmra.mxu0 %v893
        %v2268 = vpop.f32.mrf.mxu0
        %v2269 = vadd.f32 %v2220, %v2268
        %v2270 = vpop.f32.mrf.mxu0
        %v2271 = vadd.f32 %v2222, %v2270
        %2272 = vmatmul.bf16.gmra.mxu0 %v900
        %v2273 = vpop.f32.mrf.mxu0
        %v2274 = vadd.f32 %v2225, %v2273
        %v2275 = vpop.f32.mrf.mxu0
        %v2276 = vadd.f32 %v2227, %v2275
        %2277 = vmatmul.bf16.gmra.mxu0 %v907
        %v2278 = vpop.f32.mrf.mxu0
        %v2279 = vadd.f32 %v2230, %v2278
        %v2280 = vpop.f32.mrf.mxu0
        %v2281 = vadd.f32 %v2232, %v2280
        %2282 = vdwg.mxu0
        %2283 = vmatpush.bf16.msra.mxu0 %v1795
        %2284 = vmatpush.bf16.msra.mxu0 %v1791
        %2285 = vmatpush.bf16.msra.mxu0 %v1787
        %2286 = vmatpush.bf16.msra.mxu0 %v1783
        %2287 = vmatpush.bf16.msra.mxu0 %v1779
        %2288 = vmatpush.bf16.msra.mxu0 %v1775
        %2289 = vmatpush.bf16.msra.mxu0 %v1771
        %2290 = vmatpush.bf16.msra.mxu0 %v1767
        %2291 = vmatmul.bf16.gmra.mxu0 %v859
        %v2292 = vpop.f32.mrf.mxu0
        %v2293 = vadd.f32 %v2244, %v2292
        %v2294 = vpop.f32.mrf.mxu0
        %v2295 = vadd.f32 %v2246, %v2294
        %2296 = vmatmul.bf16.gmra.mxu0 %v866
        %v2297 = vpop.f32.mrf.mxu0
        %v2298 = vadd.f32 %v2249, %v2297
        %v2299 = vpop.f32.mrf.mxu0
        %v2300 = vadd.f32 %v2251, %v2299
        %2301 = vmatmul.bf16.gmra.mxu0 %v873
        %v2302 = vpop.f32.mrf.mxu0
        %v2303 = vadd.f32 %v2254, %v2302
        %v2304 = vpop.f32.mrf.mxu0
        %v2305 = vadd.f32 %v2256, %v2304
        %2306 = vmatmul.bf16.gmra.mxu0 %v880
        %v2307 = vpop.f32.mrf.mxu0
        %v2308 = vadd.f32 %v2259, %v2307
        %v2309 = vpop.f32.mrf.mxu0
        %v2310 = vadd.f32 %v2261, %v2309
        %2311 = vmatmul.bf16.gmra.mxu0 %v887
        %v2312 = vpop.f32.mrf.mxu0
        %v2313 = vadd.f32 %v2264, %v2312
        %v2314 = vpop.f32.mrf.mxu0
        %v2315 = vadd.f32 %v2266, %v2314
        %2316 = vmatmul.bf16.gmra.mxu0 %v894
        %v2317 = vpop.f32.mrf.mxu0
        %v2318 = vadd.f32 %v2269, %v2317
        %v2319 = vpop.f32.mrf.mxu0
        %v2320 = vadd.f32 %v2271, %v2319
        %2321 = vmatmul.bf16.gmra.mxu0 %v901
        %v2322 = vpop.f32.mrf.mxu0
        %v2323 = vadd.f32 %v2274, %v2322
        %v2324 = vpop.f32.mrf.mxu0
        %v2325 = vadd.f32 %v2276, %v2324
        %2326 = vmatmul.bf16.gmra.mxu0 %v908
        %v2327 = vpop.f32.mrf.mxu0
        %v2328 = vadd.f32 %v2279, %v2327
        %v2329 = vpop.f32.mrf.mxu0
        %v2330 = vadd.f32 %v2281, %v2329
        %2331 = vdwg.mxu0
        %2332 = vmatpush.bf16.msra.mxu0 %v1827
        %2333 = vmatpush.bf16.msra.mxu0 %v1823
        %2334 = vmatpush.bf16.msra.mxu0 %v1819
        %2335 = vmatpush.bf16.msra.mxu0 %v1815
        %2336 = vmatpush.bf16.msra.mxu0 %v1811
        %2337 = vmatpush.bf16.msra.mxu0 %v1807
        %2338 = vmatpush.bf16.msra.mxu0 %v1803
        %2339 = vmatpush.bf16.msra.mxu0 %v1799
        %2340 = vmatmul.bf16.gmra.mxu0 %v860
        %v2341 = vpop.f32.mrf.mxu0
        %v2342 = vadd.f32 %v2293, %v2341
        %v2343 = vpop.f32.mrf.mxu0
        %v2344 = vadd.f32 %v2295, %v2343
        %2345 = vmatmul.bf16.gmra.mxu0 %v867
        %v2346 = vpop.f32.mrf.mxu0
        %v2347 = vadd.f32 %v2298, %v2346
        %v2348 = vpop.f32.mrf.mxu0
        %v2349 = vadd.f32 %v2300, %v2348
        %2350 = vmatmul.bf16.gmra.mxu0 %v874
        %v2351 = vpop.f32.mrf.mxu0
        %v2352 = vadd.f32 %v2303, %v2351
        %v2353 = vpop.f32.mrf.mxu0
        %v2354 = vadd.f32 %v2305, %v2353
        %2355 = vmatmul.bf16.gmra.mxu0 %v881
        %v2356 = vpop.f32.mrf.mxu0
        %v2357 = vadd.f32 %v2308, %v2356
        %v2358 = vpop.f32.mrf.mxu0
        %v2359 = vadd.f32 %v2310, %v2358
        %2360 = vmatmul.bf16.gmra.mxu0 %v888
        %v2361 = vpop.f32.mrf.mxu0
        %v2362 = vadd.f32 %v2313, %v2361
        %v2363 = vpop.f32.mrf.mxu0
        %v2364 = vadd.f32 %v2315, %v2363
        %2365 = vmatmul.bf16.gmra.mxu0 %v895
        %v2366 = vpop.f32.mrf.mxu0
        %v2367 = vadd.f32 %v2318, %v2366
        %v2368 = vpop.f32.mrf.mxu0
        %v2369 = vadd.f32 %v2320, %v2368
        %2370 = vmatmul.bf16.gmra.mxu0 %v902
        %v2371 = vpop.f32.mrf.mxu0
        %v2372 = vadd.f32 %v2323, %v2371
        %v2373 = vpop.f32.mrf.mxu0
        %v2374 = vadd.f32 %v2325, %v2373
        %2375 = vmatmul.bf16.gmra.mxu0 %v909
        %v2376 = vpop.f32.mrf.mxu0
        %v2377 = vadd.f32 %v2328, %v2376
        %v2378 = vpop.f32.mrf.mxu0
        %v2379 = vadd.f32 %v2330, %v2378
        %2380 = vdwg.mxu0
        %2381 = vmatpush.bf16.msra.mxu0 %v1859
        %2382 = vmatpush.bf16.msra.mxu0 %v1855
        %2383 = vmatpush.bf16.msra.mxu0 %v1851
        %2384 = vmatpush.bf16.msra.mxu0 %v1847
        %2385 = vmatpush.bf16.msra.mxu0 %v1843
        %2386 = vmatpush.bf16.msra.mxu0 %v1839
        %2387 = vmatpush.bf16.msra.mxu0 %v1835
        %2388 = vmatpush.bf16.msra.mxu0 %v1831
        %2389 = vmatmul.bf16.gmra.mxu0 %v861
        %v2390 = vpop.f32.mrf.mxu0
        %v2391 = vadd.f32 %v2342, %v2390
        %v2392 = vpop.f32.mrf.mxu0
        %v2393 = vadd.f32 %v2344, %v2392
        %2394 = vmatmul.bf16.gmra.mxu0 %v868
        %v2395 = vpop.f32.mrf.mxu0
        %v2396 = vadd.f32 %v2347, %v2395
        %v2397 = vpop.f32.mrf.mxu0
        %v2398 = vadd.f32 %v2349, %v2397
        %2399 = vmatmul.bf16.gmra.mxu0 %v875
        %v2400 = vpop.f32.mrf.mxu0
        %v2401 = vadd.f32 %v2352, %v2400
        %v2402 = vpop.f32.mrf.mxu0
        %v2403 = vadd.f32 %v2354, %v2402
        %2404 = vmatmul.bf16.gmra.mxu0 %v882
        %v2405 = vpop.f32.mrf.mxu0
        %v2406 = vadd.f32 %v2357, %v2405
        %v2407 = vpop.f32.mrf.mxu0
        %v2408 = vadd.f32 %v2359, %v2407
        %2409 = vmatmul.bf16.gmra.mxu0 %v889
        %v2410 = vpop.f32.mrf.mxu0
        %v2411 = vadd.f32 %v2362, %v2410
        %v2412 = vpop.f32.mrf.mxu0
        %v2413 = vadd.f32 %v2364, %v2412
        %2414 = vmatmul.bf16.gmra.mxu0 %v896
        %v2415 = vpop.f32.mrf.mxu0
        %v2416 = vadd.f32 %v2367, %v2415
        %v2417 = vpop.f32.mrf.mxu0
        %v2418 = vadd.f32 %v2369, %v2417
        %2419 = vmatmul.bf16.gmra.mxu0 %v903
        %v2420 = vpop.f32.mrf.mxu0
        %v2421 = vadd.f32 %v2372, %v2420
        %v2422 = vpop.f32.mrf.mxu0
        %v2423 = vadd.f32 %v2374, %v2422
        %2424 = vmatmul.bf16.gmra.mxu0 %v910
        %v2425 = vpop.f32.mrf.mxu0
        %v2426 = vadd.f32 %v2377, %v2425
        %v2427 = vpop.f32.mrf.mxu0
        %v2428 = vadd.f32 %v2379, %v2427
        %2429 = vdwg.mxu0
        %2430 = vmatpush.bf16.msra.mxu0 %v1668
        %2431 = vmatpush.bf16.msra.mxu0 %v1664
        %2432 = vmatpush.bf16.msra.mxu0 %v1660
        %2433 = vmatpush.bf16.msra.mxu0 %v1656
        %2434 = vmatpush.bf16.msra.mxu0 %v1652
        %2435 = vmatpush.bf16.msra.mxu0 %v1648
        %2436 = vmatpush.bf16.msra.mxu0 %v1644
        %2437 = vmatpush.bf16.msra.mxu0 %v1640
        %2438 = vmatmul.bf16.gmra.mxu0 %v855
        %v2439 = vpop.f32.mrf.mxu0
        %v2440 = vadd.f32 %v672, %v2439
        %v2441 = vpop.f32.mrf.mxu0
        %v2442 = vadd.f32 %v672, %v2441
        %2443 = vmatmul.bf16.gmra.mxu0 %v862
        %v2444 = vpop.f32.mrf.mxu0
        %v2445 = vadd.f32 %v672, %v2444
        %v2446 = vpop.f32.mrf.mxu0
        %v2447 = vadd.f32 %v672, %v2446
        %2448 = vmatmul.bf16.gmra.mxu0 %v869
        %v2449 = vpop.f32.mrf.mxu0
        %v2450 = vadd.f32 %v672, %v2449
        %v2451 = vpop.f32.mrf.mxu0
        %v2452 = vadd.f32 %v672, %v2451
        %2453 = vmatmul.bf16.gmra.mxu0 %v876
        %v2454 = vpop.f32.mrf.mxu0
        %v2455 = vadd.f32 %v672, %v2454
        %v2456 = vpop.f32.mrf.mxu0
        %v2457 = vadd.f32 %v672, %v2456
        %2458 = vmatmul.bf16.gmra.mxu0 %v883
        %v2459 = vpop.f32.mrf.mxu0
        %v2460 = vadd.f32 %v672, %v2459
        %v2461 = vpop.f32.mrf.mxu0
        %v2462 = vadd.f32 %v672, %v2461
        %2463 = vmatmul.bf16.gmra.mxu0 %v890
        %v2464 = vpop.f32.mrf.mxu0
        %v2465 = vadd.f32 %v672, %v2464
        %v2466 = vpop.f32.mrf.mxu0
        %v2467 = vadd.f32 %v672, %v2466
        %2468 = vmatmul.bf16.gmra.mxu0 %v897
        %v2469 = vpop.f32.mrf.mxu0
        %v2470 = vadd.f32 %v672, %v2469
        %v2471 = vpop.f32.mrf.mxu0
        %v2472 = vadd.f32 %v672, %v2471
        %2473 = vmatmul.bf16.gmra.mxu0 %v904
        %v2474 = vpop.f32.mrf.mxu0
        %v2475 = vadd.f32 %v672, %v2474
        %v2476 = vpop.f32.mrf.mxu0
        %v2477 = vadd.f32 %v672, %v2476
        %2478 = vdwg.mxu0
        %2479 = vmatpush.bf16.msra.mxu0 %v1700
        %2480 = vmatpush.bf16.msra.mxu0 %v1696
        %2481 = vmatpush.bf16.msra.mxu0 %v1692
        %2482 = vmatpush.bf16.msra.mxu0 %v1688
        %2483 = vmatpush.bf16.msra.mxu0 %v1684
        %2484 = vmatpush.bf16.msra.mxu0 %v1680
        %2485 = vmatpush.bf16.msra.mxu0 %v1676
        %2486 = vmatpush.bf16.msra.mxu0 %v1672
        %2487 = vmatmul.bf16.gmra.mxu0 %v856
        %v2488 = vpop.f32.mrf.mxu0
        %v2489 = vadd.f32 %v2440, %v2488
        %v2490 = vpop.f32.mrf.mxu0
        %v2491 = vadd.f32 %v2442, %v2490
        %2492 = vmatmul.bf16.gmra.mxu0 %v863
        %v2493 = vpop.f32.mrf.mxu0
        %v2494 = vadd.f32 %v2445, %v2493
        %v2495 = vpop.f32.mrf.mxu0
        %v2496 = vadd.f32 %v2447, %v2495
        %2497 = vmatmul.bf16.gmra.mxu0 %v870
        %v2498 = vpop.f32.mrf.mxu0
        %v2499 = vadd.f32 %v2450, %v2498
        %v2500 = vpop.f32.mrf.mxu0
        %v2501 = vadd.f32 %v2452, %v2500
        %2502 = vmatmul.bf16.gmra.mxu0 %v877
        %v2503 = vpop.f32.mrf.mxu0
        %v2504 = vadd.f32 %v2455, %v2503
        %v2505 = vpop.f32.mrf.mxu0
        %v2506 = vadd.f32 %v2457, %v2505
        %2507 = vmatmul.bf16.gmra.mxu0 %v884
        %v2508 = vpop.f32.mrf.mxu0
        %v2509 = vadd.f32 %v2460, %v2508
        %v2510 = vpop.f32.mrf.mxu0
        %v2511 = vadd.f32 %v2462, %v2510
        %2512 = vmatmul.bf16.gmra.mxu0 %v891
        %v2513 = vpop.f32.mrf.mxu0
        %v2514 = vadd.f32 %v2465, %v2513
        %v2515 = vpop.f32.mrf.mxu0
        %v2516 = vadd.f32 %v2467, %v2515
        %2517 = vmatmul.bf16.gmra.mxu0 %v898
        %v2518 = vpop.f32.mrf.mxu0
        %v2519 = vadd.f32 %v2470, %v2518
        %v2520 = vpop.f32.mrf.mxu0
        %v2521 = vadd.f32 %v2472, %v2520
        %2522 = vmatmul.bf16.gmra.mxu0 %v905
        %v2523 = vpop.f32.mrf.mxu0
        %v2524 = vadd.f32 %v2475, %v2523
        %v2525 = vpop.f32.mrf.mxu0
        %v2526 = vadd.f32 %v2477, %v2525
        %2527 = vdwg.mxu0
        %2528 = vmatpush.bf16.msra.mxu0 %v1732
        %2529 = vmatpush.bf16.msra.mxu0 %v1728
        %2530 = vmatpush.bf16.msra.mxu0 %v1724
        %2531 = vmatpush.bf16.msra.mxu0 %v1720
        %2532 = vmatpush.bf16.msra.mxu0 %v1716
        %2533 = vmatpush.bf16.msra.mxu0 %v1712
        %2534 = vmatpush.bf16.msra.mxu0 %v1708
        %2535 = vmatpush.bf16.msra.mxu0 %v1704
        %2536 = vmatmul.bf16.gmra.mxu0 %v857
        %v2537 = vpop.f32.mrf.mxu0
        %v2538 = vadd.f32 %v2489, %v2537
        %v2539 = vpop.f32.mrf.mxu0
        %v2540 = vadd.f32 %v2491, %v2539
        %2541 = vmatmul.bf16.gmra.mxu0 %v864
        %v2542 = vpop.f32.mrf.mxu0
        %v2543 = vadd.f32 %v2494, %v2542
        %v2544 = vpop.f32.mrf.mxu0
        %v2545 = vadd.f32 %v2496, %v2544
        %2546 = vmatmul.bf16.gmra.mxu0 %v871
        %v2547 = vpop.f32.mrf.mxu0
        %v2548 = vadd.f32 %v2499, %v2547
        %v2549 = vpop.f32.mrf.mxu0
        %v2550 = vadd.f32 %v2501, %v2549
        %2551 = vmatmul.bf16.gmra.mxu0 %v878
        %v2552 = vpop.f32.mrf.mxu0
        %v2553 = vadd.f32 %v2504, %v2552
        %v2554 = vpop.f32.mrf.mxu0
        %v2555 = vadd.f32 %v2506, %v2554
        %2556 = vmatmul.bf16.gmra.mxu0 %v885
        %v2557 = vpop.f32.mrf.mxu0
        %v2558 = vadd.f32 %v2509, %v2557
        %v2559 = vpop.f32.mrf.mxu0
        %v2560 = vadd.f32 %v2511, %v2559
        %2561 = vmatmul.bf16.gmra.mxu0 %v892
        %v2562 = vpop.f32.mrf.mxu0
        %v2563 = vadd.f32 %v2514, %v2562
        %v2564 = vpop.f32.mrf.mxu0
        %v2565 = vadd.f32 %v2516, %v2564
        %2566 = vmatmul.bf16.gmra.mxu0 %v899
        %v2567 = vpop.f32.mrf.mxu0
        %v2568 = vadd.f32 %v2519, %v2567
        %v2569 = vpop.f32.mrf.mxu0
        %v2570 = vadd.f32 %v2521, %v2569
        %2571 = vmatmul.bf16.gmra.mxu0 %v906
        %v2572 = vpop.f32.mrf.mxu0
        %v2573 = vadd.f32 %v2524, %v2572
        %v2574 = vpop.f32.mrf.mxu0
        %v2575 = vadd.f32 %v2526, %v2574
        %2576 = vdwg.mxu0
        %2577 = vmatpush.bf16.msra.mxu0 %v1764
        %2578 = vmatpush.bf16.msra.mxu0 %v1760
        %2579 = vmatpush.bf16.msra.mxu0 %v1756
        %2580 = vmatpush.bf16.msra.mxu0 %v1752
        %2581 = vmatpush.bf16.msra.mxu0 %v1748
        %2582 = vmatpush.bf16.msra.mxu0 %v1744
        %2583 = vmatpush.bf16.msra.mxu0 %v1740
        %2584 = vmatpush.bf16.msra.mxu0 %v1736
        %2585 = vmatmul.bf16.gmra.mxu0 %v858
        %v2586 = vpop.f32.mrf.mxu0
        %v2587 = vadd.f32 %v2538, %v2586
        %v2588 = vpop.f32.mrf.mxu0
        %v2589 = vadd.f32 %v2540, %v2588
        %2590 = vmatmul.bf16.gmra.mxu0 %v865
        %v2591 = vpop.f32.mrf.mxu0
        %v2592 = vadd.f32 %v2543, %v2591
        %v2593 = vpop.f32.mrf.mxu0
        %v2594 = vadd.f32 %v2545, %v2593
        %2595 = vmatmul.bf16.gmra.mxu0 %v872
        %v2596 = vpop.f32.mrf.mxu0
        %v2597 = vadd.f32 %v2548, %v2596
        %v2598 = vpop.f32.mrf.mxu0
        %v2599 = vadd.f32 %v2550, %v2598
        %2600 = vmatmul.bf16.gmra.mxu0 %v879
        %v2601 = vpop.f32.mrf.mxu0
        %v2602 = vadd.f32 %v2553, %v2601
        %v2603 = vpop.f32.mrf.mxu0
        %v2604 = vadd.f32 %v2555, %v2603
        %2605 = vmatmul.bf16.gmra.mxu0 %v886
        %v2606 = vpop.f32.mrf.mxu0
        %v2607 = vadd.f32 %v2558, %v2606
        %v2608 = vpop.f32.mrf.mxu0
        %v2609 = vadd.f32 %v2560, %v2608
        %2610 = vmatmul.bf16.gmra.mxu0 %v893
        %v2611 = vpop.f32.mrf.mxu0
        %v2612 = vadd.f32 %v2563, %v2611
        %v2613 = vpop.f32.mrf.mxu0
        %v2614 = vadd.f32 %v2565, %v2613
        %2615 = vmatmul.bf16.gmra.mxu0 %v900
        %v2616 = vpop.f32.mrf.mxu0
        %v2617 = vadd.f32 %v2568, %v2616
        %v2618 = vpop.f32.mrf.mxu0
        %v2619 = vadd.f32 %v2570, %v2618
        %2620 = vmatmul.bf16.gmra.mxu0 %v907
        %v2621 = vpop.f32.mrf.mxu0
        %v2622 = vadd.f32 %v2573, %v2621
        %v2623 = vpop.f32.mrf.mxu0
        %v2624 = vadd.f32 %v2575, %v2623
        %2625 = vdwg.mxu0
        %2626 = vmatpush.bf16.msra.mxu0 %v1796
        %2627 = vmatpush.bf16.msra.mxu0 %v1792
        %2628 = vmatpush.bf16.msra.mxu0 %v1788
        %2629 = vmatpush.bf16.msra.mxu0 %v1784
        %2630 = vmatpush.bf16.msra.mxu0 %v1780
        %2631 = vmatpush.bf16.msra.mxu0 %v1776
        %2632 = vmatpush.bf16.msra.mxu0 %v1772
        %2633 = vmatpush.bf16.msra.mxu0 %v1768
        %2634 = vmatmul.bf16.gmra.mxu0 %v859
        %v2635 = vpop.f32.mrf.mxu0
        %v2636 = vadd.f32 %v2587, %v2635
        %v2637 = vpop.f32.mrf.mxu0
        %v2638 = vadd.f32 %v2589, %v2637
        %2639 = vmatmul.bf16.gmra.mxu0 %v866
        %v2640 = vpop.f32.mrf.mxu0
        %v2641 = vadd.f32 %v2592, %v2640
        %v2642 = vpop.f32.mrf.mxu0
        %v2643 = vadd.f32 %v2594, %v2642
        %2644 = vmatmul.bf16.gmra.mxu0 %v873
        %v2645 = vpop.f32.mrf.mxu0
        %v2646 = vadd.f32 %v2597, %v2645
        %v2647 = vpop.f32.mrf.mxu0
        %v2648 = vadd.f32 %v2599, %v2647
        %2649 = vmatmul.bf16.gmra.mxu0 %v880
        %v2650 = vpop.f32.mrf.mxu0
        %v2651 = vadd.f32 %v2602, %v2650
        %v2652 = vpop.f32.mrf.mxu0
        %v2653 = vadd.f32 %v2604, %v2652
        %2654 = vmatmul.bf16.gmra.mxu0 %v887
        %v2655 = vpop.f32.mrf.mxu0
        %v2656 = vadd.f32 %v2607, %v2655
        %v2657 = vpop.f32.mrf.mxu0
        %v2658 = vadd.f32 %v2609, %v2657
        %2659 = vmatmul.bf16.gmra.mxu0 %v894
        %v2660 = vpop.f32.mrf.mxu0
        %v2661 = vadd.f32 %v2612, %v2660
        %v2662 = vpop.f32.mrf.mxu0
        %v2663 = vadd.f32 %v2614, %v2662
        %2664 = vmatmul.bf16.gmra.mxu0 %v901
        %v2665 = vpop.f32.mrf.mxu0
        %v2666 = vadd.f32 %v2617, %v2665
        %v2667 = vpop.f32.mrf.mxu0
        %v2668 = vadd.f32 %v2619, %v2667
        %2669 = vmatmul.bf16.gmra.mxu0 %v908
        %v2670 = vpop.f32.mrf.mxu0
        %v2671 = vadd.f32 %v2622, %v2670
        %v2672 = vpop.f32.mrf.mxu0
        %v2673 = vadd.f32 %v2624, %v2672
        %2674 = vdwg.mxu0
        %2675 = vmatpush.bf16.msra.mxu0 %v1828
        %2676 = vmatpush.bf16.msra.mxu0 %v1824
        %2677 = vmatpush.bf16.msra.mxu0 %v1820
        %2678 = vmatpush.bf16.msra.mxu0 %v1816
        %2679 = vmatpush.bf16.msra.mxu0 %v1812
        %2680 = vmatpush.bf16.msra.mxu0 %v1808
        %2681 = vmatpush.bf16.msra.mxu0 %v1804
        %2682 = vmatpush.bf16.msra.mxu0 %v1800
        %2683 = vmatmul.bf16.gmra.mxu0 %v860
        %v2684 = vpop.f32.mrf.mxu0
        %v2685 = vadd.f32 %v2636, %v2684
        %v2686 = vpop.f32.mrf.mxu0
        %v2687 = vadd.f32 %v2638, %v2686
        %2688 = vmatmul.bf16.gmra.mxu0 %v867
        %v2689 = vpop.f32.mrf.mxu0
        %v2690 = vadd.f32 %v2641, %v2689
        %v2691 = vpop.f32.mrf.mxu0
        %v2692 = vadd.f32 %v2643, %v2691
        %2693 = vmatmul.bf16.gmra.mxu0 %v874
        %v2694 = vpop.f32.mrf.mxu0
        %v2695 = vadd.f32 %v2646, %v2694
        %v2696 = vpop.f32.mrf.mxu0
        %v2697 = vadd.f32 %v2648, %v2696
        %2698 = vmatmul.bf16.gmra.mxu0 %v881
        %v2699 = vpop.f32.mrf.mxu0
        %v2700 = vadd.f32 %v2651, %v2699
        %v2701 = vpop.f32.mrf.mxu0
        %v2702 = vadd.f32 %v2653, %v2701
        %2703 = vmatmul.bf16.gmra.mxu0 %v888
        %v2704 = vpop.f32.mrf.mxu0
        %v2705 = vadd.f32 %v2656, %v2704
        %v2706 = vpop.f32.mrf.mxu0
        %v2707 = vadd.f32 %v2658, %v2706
        %2708 = vmatmul.bf16.gmra.mxu0 %v895
        %v2709 = vpop.f32.mrf.mxu0
        %v2710 = vadd.f32 %v2661, %v2709
        %v2711 = vpop.f32.mrf.mxu0
        %v2712 = vadd.f32 %v2663, %v2711
        %2713 = vmatmul.bf16.gmra.mxu0 %v902
        %v2714 = vpop.f32.mrf.mxu0
        %v2715 = vadd.f32 %v2666, %v2714
        %v2716 = vpop.f32.mrf.mxu0
        %v2717 = vadd.f32 %v2668, %v2716
        %2718 = vmatmul.bf16.gmra.mxu0 %v909
        %v2719 = vpop.f32.mrf.mxu0
        %v2720 = vadd.f32 %v2671, %v2719
        %v2721 = vpop.f32.mrf.mxu0
        %v2722 = vadd.f32 %v2673, %v2721
        %2723 = vdwg.mxu0
        %2724 = vmatpush.bf16.msra.mxu0 %v1860
        %2725 = vmatpush.bf16.msra.mxu0 %v1856
        %2726 = vmatpush.bf16.msra.mxu0 %v1852
        %2727 = vmatpush.bf16.msra.mxu0 %v1848
        %2728 = vmatpush.bf16.msra.mxu0 %v1844
        %2729 = vmatpush.bf16.msra.mxu0 %v1840
        %2730 = vmatpush.bf16.msra.mxu0 %v1836
        %2731 = vmatpush.bf16.msra.mxu0 %v1832
        %2732 = vmatmul.bf16.gmra.mxu0 %v861
        %v2733 = vpop.f32.mrf.mxu0
        %v2734 = vadd.f32 %v2685, %v2733
        %v2735 = vpop.f32.mrf.mxu0
        %v2736 = vadd.f32 %v2687, %v2735
        %2737 = vmatmul.bf16.gmra.mxu0 %v868
        %v2738 = vpop.f32.mrf.mxu0
        %v2739 = vadd.f32 %v2690, %v2738
        %v2740 = vpop.f32.mrf.mxu0
        %v2741 = vadd.f32 %v2692, %v2740
        %2742 = vmatmul.bf16.gmra.mxu0 %v875
        %v2743 = vpop.f32.mrf.mxu0
        %v2744 = vadd.f32 %v2695, %v2743
        %v2745 = vpop.f32.mrf.mxu0
        %v2746 = vadd.f32 %v2697, %v2745
        %2747 = vmatmul.bf16.gmra.mxu0 %v882
        %v2748 = vpop.f32.mrf.mxu0
        %v2749 = vadd.f32 %v2700, %v2748
        %v2750 = vpop.f32.mrf.mxu0
        %v2751 = vadd.f32 %v2702, %v2750
        %2752 = vmatmul.bf16.gmra.mxu0 %v889
        %v2753 = vpop.f32.mrf.mxu0
        %v2754 = vadd.f32 %v2705, %v2753
        %v2755 = vpop.f32.mrf.mxu0
        %v2756 = vadd.f32 %v2707, %v2755
        %2757 = vmatmul.bf16.gmra.mxu0 %v896
        %v2758 = vpop.f32.mrf.mxu0
        %v2759 = vadd.f32 %v2710, %v2758
        %v2760 = vpop.f32.mrf.mxu0
        %v2761 = vadd.f32 %v2712, %v2760
        %2762 = vmatmul.bf16.gmra.mxu0 %v903
        %v2763 = vpop.f32.mrf.mxu0
        %v2764 = vadd.f32 %v2715, %v2763
        %v2765 = vpop.f32.mrf.mxu0
        %v2766 = vadd.f32 %v2717, %v2765
        %2767 = vmatmul.bf16.gmra.mxu0 %v910
        %v2768 = vpop.f32.mrf.mxu0
        %v2769 = vadd.f32 %v2720, %v2768
        %v2770 = vpop.f32.mrf.mxu0
        %v2771 = vadd.f32 %v2722, %v2770
        %2772 = vdwg.mxu0
        %2773 = vmatpush.bf16.msra.mxu0 %v1669
        %2774 = vmatpush.bf16.msra.mxu0 %v1665
        %2775 = vmatpush.bf16.msra.mxu0 %v1661
        %2776 = vmatpush.bf16.msra.mxu0 %v1657
        %2777 = vmatpush.bf16.msra.mxu0 %v1653
        %2778 = vmatpush.bf16.msra.mxu0 %v1649
        %2779 = vmatpush.bf16.msra.mxu0 %v1645
        %2780 = vmatpush.bf16.msra.mxu0 %v1641
        %2781 = vmatmul.bf16.gmra.mxu0 %v855
        %v2782 = vpop.f32.mrf.mxu0
        %v2783 = vadd.f32 %v673, %v2782
        %v2784 = vpop.f32.mrf.mxu0
        %v2785 = vadd.f32 %v673, %v2784
        %2786 = vmatmul.bf16.gmra.mxu0 %v862
        %v2787 = vpop.f32.mrf.mxu0
        %v2788 = vadd.f32 %v673, %v2787
        %v2789 = vpop.f32.mrf.mxu0
        %v2790 = vadd.f32 %v673, %v2789
        %2791 = vmatmul.bf16.gmra.mxu0 %v869
        %v2792 = vpop.f32.mrf.mxu0
        %v2793 = vadd.f32 %v673, %v2792
        %v2794 = vpop.f32.mrf.mxu0
        %v2795 = vadd.f32 %v673, %v2794
        %2796 = vmatmul.bf16.gmra.mxu0 %v876
        %v2797 = vpop.f32.mrf.mxu0
        %v2798 = vadd.f32 %v673, %v2797
        %v2799 = vpop.f32.mrf.mxu0
        %v2800 = vadd.f32 %v673, %v2799
        %2801 = vmatmul.bf16.gmra.mxu0 %v883
        %v2802 = vpop.f32.mrf.mxu0
        %v2803 = vadd.f32 %v673, %v2802
        %v2804 = vpop.f32.mrf.mxu0
        %v2805 = vadd.f32 %v673, %v2804
        %2806 = vmatmul.bf16.gmra.mxu0 %v890
        %v2807 = vpop.f32.mrf.mxu0
        %v2808 = vadd.f32 %v673, %v2807
        %v2809 = vpop.f32.mrf.mxu0
        %v2810 = vadd.f32 %v673, %v2809
        %2811 = vmatmul.bf16.gmra.mxu0 %v897
        %v2812 = vpop.f32.mrf.mxu0
        %v2813 = vadd.f32 %v673, %v2812
        %v2814 = vpop.f32.mrf.mxu0
        %v2815 = vadd.f32 %v673, %v2814
        %2816 = vmatmul.bf16.gmra.mxu0 %v904
        %v2817 = vpop.f32.mrf.mxu0
        %v2818 = vadd.f32 %v673, %v2817
        %v2819 = vpop.f32.mrf.mxu0
        %v2820 = vadd.f32 %v673, %v2819
        %2821 = vdwg.mxu0
        %2822 = vmatpush.bf16.msra.mxu0 %v1701
        %2823 = vmatpush.bf16.msra.mxu0 %v1697
        %2824 = vmatpush.bf16.msra.mxu0 %v1693
        %2825 = vmatpush.bf16.msra.mxu0 %v1689
        %2826 = vmatpush.bf16.msra.mxu0 %v1685
        %2827 = vmatpush.bf16.msra.mxu0 %v1681
        %2828 = vmatpush.bf16.msra.mxu0 %v1677
        %2829 = vmatpush.bf16.msra.mxu0 %v1673
        %2830 = vmatmul.bf16.gmra.mxu0 %v856
        %v2831 = vpop.f32.mrf.mxu0
        %v2832 = vadd.f32 %v2783, %v2831
        %v2833 = vpop.f32.mrf.mxu0
        %v2834 = vadd.f32 %v2785, %v2833
        %2835 = vmatmul.bf16.gmra.mxu0 %v863
        %v2836 = vpop.f32.mrf.mxu0
        %v2837 = vadd.f32 %v2788, %v2836
        %v2838 = vpop.f32.mrf.mxu0
        %v2839 = vadd.f32 %v2790, %v2838
        %2840 = vmatmul.bf16.gmra.mxu0 %v870
        %v2841 = vpop.f32.mrf.mxu0
        %v2842 = vadd.f32 %v2793, %v2841
        %v2843 = vpop.f32.mrf.mxu0
        %v2844 = vadd.f32 %v2795, %v2843
        %2845 = vmatmul.bf16.gmra.mxu0 %v877
        %v2846 = vpop.f32.mrf.mxu0
        %v2847 = vadd.f32 %v2798, %v2846
        %v2848 = vpop.f32.mrf.mxu0
        %v2849 = vadd.f32 %v2800, %v2848
        %2850 = vmatmul.bf16.gmra.mxu0 %v884
        %v2851 = vpop.f32.mrf.mxu0
        %v2852 = vadd.f32 %v2803, %v2851
        %v2853 = vpop.f32.mrf.mxu0
        %v2854 = vadd.f32 %v2805, %v2853
        %2855 = vmatmul.bf16.gmra.mxu0 %v891
        %v2856 = vpop.f32.mrf.mxu0
        %v2857 = vadd.f32 %v2808, %v2856
        %v2858 = vpop.f32.mrf.mxu0
        %v2859 = vadd.f32 %v2810, %v2858
        %2860 = vmatmul.bf16.gmra.mxu0 %v898
        %v2861 = vpop.f32.mrf.mxu0
        %v2862 = vadd.f32 %v2813, %v2861
        %v2863 = vpop.f32.mrf.mxu0
        %v2864 = vadd.f32 %v2815, %v2863
        %2865 = vmatmul.bf16.gmra.mxu0 %v905
        %v2866 = vpop.f32.mrf.mxu0
        %v2867 = vadd.f32 %v2818, %v2866
        %v2868 = vpop.f32.mrf.mxu0
        %v2869 = vadd.f32 %v2820, %v2868
        %2870 = vdwg.mxu0
        %2871 = vmatpush.bf16.msra.mxu0 %v1733
        %2872 = vmatpush.bf16.msra.mxu0 %v1729
        %2873 = vmatpush.bf16.msra.mxu0 %v1725
        %2874 = vmatpush.bf16.msra.mxu0 %v1721
        %2875 = vmatpush.bf16.msra.mxu0 %v1717
        %2876 = vmatpush.bf16.msra.mxu0 %v1713
        %2877 = vmatpush.bf16.msra.mxu0 %v1709
        %2878 = vmatpush.bf16.msra.mxu0 %v1705
        %2879 = vmatmul.bf16.gmra.mxu0 %v857
        %v2880 = vpop.f32.mrf.mxu0
        %v2881 = vadd.f32 %v2832, %v2880
        %v2882 = vpop.f32.mrf.mxu0
        %v2883 = vadd.f32 %v2834, %v2882
        %2884 = vmatmul.bf16.gmra.mxu0 %v864
        %v2885 = vpop.f32.mrf.mxu0
        %v2886 = vadd.f32 %v2837, %v2885
        %v2887 = vpop.f32.mrf.mxu0
        %v2888 = vadd.f32 %v2839, %v2887
        %2889 = vmatmul.bf16.gmra.mxu0 %v871
        %v2890 = vpop.f32.mrf.mxu0
        %v2891 = vadd.f32 %v2842, %v2890
        %v2892 = vpop.f32.mrf.mxu0
        %v2893 = vadd.f32 %v2844, %v2892
        %2894 = vmatmul.bf16.gmra.mxu0 %v878
        %v2895 = vpop.f32.mrf.mxu0
        %v2896 = vadd.f32 %v2847, %v2895
        %v2897 = vpop.f32.mrf.mxu0
        %v2898 = vadd.f32 %v2849, %v2897
        %2899 = vmatmul.bf16.gmra.mxu0 %v885
        %v2900 = vpop.f32.mrf.mxu0
        %v2901 = vadd.f32 %v2852, %v2900
        %v2902 = vpop.f32.mrf.mxu0
        %v2903 = vadd.f32 %v2854, %v2902
        %2904 = vmatmul.bf16.gmra.mxu0 %v892
        %v2905 = vpop.f32.mrf.mxu0
        %v2906 = vadd.f32 %v2857, %v2905
        %v2907 = vpop.f32.mrf.mxu0
        %v2908 = vadd.f32 %v2859, %v2907
        %2909 = vmatmul.bf16.gmra.mxu0 %v899
        %v2910 = vpop.f32.mrf.mxu0
        %v2911 = vadd.f32 %v2862, %v2910
        %v2912 = vpop.f32.mrf.mxu0
        %v2913 = vadd.f32 %v2864, %v2912
        %2914 = vmatmul.bf16.gmra.mxu0 %v906
        %v2915 = vpop.f32.mrf.mxu0
        %v2916 = vadd.f32 %v2867, %v2915
        %v2917 = vpop.f32.mrf.mxu0
        %v2918 = vadd.f32 %v2869, %v2917
        %2919 = vdwg.mxu0
        %2920 = vmatpush.bf16.msra.mxu0 %v1765
        %2921 = vmatpush.bf16.msra.mxu0 %v1761
        %2922 = vmatpush.bf16.msra.mxu0 %v1757
        %2923 = vmatpush.bf16.msra.mxu0 %v1753
        %2924 = vmatpush.bf16.msra.mxu0 %v1749
        %2925 = vmatpush.bf16.msra.mxu0 %v1745
        %2926 = vmatpush.bf16.msra.mxu0 %v1741
        %2927 = vmatpush.bf16.msra.mxu0 %v1737
        %2928 = vmatmul.bf16.gmra.mxu0 %v858
        %v2929 = vpop.f32.mrf.mxu0
        %v2930 = vadd.f32 %v2881, %v2929
        %v2931 = vpop.f32.mrf.mxu0
        %v2932 = vadd.f32 %v2883, %v2931
        %2933 = vmatmul.bf16.gmra.mxu0 %v865
        %v2934 = vpop.f32.mrf.mxu0
        %v2935 = vadd.f32 %v2886, %v2934
        %v2936 = vpop.f32.mrf.mxu0
        %v2937 = vadd.f32 %v2888, %v2936
        %2938 = vmatmul.bf16.gmra.mxu0 %v872
        %v2939 = vpop.f32.mrf.mxu0
        %v2940 = vadd.f32 %v2891, %v2939
        %v2941 = vpop.f32.mrf.mxu0
        %v2942 = vadd.f32 %v2893, %v2941
        %2943 = vmatmul.bf16.gmra.mxu0 %v879
        %v2944 = vpop.f32.mrf.mxu0
        %v2945 = vadd.f32 %v2896, %v2944
        %v2946 = vpop.f32.mrf.mxu0
        %v2947 = vadd.f32 %v2898, %v2946
        %2948 = vmatmul.bf16.gmra.mxu0 %v886
        %v2949 = vpop.f32.mrf.mxu0
        %v2950 = vadd.f32 %v2901, %v2949
        %v2951 = vpop.f32.mrf.mxu0
        %v2952 = vadd.f32 %v2903, %v2951
        %2953 = vmatmul.bf16.gmra.mxu0 %v893
        %v2954 = vpop.f32.mrf.mxu0
        %v2955 = vadd.f32 %v2906, %v2954
        %v2956 = vpop.f32.mrf.mxu0
        %v2957 = vadd.f32 %v2908, %v2956
        %2958 = vmatmul.bf16.gmra.mxu0 %v900
        %v2959 = vpop.f32.mrf.mxu0
        %v2960 = vadd.f32 %v2911, %v2959
        %v2961 = vpop.f32.mrf.mxu0
        %v2962 = vadd.f32 %v2913, %v2961
        %2963 = vmatmul.bf16.gmra.mxu0 %v907
        %v2964 = vpop.f32.mrf.mxu0
        %v2965 = vadd.f32 %v2916, %v2964
        %v2966 = vpop.f32.mrf.mxu0
        %v2967 = vadd.f32 %v2918, %v2966
        %2968 = vdwg.mxu0
        %2969 = vmatpush.bf16.msra.mxu0 %v1797
        %2970 = vmatpush.bf16.msra.mxu0 %v1793
        %2971 = vmatpush.bf16.msra.mxu0 %v1789
        %2972 = vmatpush.bf16.msra.mxu0 %v1785
        %2973 = vmatpush.bf16.msra.mxu0 %v1781
        %2974 = vmatpush.bf16.msra.mxu0 %v1777
        %2975 = vmatpush.bf16.msra.mxu0 %v1773
        %2976 = vmatpush.bf16.msra.mxu0 %v1769
        %2977 = vmatmul.bf16.gmra.mxu0 %v859
        %v2978 = vpop.f32.mrf.mxu0
        %v2979 = vadd.f32 %v2930, %v2978
        %v2980 = vpop.f32.mrf.mxu0
        %v2981 = vadd.f32 %v2932, %v2980
        %2982 = vmatmul.bf16.gmra.mxu0 %v866
        %v2983 = vpop.f32.mrf.mxu0
        %v2984 = vadd.f32 %v2935, %v2983
        %v2985 = vpop.f32.mrf.mxu0
        %v2986 = vadd.f32 %v2937, %v2985
        %2987 = vmatmul.bf16.gmra.mxu0 %v873
        %v2988 = vpop.f32.mrf.mxu0
        %v2989 = vadd.f32 %v2940, %v2988
        %v2990 = vpop.f32.mrf.mxu0
        %v2991 = vadd.f32 %v2942, %v2990
        %2992 = vmatmul.bf16.gmra.mxu0 %v880
        %v2993 = vpop.f32.mrf.mxu0
        %v2994 = vadd.f32 %v2945, %v2993
        %v2995 = vpop.f32.mrf.mxu0
        %v2996 = vadd.f32 %v2947, %v2995
        %2997 = vmatmul.bf16.gmra.mxu0 %v887
        %v2998 = vpop.f32.mrf.mxu0
        %v2999 = vadd.f32 %v2950, %v2998
        %v3000 = vpop.f32.mrf.mxu0
        %v3001 = vadd.f32 %v2952, %v3000
        %3002 = vmatmul.bf16.gmra.mxu0 %v894
        %v3003 = vpop.f32.mrf.mxu0
        %v3004 = vadd.f32 %v2955, %v3003
        %v3005 = vpop.f32.mrf.mxu0
        %v3006 = vadd.f32 %v2957, %v3005
        %3007 = vmatmul.bf16.gmra.mxu0 %v901
        %v3008 = vpop.f32.mrf.mxu0
        %v3009 = vadd.f32 %v2960, %v3008
        %v3010 = vpop.f32.mrf.mxu0
        %v3011 = vadd.f32 %v2962, %v3010
        %3012 = vmatmul.bf16.gmra.mxu0 %v908
        %v3013 = vpop.f32.mrf.mxu0
        %v3014 = vadd.f32 %v2965, %v3013
        %v3015 = vpop.f32.mrf.mxu0
        %v3016 = vadd.f32 %v2967, %v3015
        %3017 = vdwg.mxu0
        %3018 = vmatpush.bf16.msra.mxu0 %v1829
        %3019 = vmatpush.bf16.msra.mxu0 %v1825
        %3020 = vmatpush.bf16.msra.mxu0 %v1821
        %3021 = vmatpush.bf16.msra.mxu0 %v1817
        %3022 = vmatpush.bf16.msra.mxu0 %v1813
        %3023 = vmatpush.bf16.msra.mxu0 %v1809
        %3024 = vmatpush.bf16.msra.mxu0 %v1805
        %3025 = vmatpush.bf16.msra.mxu0 %v1801
        %3026 = vmatmul.bf16.gmra.mxu0 %v860
        %v3027 = vpop.f32.mrf.mxu0
        %v3028 = vadd.f32 %v2979, %v3027
        %v3029 = vpop.f32.mrf.mxu0
        %v3030 = vadd.f32 %v2981, %v3029
        %3031 = vmatmul.bf16.gmra.mxu0 %v867
        %v3032 = vpop.f32.mrf.mxu0
        %v3033 = vadd.f32 %v2984, %v3032
        %v3034 = vpop.f32.mrf.mxu0
        %v3035 = vadd.f32 %v2986, %v3034
        %3036 = vmatmul.bf16.gmra.mxu0 %v874
        %v3037 = vpop.f32.mrf.mxu0
        %v3038 = vadd.f32 %v2989, %v3037
        %v3039 = vpop.f32.mrf.mxu0
        %v3040 = vadd.f32 %v2991, %v3039
        %3041 = vmatmul.bf16.gmra.mxu0 %v881
        %v3042 = vpop.f32.mrf.mxu0
        %v3043 = vadd.f32 %v2994, %v3042
        %v3044 = vpop.f32.mrf.mxu0
        %v3045 = vadd.f32 %v2996, %v3044
        %3046 = vmatmul.bf16.gmra.mxu0 %v888
        %v3047 = vpop.f32.mrf.mxu0
        %v3048 = vadd.f32 %v2999, %v3047
        %v3049 = vpop.f32.mrf.mxu0
        %v3050 = vadd.f32 %v3001, %v3049
        %3051 = vmatmul.bf16.gmra.mxu0 %v895
        %v3052 = vpop.f32.mrf.mxu0
        %v3053 = vadd.f32 %v3004, %v3052
        %v3054 = vpop.f32.mrf.mxu0
        %v3055 = vadd.f32 %v3006, %v3054
        %3056 = vmatmul.bf16.gmra.mxu0 %v902
        %v3057 = vpop.f32.mrf.mxu0
        %v3058 = vadd.f32 %v3009, %v3057
        %v3059 = vpop.f32.mrf.mxu0
        %v3060 = vadd.f32 %v3011, %v3059
        %3061 = vmatmul.bf16.gmra.mxu0 %v909
        %v3062 = vpop.f32.mrf.mxu0
        %v3063 = vadd.f32 %v3014, %v3062
        %v3064 = vpop.f32.mrf.mxu0
        %v3065 = vadd.f32 %v3016, %v3064
        %3066 = vdwg.mxu0
        %3067 = vmatpush.bf16.msra.mxu0 %v1861
        %3068 = vmatpush.bf16.msra.mxu0 %v1857
        %3069 = vmatpush.bf16.msra.mxu0 %v1853
        %3070 = vmatpush.bf16.msra.mxu0 %v1849
        %3071 = vmatpush.bf16.msra.mxu0 %v1845
        %3072 = vmatpush.bf16.msra.mxu0 %v1841
        %3073 = vmatpush.bf16.msra.mxu0 %v1837
        %3074 = vmatpush.bf16.msra.mxu0 %v1833
        %3075 = vmatmul.bf16.gmra.mxu0 %v861
        %v3076 = vpop.f32.mrf.mxu0
        %v3077 = vadd.f32 %v3028, %v3076
        %v3078 = vpop.f32.mrf.mxu0
        %v3079 = vadd.f32 %v3030, %v3078
        %3080 = vmatmul.bf16.gmra.mxu0 %v868
        %v3081 = vpop.f32.mrf.mxu0
        %v3082 = vadd.f32 %v3033, %v3081
        %v3083 = vpop.f32.mrf.mxu0
        %v3084 = vadd.f32 %v3035, %v3083
        %3085 = vmatmul.bf16.gmra.mxu0 %v875
        %v3086 = vpop.f32.mrf.mxu0
        %v3087 = vadd.f32 %v3038, %v3086
        %v3088 = vpop.f32.mrf.mxu0
        %v3089 = vadd.f32 %v3040, %v3088
        %3090 = vmatmul.bf16.gmra.mxu0 %v882
        %v3091 = vpop.f32.mrf.mxu0
        %v3092 = vadd.f32 %v3043, %v3091
        %v3093 = vpop.f32.mrf.mxu0
        %v3094 = vadd.f32 %v3045, %v3093
        %3095 = vmatmul.bf16.gmra.mxu0 %v889
        %v3096 = vpop.f32.mrf.mxu0
        %v3097 = vadd.f32 %v3048, %v3096
        %v3098 = vpop.f32.mrf.mxu0
        %v3099 = vadd.f32 %v3050, %v3098
        %3100 = vmatmul.bf16.gmra.mxu0 %v896
        %v3101 = vpop.f32.mrf.mxu0
        %v3102 = vadd.f32 %v3053, %v3101
        %v3103 = vpop.f32.mrf.mxu0
        %v3104 = vadd.f32 %v3055, %v3103
        %3105 = vmatmul.bf16.gmra.mxu0 %v903
        %v3106 = vpop.f32.mrf.mxu0
        %v3107 = vadd.f32 %v3058, %v3106
        %v3108 = vpop.f32.mrf.mxu0
        %v3109 = vadd.f32 %v3060, %v3108
        %3110 = vmatmul.bf16.gmra.mxu0 %v910
        %v3111 = vpop.f32.mrf.mxu0
        %v3112 = vadd.f32 %v3063, %v3111
        %v3113 = vpop.f32.mrf.mxu0
        %v3114 = vadd.f32 %v3065, %v3113
        %3115 = vdwg.mxu0
        %3116 = vmatpush.bf16.msra.mxu0 %v1670
        %3117 = vmatpush.bf16.msra.mxu0 %v1666
        %3118 = vmatpush.bf16.msra.mxu0 %v1662
        %3119 = vmatpush.bf16.msra.mxu0 %v1658
        %3120 = vmatpush.bf16.msra.mxu0 %v1654
        %3121 = vmatpush.bf16.msra.mxu0 %v1650
        %3122 = vmatpush.bf16.msra.mxu0 %v1646
        %3123 = vmatpush.bf16.msra.mxu0 %v1642
        %3124 = vmatmul.bf16.gmra.mxu0 %v855
        %v3125 = vpop.f32.mrf.mxu0
        %v3126 = vadd.f32 %v674, %v3125
        %v3127 = vpop.f32.mrf.mxu0
        %v3128 = vadd.f32 %v674, %v3127
        %3129 = vmatmul.bf16.gmra.mxu0 %v862
        %v3130 = vpop.f32.mrf.mxu0
        %v3131 = vadd.f32 %v674, %v3130
        %v3132 = vpop.f32.mrf.mxu0
        %v3133 = vadd.f32 %v674, %v3132
        %3134 = vmatmul.bf16.gmra.mxu0 %v869
        %v3135 = vpop.f32.mrf.mxu0
        %v3136 = vadd.f32 %v674, %v3135
        %v3137 = vpop.f32.mrf.mxu0
        %v3138 = vadd.f32 %v674, %v3137
        %3139 = vmatmul.bf16.gmra.mxu0 %v876
        %v3140 = vpop.f32.mrf.mxu0
        %v3141 = vadd.f32 %v674, %v3140
        %v3142 = vpop.f32.mrf.mxu0
        %v3143 = vadd.f32 %v674, %v3142
        %3144 = vmatmul.bf16.gmra.mxu0 %v883
        %v3145 = vpop.f32.mrf.mxu0
        %v3146 = vadd.f32 %v674, %v3145
        %v3147 = vpop.f32.mrf.mxu0
        %v3148 = vadd.f32 %v674, %v3147
        %3149 = vmatmul.bf16.gmra.mxu0 %v890
        %v3150 = vpop.f32.mrf.mxu0
        %v3151 = vadd.f32 %v674, %v3150
        %v3152 = vpop.f32.mrf.mxu0
        %v3153 = vadd.f32 %v674, %v3152
        %3154 = vmatmul.bf16.gmra.mxu0 %v897
        %v3155 = vpop.f32.mrf.mxu0
        %v3156 = vadd.f32 %v674, %v3155
        %v3157 = vpop.f32.mrf.mxu0
        %v3158 = vadd.f32 %v674, %v3157
        %3159 = vmatmul.bf16.gmra.mxu0 %v904
        %v3160 = vpop.f32.mrf.mxu0
        %v3161 = vadd.f32 %v674, %v3160
        %v3162 = vpop.f32.mrf.mxu0
        %v3163 = vadd.f32 %v674, %v3162
        %3164 = vdwg.mxu0
        %3165 = vmatpush.bf16.msra.mxu0 %v1702
        %3166 = vmatpush.bf16.msra.mxu0 %v1698
        %3167 = vmatpush.bf16.msra.mxu0 %v1694
        %3168 = vmatpush.bf16.msra.mxu0 %v1690
        %3169 = vmatpush.bf16.msra.mxu0 %v1686
        %3170 = vmatpush.bf16.msra.mxu0 %v1682
        %3171 = vmatpush.bf16.msra.mxu0 %v1678
        %3172 = vmatpush.bf16.msra.mxu0 %v1674
        %3173 = vmatmul.bf16.gmra.mxu0 %v856
        %v3174 = vpop.f32.mrf.mxu0
        %v3175 = vadd.f32 %v3126, %v3174
        %v3176 = vpop.f32.mrf.mxu0
        %v3177 = vadd.f32 %v3128, %v3176
        %3178 = vmatmul.bf16.gmra.mxu0 %v863
        %v3179 = vpop.f32.mrf.mxu0
        %v3180 = vadd.f32 %v3131, %v3179
        %v3181 = vpop.f32.mrf.mxu0
        %v3182 = vadd.f32 %v3133, %v3181
        %3183 = vmatmul.bf16.gmra.mxu0 %v870
        %v3184 = vpop.f32.mrf.mxu0
        %v3185 = vadd.f32 %v3136, %v3184
        %v3186 = vpop.f32.mrf.mxu0
        %v3187 = vadd.f32 %v3138, %v3186
        %3188 = vmatmul.bf16.gmra.mxu0 %v877
        %v3189 = vpop.f32.mrf.mxu0
        %v3190 = vadd.f32 %v3141, %v3189
        %v3191 = vpop.f32.mrf.mxu0
        %v3192 = vadd.f32 %v3143, %v3191
        %3193 = vmatmul.bf16.gmra.mxu0 %v884
        %v3194 = vpop.f32.mrf.mxu0
        %v3195 = vadd.f32 %v3146, %v3194
        %v3196 = vpop.f32.mrf.mxu0
        %v3197 = vadd.f32 %v3148, %v3196
        %3198 = vmatmul.bf16.gmra.mxu0 %v891
        %v3199 = vpop.f32.mrf.mxu0
        %v3200 = vadd.f32 %v3151, %v3199
        %v3201 = vpop.f32.mrf.mxu0
        %v3202 = vadd.f32 %v3153, %v3201
        %3203 = vmatmul.bf16.gmra.mxu0 %v898
        %v3204 = vpop.f32.mrf.mxu0
        %v3205 = vadd.f32 %v3156, %v3204
        %v3206 = vpop.f32.mrf.mxu0
        %v3207 = vadd.f32 %v3158, %v3206
        %3208 = vmatmul.bf16.gmra.mxu0 %v905
        %v3209 = vpop.f32.mrf.mxu0
        %v3210 = vadd.f32 %v3161, %v3209
        %v3211 = vpop.f32.mrf.mxu0
        %v3212 = vadd.f32 %v3163, %v3211
        %3213 = vdwg.mxu0
        %3214 = vmatpush.bf16.msra.mxu0 %v1734
        %3215 = vmatpush.bf16.msra.mxu0 %v1730
        %3216 = vmatpush.bf16.msra.mxu0 %v1726
        %3217 = vmatpush.bf16.msra.mxu0 %v1722
        %3218 = vmatpush.bf16.msra.mxu0 %v1718
        %3219 = vmatpush.bf16.msra.mxu0 %v1714
        %3220 = vmatpush.bf16.msra.mxu0 %v1710
        %3221 = vmatpush.bf16.msra.mxu0 %v1706
        %3222 = vmatmul.bf16.gmra.mxu0 %v857
        %v3223 = vpop.f32.mrf.mxu0
        %v3224 = vadd.f32 %v3175, %v3223
        %v3225 = vpop.f32.mrf.mxu0
        %v3226 = vadd.f32 %v3177, %v3225
        %3227 = vmatmul.bf16.gmra.mxu0 %v864
        %v3228 = vpop.f32.mrf.mxu0
        %v3229 = vadd.f32 %v3180, %v3228
        %v3230 = vpop.f32.mrf.mxu0
        %v3231 = vadd.f32 %v3182, %v3230
        %3232 = vmatmul.bf16.gmra.mxu0 %v871
        %v3233 = vpop.f32.mrf.mxu0
        %v3234 = vadd.f32 %v3185, %v3233
        %v3235 = vpop.f32.mrf.mxu0
        %v3236 = vadd.f32 %v3187, %v3235
        %3237 = vmatmul.bf16.gmra.mxu0 %v878
        %v3238 = vpop.f32.mrf.mxu0
        %v3239 = vadd.f32 %v3190, %v3238
        %v3240 = vpop.f32.mrf.mxu0
        %v3241 = vadd.f32 %v3192, %v3240
        %3242 = vmatmul.bf16.gmra.mxu0 %v885
        %v3243 = vpop.f32.mrf.mxu0
        %v3244 = vadd.f32 %v3195, %v3243
        %v3245 = vpop.f32.mrf.mxu0
        %v3246 = vadd.f32 %v3197, %v3245
        %3247 = vmatmul.bf16.gmra.mxu0 %v892
        %v3248 = vpop.f32.mrf.mxu0
        %v3249 = vadd.f32 %v3200, %v3248
        %v3250 = vpop.f32.mrf.mxu0
        %v3251 = vadd.f32 %v3202, %v3250
        %3252 = vmatmul.bf16.gmra.mxu0 %v899
        %v3253 = vpop.f32.mrf.mxu0
        %v3254 = vadd.f32 %v3205, %v3253
        %v3255 = vpop.f32.mrf.mxu0
        %v3256 = vadd.f32 %v3207, %v3255
        %3257 = vmatmul.bf16.gmra.mxu0 %v906
        %v3258 = vpop.f32.mrf.mxu0
        %v3259 = vadd.f32 %v3210, %v3258
        %v3260 = vpop.f32.mrf.mxu0
        %v3261 = vadd.f32 %v3212, %v3260
        %3262 = vdwg.mxu0
        %3263 = vmatpush.bf16.msra.mxu0 %v1766
        %3264 = vmatpush.bf16.msra.mxu0 %v1762
        %3265 = vmatpush.bf16.msra.mxu0 %v1758
        %3266 = vmatpush.bf16.msra.mxu0 %v1754
        %3267 = vmatpush.bf16.msra.mxu0 %v1750
        %3268 = vmatpush.bf16.msra.mxu0 %v1746
        %3269 = vmatpush.bf16.msra.mxu0 %v1742
        %3270 = vmatpush.bf16.msra.mxu0 %v1738
        %3271 = vmatmul.bf16.gmra.mxu0 %v858
        %v3272 = vpop.f32.mrf.mxu0
        %v3273 = vadd.f32 %v3224, %v3272
        %v3274 = vpop.f32.mrf.mxu0
        %v3275 = vadd.f32 %v3226, %v3274
        %3276 = vmatmul.bf16.gmra.mxu0 %v865
        %v3277 = vpop.f32.mrf.mxu0
        %v3278 = vadd.f32 %v3229, %v3277
        %v3279 = vpop.f32.mrf.mxu0
        %v3280 = vadd.f32 %v3231, %v3279
        %3281 = vmatmul.bf16.gmra.mxu0 %v872
        %v3282 = vpop.f32.mrf.mxu0
        %v3283 = vadd.f32 %v3234, %v3282
        %v3284 = vpop.f32.mrf.mxu0
        %v3285 = vadd.f32 %v3236, %v3284
        %3286 = vmatmul.bf16.gmra.mxu0 %v879
        %v3287 = vpop.f32.mrf.mxu0
        %v3288 = vadd.f32 %v3239, %v3287
        %v3289 = vpop.f32.mrf.mxu0
        %v3290 = vadd.f32 %v3241, %v3289
        %3291 = vmatmul.bf16.gmra.mxu0 %v886
        %v3292 = vpop.f32.mrf.mxu0
        %v3293 = vadd.f32 %v3244, %v3292
        %v3294 = vpop.f32.mrf.mxu0
        %v3295 = vadd.f32 %v3246, %v3294
        %3296 = vmatmul.bf16.gmra.mxu0 %v893
        %v3297 = vpop.f32.mrf.mxu0
        %v3298 = vadd.f32 %v3249, %v3297
        %v3299 = vpop.f32.mrf.mxu0
        %v3300 = vadd.f32 %v3251, %v3299
        %3301 = vmatmul.bf16.gmra.mxu0 %v900
        %v3302 = vpop.f32.mrf.mxu0
        %v3303 = vadd.f32 %v3254, %v3302
        %v3304 = vpop.f32.mrf.mxu0
        %v3305 = vadd.f32 %v3256, %v3304
        %3306 = vmatmul.bf16.gmra.mxu0 %v907
        %v3307 = vpop.f32.mrf.mxu0
        %v3308 = vadd.f32 %v3259, %v3307
        %v3309 = vpop.f32.mrf.mxu0
        %v3310 = vadd.f32 %v3261, %v3309
        %3311 = vdwg.mxu0
        %3312 = vmatpush.bf16.msra.mxu0 %v1798
        %3313 = vmatpush.bf16.msra.mxu0 %v1794
        %3314 = vmatpush.bf16.msra.mxu0 %v1790
        %3315 = vmatpush.bf16.msra.mxu0 %v1786
        %3316 = vmatpush.bf16.msra.mxu0 %v1782
        %3317 = vmatpush.bf16.msra.mxu0 %v1778
        %3318 = vmatpush.bf16.msra.mxu0 %v1774
        %3319 = vmatpush.bf16.msra.mxu0 %v1770
        %3320 = vmatmul.bf16.gmra.mxu0 %v859
        %v3321 = vpop.f32.mrf.mxu0
        %v3322 = vadd.f32 %v3273, %v3321
        %v3323 = vpop.f32.mrf.mxu0
        %v3324 = vadd.f32 %v3275, %v3323
        %3325 = vmatmul.bf16.gmra.mxu0 %v866
        %v3326 = vpop.f32.mrf.mxu0
        %v3327 = vadd.f32 %v3278, %v3326
        %v3328 = vpop.f32.mrf.mxu0
        %v3329 = vadd.f32 %v3280, %v3328
        %3330 = vmatmul.bf16.gmra.mxu0 %v873
        %v3331 = vpop.f32.mrf.mxu0
        %v3332 = vadd.f32 %v3283, %v3331
        %v3333 = vpop.f32.mrf.mxu0
        %v3334 = vadd.f32 %v3285, %v3333
        %3335 = vmatmul.bf16.gmra.mxu0 %v880
        %v3336 = vpop.f32.mrf.mxu0
        %v3337 = vadd.f32 %v3288, %v3336
        %v3338 = vpop.f32.mrf.mxu0
        %v3339 = vadd.f32 %v3290, %v3338
        %3340 = vmatmul.bf16.gmra.mxu0 %v887
        %v3341 = vpop.f32.mrf.mxu0
        %v3342 = vadd.f32 %v3293, %v3341
        %v3343 = vpop.f32.mrf.mxu0
        %v3344 = vadd.f32 %v3295, %v3343
        %3345 = vmatmul.bf16.gmra.mxu0 %v894
        %v3346 = vpop.f32.mrf.mxu0
        %v3347 = vadd.f32 %v3298, %v3346
        %v3348 = vpop.f32.mrf.mxu0
        %v3349 = vadd.f32 %v3300, %v3348
        %3350 = vmatmul.bf16.gmra.mxu0 %v901
        %v3351 = vpop.f32.mrf.mxu0
        %v3352 = vadd.f32 %v3303, %v3351
        %v3353 = vpop.f32.mrf.mxu0
        %v3354 = vadd.f32 %v3305, %v3353
        %3355 = vmatmul.bf16.gmra.mxu0 %v908
        %v3356 = vpop.f32.mrf.mxu0
        %v3357 = vadd.f32 %v3308, %v3356
        %v3358 = vpop.f32.mrf.mxu0
        %v3359 = vadd.f32 %v3310, %v3358
        %3360 = vdwg.mxu0
        %3361 = vmatpush.bf16.msra.mxu0 %v1830
        %3362 = vmatpush.bf16.msra.mxu0 %v1826
        %3363 = vmatpush.bf16.msra.mxu0 %v1822
        %3364 = vmatpush.bf16.msra.mxu0 %v1818
        %3365 = vmatpush.bf16.msra.mxu0 %v1814
        %3366 = vmatpush.bf16.msra.mxu0 %v1810
        %3367 = vmatpush.bf16.msra.mxu0 %v1806
        %3368 = vmatpush.bf16.msra.mxu0 %v1802
        %3369 = vmatmul.bf16.gmra.mxu0 %v860
        %v3370 = vpop.f32.mrf.mxu0
        %v3371 = vadd.f32 %v3322, %v3370
        %v3372 = vpop.f32.mrf.mxu0
        %v3373 = vadd.f32 %v3324, %v3372
        %3374 = vmatmul.bf16.gmra.mxu0 %v867
        %v3375 = vpop.f32.mrf.mxu0
        %v3376 = vadd.f32 %v3327, %v3375
        %v3377 = vpop.f32.mrf.mxu0
        %v3378 = vadd.f32 %v3329, %v3377
        %3379 = vmatmul.bf16.gmra.mxu0 %v874
        %v3380 = vpop.f32.mrf.mxu0
        %v3381 = vadd.f32 %v3332, %v3380
        %v3382 = vpop.f32.mrf.mxu0
        %v3383 = vadd.f32 %v3334, %v3382
        %3384 = vmatmul.bf16.gmra.mxu0 %v881
        %v3385 = vpop.f32.mrf.mxu0
        %v3386 = vadd.f32 %v3337, %v3385
        %v3387 = vpop.f32.mrf.mxu0
        %v3388 = vadd.f32 %v3339, %v3387
        %3389 = vmatmul.bf16.gmra.mxu0 %v888
        %v3390 = vpop.f32.mrf.mxu0
        %v3391 = vadd.f32 %v3342, %v3390
        %v3392 = vpop.f32.mrf.mxu0
        %v3393 = vadd.f32 %v3344, %v3392
        %3394 = vmatmul.bf16.gmra.mxu0 %v895
        %v3395 = vpop.f32.mrf.mxu0
        %v3396 = vadd.f32 %v3347, %v3395
        %v3397 = vpop.f32.mrf.mxu0
        %v3398 = vadd.f32 %v3349, %v3397
        %3399 = vmatmul.bf16.gmra.mxu0 %v902
        %v3400 = vpop.f32.mrf.mxu0
        %v3401 = vadd.f32 %v3352, %v3400
        %v3402 = vpop.f32.mrf.mxu0
        %v3403 = vadd.f32 %v3354, %v3402
        %3404 = vmatmul.bf16.gmra.mxu0 %v909
        %v3405 = vpop.f32.mrf.mxu0
        %v3406 = vadd.f32 %v3357, %v3405
        %v3407 = vpop.f32.mrf.mxu0
        %v3408 = vadd.f32 %v3359, %v3407
        %3409 = vdwg.mxu0
        %3410 = vmatpush.bf16.msra.mxu0 %v1862
        %3411 = vmatpush.bf16.msra.mxu0 %v1858
        %3412 = vmatpush.bf16.msra.mxu0 %v1854
        %3413 = vmatpush.bf16.msra.mxu0 %v1850
        %3414 = vmatpush.bf16.msra.mxu0 %v1846
        %3415 = vmatpush.bf16.msra.mxu0 %v1842
        %3416 = vmatpush.bf16.msra.mxu0 %v1838
        %3417 = vmatpush.bf16.msra.mxu0 %v1834
        %3418 = vmatmul.bf16.gmra.mxu0 %v861
        %v3419 = vpop.f32.mrf.mxu0
        %v3420 = vadd.f32 %v3371, %v3419
        %v3421 = vpop.f32.mrf.mxu0
        %v3422 = vadd.f32 %v3373, %v3421
        %3423 = vmatmul.bf16.gmra.mxu0 %v868
        %v3424 = vpop.f32.mrf.mxu0
        %v3425 = vadd.f32 %v3376, %v3424
        %v3426 = vpop.f32.mrf.mxu0
        %v3427 = vadd.f32 %v3378, %v3426
        %3428 = vmatmul.bf16.gmra.mxu0 %v875
        %v3429 = vpop.f32.mrf.mxu0
        %v3430 = vadd.f32 %v3381, %v3429
        %v3431 = vpop.f32.mrf.mxu0
        %v3432 = vadd.f32 %v3383, %v3431
        %3433 = vmatmul.bf16.gmra.mxu0 %v882
        %v3434 = vpop.f32.mrf.mxu0
        %v3435 = vadd.f32 %v3386, %v3434
        %v3436 = vpop.f32.mrf.mxu0
        %v3437 = vadd.f32 %v3388, %v3436
        %3438 = vmatmul.bf16.gmra.mxu0 %v889
        %v3439 = vpop.f32.mrf.mxu0
        %v3440 = vadd.f32 %v3391, %v3439
        %v3441 = vpop.f32.mrf.mxu0
        %v3442 = vadd.f32 %v3393, %v3441
        %3443 = vmatmul.bf16.gmra.mxu0 %v896
        %v3444 = vpop.f32.mrf.mxu0
        %v3445 = vadd.f32 %v3396, %v3444
        %v3446 = vpop.f32.mrf.mxu0
        %v3447 = vadd.f32 %v3398, %v3446
        %3448 = vmatmul.bf16.gmra.mxu0 %v903
        %v3449 = vpop.f32.mrf.mxu0
        %v3450 = vadd.f32 %v3401, %v3449
        %v3451 = vpop.f32.mrf.mxu0
        %v3452 = vadd.f32 %v3403, %v3451
        %3453 = vmatmul.bf16.gmra.mxu0 %v910
        %v3454 = vpop.f32.mrf.mxu0
        %v3455 = vadd.f32 %v3406, %v3454
        %v3456 = vpop.f32.mrf.mxu0
        %v3457 = vadd.f32 %v3408, %v3456
        %3458 = vdwg.mxu0
        %v3459 = vmax.f32 %v2391, 0.0
        %v3460 = vmax.f32 %v2734, 0.0
        %v3461 = vmax.f32 %v3077, 0.0
        %v3462 = vmax.f32 %v3420, 0.0
        %v3463 = vmax.f32 %v2393, 0.0
        %v3464 = vmax.f32 %v2736, 0.0
        %v3465 = vmax.f32 %v3079, 0.0
        %v3466 = vmax.f32 %v3422, 0.0
        %v3467 = vmax.f32 %v2396, 0.0
        %v3468 = vmax.f32 %v2739, 0.0
        %v3469 = vmax.f32 %v3082, 0.0
        %v3470 = vmax.f32 %v3425, 0.0
        %v3471 = vmax.f32 %v2398, 0.0
        %v3472 = vmax.f32 %v2741, 0.0
        %v3473 = vmax.f32 %v3084, 0.0
        %v3474 = vmax.f32 %v3427, 0.0
        %v3475 = vmax.f32 %v2401, 0.0
        %v3476 = vmax.f32 %v2744, 0.0
        %v3477 = vmax.f32 %v3087, 0.0
        %v3478 = vmax.f32 %v3430, 0.0
        %v3479 = vmax.f32 %v2403, 0.0
        %v3480 = vmax.f32 %v2746, 0.0
        %v3481 = vmax.f32 %v3089, 0.0
        %v3482 = vmax.f32 %v3432, 0.0
        %v3483 = vmax.f32 %v2406, 0.0
        %v3484 = vmax.f32 %v2749, 0.0
        %v3485 = vmax.f32 %v3092, 0.0
        %v3486 = vmax.f32 %v3435, 0.0
        %v3487 = vmax.f32 %v2408, 0.0
        %v3488 = vmax.f32 %v2751, 0.0
        %v3489 = vmax.f32 %v3094, 0.0
        %v3490 = vmax.f32 %v3437, 0.0
        %v3491 = vmax.f32 %v2411, 0.0
        %v3492 = vmax.f32 %v2754, 0.0
        %v3493 = vmax.f32 %v3097, 0.0
        %v3494 = vmax.f32 %v3440, 0.0
        %v3495 = vmax.f32 %v2413, 0.0
        %v3496 = vmax.f32 %v2756, 0.0
        %v3497 = vmax.f32 %v3099, 0.0
        %v3498 = vmax.f32 %v3442, 0.0
        %v3499 = vmax.f32 %v2416, 0.0
        %v3500 = vmax.f32 %v2759, 0.0
        %v3501 = vmax.f32 %v3102, 0.0
        %v3502 = vmax.f32 %v3445, 0.0
        %v3503 = vmax.f32 %v2418, 0.0
        %v3504 = vmax.f32 %v2761, 0.0
        %v3505 = vmax.f32 %v3104, 0.0
        %v3506 = vmax.f32 %v3447, 0.0
        %v3507 = vmax.f32 %v2421, 0.0
        %v3508 = vmax.f32 %v2764, 0.0
        %v3509 = vmax.f32 %v3107, 0.0
        %v3510 = vmax.f32 %v3450, 0.0
        %v3511 = vmax.f32 %v2423, 0.0
        %v3512 = vmax.f32 %v2766, 0.0
        %v3513 = vmax.f32 %v3109, 0.0
        %v3514 = vmax.f32 %v3452, 0.0
        %v3515 = vmax.f32 %v2426, 0.0
        %v3516 = vmax.f32 %v2769, 0.0
        %v3517 = vmax.f32 %v3112, 0.0
        %v3518 = vmax.f32 %v3455, 0.0
        %v3519 = vmax.f32 %v2428, 0.0
        %v3520 = vmax.f32 %v2771, 0.0
        %v3521 = vmax.f32 %v3114, 0.0
        %v3522 = vmax.f32 %v3457, 0.0
        %v3523 = vpack.c.bf16 %v3463, %v3459
        %v3524 = vpack.c.bf16 %v3464, %v3460
        %v3525 = vpack.c.bf16 %v3465, %v3461
        %v3526 = vpack.c.bf16 %v3466, %v3462
        %v3527 = vpack.c.bf16 %v3471, %v3467
        %v3528 = vpack.c.bf16 %v3472, %v3468
        %v3529 = vpack.c.bf16 %v3473, %v3469
        %v3530 = vpack.c.bf16 %v3474, %v3470
        %v3531 = vpack.c.bf16 %v3479, %v3475
        %v3532 = vpack.c.bf16 %v3480, %v3476
        %v3533 = vpack.c.bf16 %v3481, %v3477
        %v3534 = vpack.c.bf16 %v3482, %v3478
        %v3535 = vpack.c.bf16 %v3487, %v3483
        %v3536 = vpack.c.bf16 %v3488, %v3484
        %v3537 = vpack.c.bf16 %v3489, %v3485
        %v3538 = vpack.c.bf16 %v3490, %v3486
        %v3539 = vpack.c.bf16 %v3495, %v3491
        %v3540 = vpack.c.bf16 %v3496, %v3492
        %v3541 = vpack.c.bf16 %v3497, %v3493
        %v3542 = vpack.c.bf16 %v3498, %v3494
        %v3543 = vpack.c.bf16 %v3503, %v3499
        %v3544 = vpack.c.bf16 %v3504, %v3500
        %v3545 = vpack.c.bf16 %v3505, %v3501
        %v3546 = vpack.c.bf16 %v3506, %v3502
        %v3547 = vpack.c.bf16 %v3511, %v3507
        %v3548 = vpack.c.bf16 %v3512, %v3508
        %v3549 = vpack.c.bf16 %v3513, %v3509
        %v3550 = vpack.c.bf16 %v3514, %v3510
        %v3551 = vpack.c.bf16 %v3519, %v3515
        %v3552 = vpack.c.bf16 %v3520, %v3516
        %v3553 = vpack.c.bf16 %v3521, %v3517
        %v3554 = vpack.c.bf16 %v3522, %v3518
        %v3555 = vld [vmem:[#allocation8] sm:$0xff]
        %v3556 = vld [vmem:[#allocation8 + $0x8] sm:$0xff]
        %v3557 = vld [vmem:[#allocation8 + $0x10] sm:$0xff]
        %v3558 = vld [vmem:[#allocation8 + $0x18] sm:$0xff]
        %v3559 = vld [vmem:[#allocation8 + $0x20] sm:$0xff]
        %v3560 = vld [vmem:[#allocation8 + $0x28] sm:$0xff]
        %v3561 = vld [vmem:[#allocation8 + $0x30] sm:$0xff]
        %v3562 = vld [vmem:[#allocation8 + $0x38] sm:$0xff]
        %v3563 = vld [vmem:[#allocation8 + $0x40] sm:$0xff]
        %v3564 = vld [vmem:[#allocation8 + $0x48] sm:$0xff]
        %v3565 = vld [vmem:[#allocation8 + $0x50] sm:$0xff]
        %v3566 = vld [vmem:[#allocation8 + $0x58] sm:$0xff]
        %v3567 = vld [vmem:[#allocation8 + $0x60] sm:$0xff]
        %v3568 = vld [vmem:[#allocation8 + $0x68] sm:$0xff]
        %v3569 = vld [vmem:[#allocation8 + $0x70] sm:$0xff]
        %v3570 = vld [vmem:[#allocation8 + $0x78] sm:$0xff]
        %v3571 = vld [vmem:[#allocation8 + $0x80] sm:$0xff]
        %v3572 = vld [vmem:[#allocation8 + $0x88] sm:$0xff]
        %v3573 = vld [vmem:[#allocation8 + $0x90] sm:$0xff]
        %v3574 = vld [vmem:[#allocation8 + $0x98] sm:$0xff]
        %v3575 = vld [vmem:[#allocation8 + $0xa0] sm:$0xff]
        %v3576 = vld [vmem:[#allocation8 + $0xa8] sm:$0xff]
        %v3577 = vld [vmem:[#allocation8 + $0xb0] sm:$0xff]
        %v3578 = vld [vmem:[#allocation8 + $0xb8] sm:$0xff]
        %v3579 = vld [vmem:[#allocation8 + $0xc0] sm:$0xff]
        %v3580 = vld [vmem:[#allocation8 + $0xc8] sm:$0xff]
        %v3581 = vld [vmem:[#allocation8 + $0xd0] sm:$0xff]
        %v3582 = vld [vmem:[#allocation8 + $0xd8] sm:$0xff]
        %v3583 = vld [vmem:[#allocation8 + $0xe0] sm:$0xff]
        %v3584 = vld [vmem:[#allocation8 + $0xe8] sm:$0xff]
        %v3585 = vld [vmem:[#allocation8 + $0xf0] sm:$0xff]
        %v3586 = vld [vmem:[#allocation8 + $0xf8] sm:$0xff]
        %v3587 = vld [vmem:[#allocation8 + $0x100] sm:$0xff]
        %v3588 = vld [vmem:[#allocation8 + $0x108] sm:$0xff]
        %v3589 = vld [vmem:[#allocation8 + $0x110] sm:$0xff]
        %v3590 = vld [vmem:[#allocation8 + $0x118] sm:$0xff]
        %v3591 = vld [vmem:[#allocation8 + $0x120] sm:$0xff]
        %v3592 = vld [vmem:[#allocation8 + $0x128] sm:$0xff]
        %v3593 = vld [vmem:[#allocation8 + $0x130] sm:$0xff]
        %v3594 = vld [vmem:[#allocation8 + $0x138] sm:$0xff]
        %v3595 = vld [vmem:[#allocation8 + $0x140] sm:$0xff]
        %v3596 = vld [vmem:[#allocation8 + $0x148] sm:$0xff]
        %v3597 = vld [vmem:[#allocation8 + $0x150] sm:$0xff]
        %v3598 = vld [vmem:[#allocation8 + $0x158] sm:$0xff]
        %v3599 = vld [vmem:[#allocation8 + $0x160] sm:$0xff]
        %v3600 = vld [vmem:[#allocation8 + $0x168] sm:$0xff]
        %v3601 = vld [vmem:[#allocation8 + $0x170] sm:$0xff]
        %v3602 = vld [vmem:[#allocation8 + $0x178] sm:$0xff]
        %v3603 = vld [vmem:[#allocation8 + $0x180] sm:$0xff]
        %v3604 = vld [vmem:[#allocation8 + $0x188] sm:$0xff]
        %v3605 = vld [vmem:[#allocation8 + $0x190] sm:$0xff]
        %v3606 = vld [vmem:[#allocation8 + $0x198] sm:$0xff]
        %v3607 = vld [vmem:[#allocation8 + $0x1a0] sm:$0xff]
        %v3608 = vld [vmem:[#allocation8 + $0x1a8] sm:$0xff]
        %v3609 = vld [vmem:[#allocation8 + $0x1b0] sm:$0xff]
        %v3610 = vld [vmem:[#allocation8 + $0x1b8] sm:$0xff]
        %v3611 = vld [vmem:[#allocation8 + $0x1c0] sm:$0xff]
        %v3612 = vld [vmem:[#allocation8 + $0x1c8] sm:$0xff]
        %v3613 = vld [vmem:[#allocation8 + $0x1d0] sm:$0xff]
        %v3614 = vld [vmem:[#allocation8 + $0x1d8] sm:$0xff]
        %v3615 = vld [vmem:[#allocation8 + $0x1e0] sm:$0xff]
        %v3616 = vld [vmem:[#allocation8 + $0x1e8] sm:$0xff]
        %v3617 = vld [vmem:[#allocation8 + $0x1f0] sm:$0xff]
        %v3618 = vld [vmem:[#allocation8 + $0x1f8] sm:$0xff]
        %v3619 = vld [vmem:[#allocation8 + $0x200] sm:$0xff]
        %v3620 = vld [vmem:[#allocation8 + $0x208] sm:$0xff]
        %v3621 = vld [vmem:[#allocation8 + $0x210] sm:$0xff]
        %v3622 = vld [vmem:[#allocation8 + $0x218] sm:$0xff]
        %v3623 = vld [vmem:[#allocation8 + $0x220] sm:$0xff]
        %v3624 = vld [vmem:[#allocation8 + $0x228] sm:$0xff]
        %v3625 = vld [vmem:[#allocation8 + $0x230] sm:$0xff]
        %v3626 = vld [vmem:[#allocation8 + $0x238] sm:$0xff]
        %v3627 = vld [vmem:[#allocation8 + $0x240] sm:$0xff]
        %v3628 = vld [vmem:[#allocation8 + $0x248] sm:$0xff]
        %v3629 = vld [vmem:[#allocation8 + $0x250] sm:$0xff]
        %v3630 = vld [vmem:[#allocation8 + $0x258] sm:$0xff]
        %v3631 = vld [vmem:[#allocation8 + $0x260] sm:$0xff]
        %v3632 = vld [vmem:[#allocation8 + $0x268] sm:$0xff]
        %v3633 = vld [vmem:[#allocation8 + $0x270] sm:$0xff]
        %v3634 = vld [vmem:[#allocation8 + $0x278] sm:$0xff]
        %v3635 = vld [vmem:[#allocation8 + $0x280] sm:$0xff]
        %v3636 = vld [vmem:[#allocation8 + $0x288] sm:$0xff]
        %v3637 = vld [vmem:[#allocation8 + $0x290] sm:$0xff]
        %v3638 = vld [vmem:[#allocation8 + $0x298] sm:$0xff]
        %v3639 = vld [vmem:[#allocation8 + $0x2a0] sm:$0xff]
        %v3640 = vld [vmem:[#allocation8 + $0x2a8] sm:$0xff]
        %v3641 = vld [vmem:[#allocation8 + $0x2b0] sm:$0xff]
        %v3642 = vld [vmem:[#allocation8 + $0x2b8] sm:$0xff]
        %v3643 = vld [vmem:[#allocation8 + $0x2c0] sm:$0xff]
        %v3644 = vld [vmem:[#allocation8 + $0x2c8] sm:$0xff]
        %v3645 = vld [vmem:[#allocation8 + $0x2d0] sm:$0xff]
        %v3646 = vld [vmem:[#allocation8 + $0x2d8] sm:$0xff]
        %v3647 = vld [vmem:[#allocation8 + $0x2e0] sm:$0xff]
        %v3648 = vld [vmem:[#allocation8 + $0x2e8] sm:$0xff]
        %v3649 = vld [vmem:[#allocation8 + $0x2f0] sm:$0xff]
        %v3650 = vld [vmem:[#allocation8 + $0x2f8] sm:$0xff]
        %v3651 = vld [vmem:[#allocation8 + $0x300] sm:$0xff]
        %v3652 = vld [vmem:[#allocation8 + $0x308] sm:$0xff]
        %v3653 = vld [vmem:[#allocation8 + $0x310] sm:$0xff]
        %v3654 = vld [vmem:[#allocation8 + $0x318] sm:$0xff]
        %v3655 = vld [vmem:[#allocation8 + $0x320] sm:$0xff]
        %v3656 = vld [vmem:[#allocation8 + $0x328] sm:$0xff]
        %v3657 = vld [vmem:[#allocation8 + $0x330] sm:$0xff]
        %v3658 = vld [vmem:[#allocation8 + $0x338] sm:$0xff]
        %v3659 = vld [vmem:[#allocation8 + $0x340] sm:$0xff]
        %v3660 = vld [vmem:[#allocation8 + $0x348] sm:$0xff]
        %v3661 = vld [vmem:[#allocation8 + $0x350] sm:$0xff]
        %v3662 = vld [vmem:[#allocation8 + $0x358] sm:$0xff]
        %v3663 = vld [vmem:[#allocation8 + $0x360] sm:$0xff]
        %v3664 = vld [vmem:[#allocation8 + $0x368] sm:$0xff]
        %v3665 = vld [vmem:[#allocation8 + $0x370] sm:$0xff]
        %v3666 = vld [vmem:[#allocation8 + $0x378] sm:$0xff]
        %v3667 = vld [vmem:[#allocation8 + $0x380] sm:$0xff]
        %v3668 = vld [vmem:[#allocation8 + $0x388] sm:$0xff]
        %v3669 = vld [vmem:[#allocation8 + $0x390] sm:$0xff]
        %v3670 = vld [vmem:[#allocation8 + $0x398] sm:$0xff]
        %v3671 = vld [vmem:[#allocation8 + $0x3a0] sm:$0xff]
        %v3672 = vld [vmem:[#allocation8 + $0x3a8] sm:$0xff]
        %v3673 = vld [vmem:[#allocation8 + $0x3b0] sm:$0xff]
        %v3674 = vld [vmem:[#allocation8 + $0x3b8] sm:$0xff]
        %v3675 = vld [vmem:[#allocation8 + $0x3c0] sm:$0xff]
        %v3676 = vld [vmem:[#allocation8 + $0x3c8] sm:$0xff]
        %v3677 = vld [vmem:[#allocation8 + $0x3d0] sm:$0xff]
        %v3678 = vld [vmem:[#allocation8 + $0x3d8] sm:$0xff]
        %v3679 = vld [vmem:[#allocation8 + $0x3e0] sm:$0xff]
        %v3680 = vld [vmem:[#allocation8 + $0x3e8] sm:$0xff]
        %v3681 = vld [vmem:[#allocation8 + $0x3f0] sm:$0xff]
        %v3682 = vld [vmem:[#allocation8 + $0x3f8] sm:$0xff]
        %v3683 = vld [vmem:[#allocation10] sm:$0xf]
        %v3685 = vperm.slane %v3683, 0
        %v3686 = vperm.slane %v3683, 1
        %v3687 = vperm.slane %v3683, 2
        %v3688 = vperm.slane %v3683, 3
        %v3821 = vunpack.c.l.b16 %v3555
        %v3822 = vunpack.c.h.b16 %v3555
        %v3823 = vunpack.c.l.b16 %v3556
        %v3824 = vunpack.c.h.b16 %v3556
        %v3825 = vunpack.c.l.b16 %v3557
        %v3826 = vunpack.c.h.b16 %v3557
        %v3827 = vunpack.c.l.b16 %v3558
        %v3828 = vunpack.c.h.b16 %v3558
        %v3829 = vunpack.c.l.b16 %v3559
        %v3830 = vunpack.c.h.b16 %v3559
        %v3831 = vunpack.c.l.b16 %v3560
        %v3832 = vunpack.c.h.b16 %v3560
        %v3833 = vunpack.c.l.b16 %v3561
        %v3834 = vunpack.c.h.b16 %v3561
        %v3835 = vunpack.c.l.b16 %v3562
        %v3836 = vunpack.c.h.b16 %v3562
        %v3837 = vunpack.c.l.b16 %v3563
        %v3838 = vunpack.c.h.b16 %v3563
        %v3839 = vunpack.c.l.b16 %v3564
        %v3840 = vunpack.c.h.b16 %v3564
        %v3841 = vunpack.c.l.b16 %v3565
        %v3842 = vunpack.c.h.b16 %v3565
        %v3843 = vunpack.c.l.b16 %v3566
        %v3844 = vunpack.c.h.b16 %v3566
        %v3845 = vunpack.c.l.b16 %v3567
        %v3846 = vunpack.c.h.b16 %v3567
        %v3847 = vunpack.c.l.b16 %v3568
        %v3848 = vunpack.c.h.b16 %v3568
        %v3849 = vunpack.c.l.b16 %v3569
        %v3850 = vunpack.c.h.b16 %v3569
        %v3851 = vunpack.c.l.b16 %v3570
        %v3852 = vunpack.c.h.b16 %v3570
        %v3853 = vunpack.c.l.b16 %v3571
        %v3854 = vunpack.c.h.b16 %v3571
        %v3855 = vunpack.c.l.b16 %v3572
        %v3856 = vunpack.c.h.b16 %v3572
        %v3857 = vunpack.c.l.b16 %v3573
        %v3858 = vunpack.c.h.b16 %v3573
        %v3859 = vunpack.c.l.b16 %v3574
        %v3860 = vunpack.c.h.b16 %v3574
        %v3861 = vunpack.c.l.b16 %v3575
        %v3862 = vunpack.c.h.b16 %v3575
        %v3863 = vunpack.c.l.b16 %v3576
        %v3864 = vunpack.c.h.b16 %v3576
        %v3865 = vunpack.c.l.b16 %v3577
        %v3866 = vunpack.c.h.b16 %v3577
        %v3867 = vunpack.c.l.b16 %v3578
        %v3868 = vunpack.c.h.b16 %v3578
        %v3869 = vunpack.c.l.b16 %v3579
        %v3870 = vunpack.c.h.b16 %v3579
        %v3871 = vunpack.c.l.b16 %v3580
        %v3872 = vunpack.c.h.b16 %v3580
        %v3873 = vunpack.c.l.b16 %v3581
        %v3874 = vunpack.c.h.b16 %v3581
        %v3875 = vunpack.c.l.b16 %v3582
        %v3876 = vunpack.c.h.b16 %v3582
        %v3877 = vunpack.c.l.b16 %v3583
        %v3878 = vunpack.c.h.b16 %v3583
        %v3879 = vunpack.c.l.b16 %v3584
        %v3880 = vunpack.c.h.b16 %v3584
        %v3881 = vunpack.c.l.b16 %v3585
        %v3882 = vunpack.c.h.b16 %v3585
        %v3883 = vunpack.c.l.b16 %v3586
        %v3884 = vunpack.c.h.b16 %v3586
        %v3885 = vunpack.c.l.b16 %v3587
        %v3886 = vunpack.c.h.b16 %v3587
        %v3887 = vunpack.c.l.b16 %v3588
        %v3888 = vunpack.c.h.b16 %v3588
        %v3889 = vunpack.c.l.b16 %v3589
        %v3890 = vunpack.c.h.b16 %v3589
        %v3891 = vunpack.c.l.b16 %v3590
        %v3892 = vunpack.c.h.b16 %v3590
        %v3893 = vunpack.c.l.b16 %v3591
        %v3894 = vunpack.c.h.b16 %v3591
        %v3895 = vunpack.c.l.b16 %v3592
        %v3896 = vunpack.c.h.b16 %v3592
        %v3897 = vunpack.c.l.b16 %v3593
        %v3898 = vunpack.c.h.b16 %v3593
        %v3899 = vunpack.c.l.b16 %v3594
        %v3900 = vunpack.c.h.b16 %v3594
        %v3901 = vunpack.c.l.b16 %v3595
        %v3902 = vunpack.c.h.b16 %v3595
        %v3903 = vunpack.c.l.b16 %v3596
        %v3904 = vunpack.c.h.b16 %v3596
        %v3905 = vunpack.c.l.b16 %v3597
        %v3906 = vunpack.c.h.b16 %v3597
        %v3907 = vunpack.c.l.b16 %v3598
        %v3908 = vunpack.c.h.b16 %v3598
        %v3909 = vunpack.c.l.b16 %v3599
        %v3910 = vunpack.c.h.b16 %v3599
        %v3911 = vunpack.c.l.b16 %v3600
        %v3912 = vunpack.c.h.b16 %v3600
        %v3913 = vunpack.c.l.b16 %v3601
        %v3914 = vunpack.c.h.b16 %v3601
        %v3915 = vunpack.c.l.b16 %v3602
        %v3916 = vunpack.c.h.b16 %v3602
        %v3917 = vunpack.c.l.b16 %v3603
        %v3918 = vunpack.c.h.b16 %v3603
        %v3919 = vunpack.c.l.b16 %v3604
        %v3920 = vunpack.c.h.b16 %v3604
        %v3921 = vunpack.c.l.b16 %v3605
        %v3922 = vunpack.c.h.b16 %v3605
        %v3923 = vunpack.c.l.b16 %v3606
        %v3924 = vunpack.c.h.b16 %v3606
        %v3925 = vunpack.c.l.b16 %v3607
        %v3926 = vunpack.c.h.b16 %v3607
        %v3927 = vunpack.c.l.b16 %v3608
        %v3928 = vunpack.c.h.b16 %v3608
        %v3929 = vunpack.c.l.b16 %v3609
        %v3930 = vunpack.c.h.b16 %v3609
        %v3931 = vunpack.c.l.b16 %v3610
        %v3932 = vunpack.c.h.b16 %v3610
        %v3933 = vunpack.c.l.b16 %v3611
        %v3934 = vunpack.c.h.b16 %v3611
        %v3935 = vunpack.c.l.b16 %v3612
        %v3936 = vunpack.c.h.b16 %v3612
        %v3937 = vunpack.c.l.b16 %v3613
        %v3938 = vunpack.c.h.b16 %v3613
        %v3939 = vunpack.c.l.b16 %v3614
        %v3940 = vunpack.c.h.b16 %v3614
        %v3941 = vunpack.c.l.b16 %v3615
        %v3942 = vunpack.c.h.b16 %v3615
        %v3943 = vunpack.c.l.b16 %v3616
        %v3944 = vunpack.c.h.b16 %v3616
        %v3945 = vunpack.c.l.b16 %v3617
        %v3946 = vunpack.c.h.b16 %v3617
        %v3947 = vunpack.c.l.b16 %v3618
        %v3948 = vunpack.c.h.b16 %v3618
        %v3949 = vunpack.c.l.b16 %v3619
        %v3950 = vunpack.c.h.b16 %v3619
        %v3951 = vunpack.c.l.b16 %v3620
        %v3952 = vunpack.c.h.b16 %v3620
        %v3953 = vunpack.c.l.b16 %v3621
        %v3954 = vunpack.c.h.b16 %v3621
        %v3955 = vunpack.c.l.b16 %v3622
        %v3956 = vunpack.c.h.b16 %v3622
        %v3957 = vunpack.c.l.b16 %v3623
        %v3958 = vunpack.c.h.b16 %v3623
        %v3959 = vunpack.c.l.b16 %v3624
        %v3960 = vunpack.c.h.b16 %v3624
        %v3961 = vunpack.c.l.b16 %v3625
        %v3962 = vunpack.c.h.b16 %v3625
        %v3963 = vunpack.c.l.b16 %v3626
        %v3964 = vunpack.c.h.b16 %v3626
        %v3965 = vunpack.c.l.b16 %v3627
        %v3966 = vunpack.c.h.b16 %v3627
        %v3967 = vunpack.c.l.b16 %v3628
        %v3968 = vunpack.c.h.b16 %v3628
        %v3969 = vunpack.c.l.b16 %v3629
        %v3970 = vunpack.c.h.b16 %v3629
        %v3971 = vunpack.c.l.b16 %v3630
        %v3972 = vunpack.c.h.b16 %v3630
        %v3973 = vunpack.c.l.b16 %v3631
        %v3974 = vunpack.c.h.b16 %v3631
        %v3975 = vunpack.c.l.b16 %v3632
        %v3976 = vunpack.c.h.b16 %v3632
        %v3977 = vunpack.c.l.b16 %v3633
        %v3978 = vunpack.c.h.b16 %v3633
        %v3979 = vunpack.c.l.b16 %v3634
        %v3980 = vunpack.c.h.b16 %v3634
        %v3981 = vunpack.c.l.b16 %v3635
        %v3982 = vunpack.c.h.b16 %v3635
        %v3983 = vunpack.c.l.b16 %v3636
        %v3984 = vunpack.c.h.b16 %v3636
        %v3985 = vunpack.c.l.b16 %v3637
        %v3986 = vunpack.c.h.b16 %v3637
        %v3987 = vunpack.c.l.b16 %v3638
        %v3988 = vunpack.c.h.b16 %v3638
        %v3989 = vunpack.c.l.b16 %v3639
        %v3990 = vunpack.c.h.b16 %v3639
        %v3991 = vunpack.c.l.b16 %v3640
        %v3992 = vunpack.c.h.b16 %v3640
        %v3993 = vunpack.c.l.b16 %v3641
        %v3994 = vunpack.c.h.b16 %v3641
        %v3995 = vunpack.c.l.b16 %v3642
        %v3996 = vunpack.c.h.b16 %v3642
        %v3997 = vunpack.c.l.b16 %v3643
        %v3998 = vunpack.c.h.b16 %v3643
        %v3999 = vunpack.c.l.b16 %v3644
        %v4000 = vunpack.c.h.b16 %v3644
        %v4001 = vunpack.c.l.b16 %v3645
        %v4002 = vunpack.c.h.b16 %v3645
        %v4003 = vunpack.c.l.b16 %v3646
        %v4004 = vunpack.c.h.b16 %v3646
        %v4005 = vunpack.c.l.b16 %v3647
        %v4006 = vunpack.c.h.b16 %v3647
        %v4007 = vunpack.c.l.b16 %v3648
        %v4008 = vunpack.c.h.b16 %v3648
        %v4009 = vunpack.c.l.b16 %v3649
        %v4010 = vunpack.c.h.b16 %v3649
        %v4011 = vunpack.c.l.b16 %v3650
        %v4012 = vunpack.c.h.b16 %v3650
        %v4013 = vunpack.c.l.b16 %v3651
        %v4014 = vunpack.c.h.b16 %v3651
        %v4015 = vunpack.c.l.b16 %v3652
        %v4016 = vunpack.c.h.b16 %v3652
        %v4017 = vunpack.c.l.b16 %v3653
        %v4018 = vunpack.c.h.b16 %v3653
        %v4019 = vunpack.c.l.b16 %v3654
        %v4020 = vunpack.c.h.b16 %v3654
        %v4021 = vunpack.c.l.b16 %v3655
        %v4022 = vunpack.c.h.b16 %v3655
        %v4023 = vunpack.c.l.b16 %v3656
        %v4024 = vunpack.c.h.b16 %v3656
        %v4025 = vunpack.c.l.b16 %v3657
        %v4026 = vunpack.c.h.b16 %v3657
        %v4027 = vunpack.c.l.b16 %v3658
        %v4028 = vunpack.c.h.b16 %v3658
        %v4029 = vunpack.c.l.b16 %v3659
        %v4030 = vunpack.c.h.b16 %v3659
        %v4031 = vunpack.c.l.b16 %v3660
        %v4032 = vunpack.c.h.b16 %v3660
        %v4033 = vunpack.c.l.b16 %v3661
        %v4034 = vunpack.c.h.b16 %v3661
        %v4035 = vunpack.c.l.b16 %v3662
        %v4036 = vunpack.c.h.b16 %v3662
        %v4037 = vunpack.c.l.b16 %v3663
        %v4038 = vunpack.c.h.b16 %v3663
        %v4039 = vunpack.c.l.b16 %v3664
        %v4040 = vunpack.c.h.b16 %v3664
        %v4041 = vunpack.c.l.b16 %v3665
        %v4042 = vunpack.c.h.b16 %v3665
        %v4043 = vunpack.c.l.b16 %v3666
        %v4044 = vunpack.c.h.b16 %v3666
        %v4045 = vunpack.c.l.b16 %v3667
        %v4046 = vunpack.c.h.b16 %v3667
        %v4047 = vunpack.c.l.b16 %v3668
        %v4048 = vunpack.c.h.b16 %v3668
        %v4049 = vunpack.c.l.b16 %v3669
        %v4050 = vunpack.c.h.b16 %v3669
        %v4051 = vunpack.c.l.b16 %v3670
        %v4052 = vunpack.c.h.b16 %v3670
        %v4053 = vunpack.c.l.b16 %v3671
        %v4054 = vunpack.c.h.b16 %v3671
        %v4055 = vunpack.c.l.b16 %v3672
        %v4056 = vunpack.c.h.b16 %v3672
        %v4057 = vunpack.c.l.b16 %v3673
        %v4058 = vunpack.c.h.b16 %v3673
        %v4059 = vunpack.c.l.b16 %v3674
        %v4060 = vunpack.c.h.b16 %v3674
        %v4061 = vunpack.c.l.b16 %v3675
        %v4062 = vunpack.c.h.b16 %v3675
        %v4063 = vunpack.c.l.b16 %v3676
        %v4064 = vunpack.c.h.b16 %v3676
        %v4065 = vunpack.c.l.b16 %v3677
        %v4066 = vunpack.c.h.b16 %v3677
        %v4067 = vunpack.c.l.b16 %v3678
        %v4068 = vunpack.c.h.b16 %v3678
        %v4069 = vunpack.c.l.b16 %v3679
        %v4070 = vunpack.c.h.b16 %v3679
        %v4071 = vunpack.c.l.b16 %v3680
        %v4072 = vunpack.c.h.b16 %v3680
        %v4073 = vunpack.c.l.b16 %v3681
        %v4074 = vunpack.c.h.b16 %v3681
        %v4075 = vunpack.c.l.b16 %v3682
        %v4076 = vunpack.c.h.b16 %v3682
        %v4077 = vpack.c.b16 %v3825, %v3821
        %v4078 = vpack.c.b16 %v3826, %v3822
        %v4079 = vpack.c.b16 %v3827, %v3823
        %v4080 = vpack.c.b16 %v3828, %v3824
        %v4081 = vpack.c.b16 %v3833, %v3829
        %v4082 = vpack.c.b16 %v3834, %v3830
        %v4083 = vpack.c.b16 %v3835, %v3831
        %v4084 = vpack.c.b16 %v3836, %v3832
        %v4085 = vpack.c.b16 %v3841, %v3837
        %v4086 = vpack.c.b16 %v3842, %v3838
        %v4087 = vpack.c.b16 %v3843, %v3839
        %v4088 = vpack.c.b16 %v3844, %v3840
        %v4089 = vpack.c.b16 %v3849, %v3845
        %v4090 = vpack.c.b16 %v3850, %v3846
        %v4091 = vpack.c.b16 %v3851, %v3847
        %v4092 = vpack.c.b16 %v3852, %v3848
        %v4093 = vpack.c.b16 %v3857, %v3853
        %v4094 = vpack.c.b16 %v3858, %v3854
        %v4095 = vpack.c.b16 %v3859, %v3855
        %v4096 = vpack.c.b16 %v3860, %v3856
        %v4097 = vpack.c.b16 %v3865, %v3861
        %v4098 = vpack.c.b16 %v3866, %v3862
        %v4099 = vpack.c.b16 %v3867, %v3863
        %v4100 = vpack.c.b16 %v3868, %v3864
        %v4101 = vpack.c.b16 %v3873, %v3869
        %v4102 = vpack.c.b16 %v3874, %v3870
        %v4103 = vpack.c.b16 %v3875, %v3871
        %v4104 = vpack.c.b16 %v3876, %v3872
        %v4105 = vpack.c.b16 %v3881, %v3877
        %v4106 = vpack.c.b16 %v3882, %v3878
        %v4107 = vpack.c.b16 %v3883, %v3879
        %v4108 = vpack.c.b16 %v3884, %v3880
        %v4109 = vpack.c.b16 %v3889, %v3885
        %v4110 = vpack.c.b16 %v3890, %v3886
        %v4111 = vpack.c.b16 %v3891, %v3887
        %v4112 = vpack.c.b16 %v3892, %v3888
        %v4113 = vpack.c.b16 %v3897, %v3893
        %v4114 = vpack.c.b16 %v3898, %v3894
        %v4115 = vpack.c.b16 %v3899, %v3895
        %v4116 = vpack.c.b16 %v3900, %v3896
        %v4117 = vpack.c.b16 %v3905, %v3901
        %v4118 = vpack.c.b16 %v3906, %v3902
        %v4119 = vpack.c.b16 %v3907, %v3903
        %v4120 = vpack.c.b16 %v3908, %v3904
        %v4121 = vpack.c.b16 %v3913, %v3909
        %v4122 = vpack.c.b16 %v3914, %v3910
        %v4123 = vpack.c.b16 %v3915, %v3911
        %v4124 = vpack.c.b16 %v3916, %v3912
        %v4125 = vpack.c.b16 %v3921, %v3917
        %v4126 = vpack.c.b16 %v3922, %v3918
        %v4127 = vpack.c.b16 %v3923, %v3919
        %v4128 = vpack.c.b16 %v3924, %v3920
        %v4129 = vpack.c.b16 %v3929, %v3925
        %v4130 = vpack.c.b16 %v3930, %v3926
        %v4131 = vpack.c.b16 %v3931, %v3927
        %v4132 = vpack.c.b16 %v3932, %v3928
        %v4133 = vpack.c.b16 %v3937, %v3933
        %v4134 = vpack.c.b16 %v3938, %v3934
        %v4135 = vpack.c.b16 %v3939, %v3935
        %v4136 = vpack.c.b16 %v3940, %v3936
        %v4137 = vpack.c.b16 %v3945, %v3941
        %v4138 = vpack.c.b16 %v3946, %v3942
        %v4139 = vpack.c.b16 %v3947, %v3943
        %v4140 = vpack.c.b16 %v3948, %v3944
        %v4141 = vpack.c.b16 %v3953, %v3949
        %v4142 = vpack.c.b16 %v3954, %v3950
        %v4143 = vpack.c.b16 %v3955, %v3951
        %v4144 = vpack.c.b16 %v3956, %v3952
        %v4145 = vpack.c.b16 %v3961, %v3957
        %v4146 = vpack.c.b16 %v3962, %v3958
        %v4147 = vpack.c.b16 %v3963, %v3959
        %v4148 = vpack.c.b16 %v3964, %v3960
        %v4149 = vpack.c.b16 %v3969, %v3965
        %v4150 = vpack.c.b16 %v3970, %v3966
        %v4151 = vpack.c.b16 %v3971, %v3967
        %v4152 = vpack.c.b16 %v3972, %v3968
        %v4153 = vpack.c.b16 %v3977, %v3973
        %v4154 = vpack.c.b16 %v3978, %v3974
        %v4155 = vpack.c.b16 %v3979, %v3975
        %v4156 = vpack.c.b16 %v3980, %v3976
        %v4157 = vpack.c.b16 %v3985, %v3981
        %v4158 = vpack.c.b16 %v3986, %v3982
        %v4159 = vpack.c.b16 %v3987, %v3983
        %v4160 = vpack.c.b16 %v3988, %v3984
        %v4161 = vpack.c.b16 %v3993, %v3989
        %v4162 = vpack.c.b16 %v3994, %v3990
        %v4163 = vpack.c.b16 %v3995, %v3991
        %v4164 = vpack.c.b16 %v3996, %v3992
        %v4165 = vpack.c.b16 %v4001, %v3997
        %v4166 = vpack.c.b16 %v4002, %v3998
        %v4167 = vpack.c.b16 %v4003, %v3999
        %v4168 = vpack.c.b16 %v4004, %v4000
        %v4169 = vpack.c.b16 %v4009, %v4005
        %v4170 = vpack.c.b16 %v4010, %v4006
        %v4171 = vpack.c.b16 %v4011, %v4007
        %v4172 = vpack.c.b16 %v4012, %v4008
        %v4173 = vpack.c.b16 %v4017, %v4013
        %v4174 = vpack.c.b16 %v4018, %v4014
        %v4175 = vpack.c.b16 %v4019, %v4015
        %v4176 = vpack.c.b16 %v4020, %v4016
        %v4177 = vpack.c.b16 %v4025, %v4021
        %v4178 = vpack.c.b16 %v4026, %v4022
        %v4179 = vpack.c.b16 %v4027, %v4023
        %v4180 = vpack.c.b16 %v4028, %v4024
        %v4181 = vpack.c.b16 %v4033, %v4029
        %v4182 = vpack.c.b16 %v4034, %v4030
        %v4183 = vpack.c.b16 %v4035, %v4031
        %v4184 = vpack.c.b16 %v4036, %v4032
        %v4185 = vpack.c.b16 %v4041, %v4037
        %v4186 = vpack.c.b16 %v4042, %v4038
        %v4187 = vpack.c.b16 %v4043, %v4039
        %v4188 = vpack.c.b16 %v4044, %v4040
        %v4189 = vpack.c.b16 %v4049, %v4045
        %v4190 = vpack.c.b16 %v4050, %v4046
        %v4191 = vpack.c.b16 %v4051, %v4047
        %v4192 = vpack.c.b16 %v4052, %v4048
        %v4193 = vpack.c.b16 %v4057, %v4053
        %v4194 = vpack.c.b16 %v4058, %v4054
        %v4195 = vpack.c.b16 %v4059, %v4055
        %v4196 = vpack.c.b16 %v4060, %v4056
        %v4197 = vpack.c.b16 %v4065, %v4061
        %v4198 = vpack.c.b16 %v4066, %v4062
        %v4199 = vpack.c.b16 %v4067, %v4063
        %v4200 = vpack.c.b16 %v4068, %v4064
        %v4201 = vpack.c.b16 %v4073, %v4069
        %v4202 = vpack.c.b16 %v4074, %v4070
        %v4203 = vpack.c.b16 %v4075, %v4071
        %v4204 = vpack.c.b16 %v4076, %v4072
        %4333 = vmatpush.bf16.msra.mxu0 %v4105
        %4334 = vmatpush.bf16.msra.mxu0 %v4101
        %4335 = vmatpush.bf16.msra.mxu0 %v4097
        %4336 = vmatpush.bf16.msra.mxu0 %v4093
        %4337 = vmatpush.bf16.msra.mxu0 %v4089
        %4338 = vmatpush.bf16.msra.mxu0 %v4085
        %4339 = vmatpush.bf16.msra.mxu0 %v4081
        %4340 = vmatpush.bf16.msra.mxu0 %v4077
        %4341 = vmatmul.bf16.gmra.mxu0 %v3523
        %v4342 = vpop.f32.mrf.mxu0
        %v4343 = vadd.f32 %v3685, %v4342
        %v4344 = vpop.f32.mrf.mxu0
        %v4345 = vadd.f32 %v3685, %v4344
        %4346 = vmatmul.bf16.gmra.mxu0 %v3527
        %v4347 = vpop.f32.mrf.mxu0
        %v4348 = vadd.f32 %v3685, %v4347
        %v4349 = vpop.f32.mrf.mxu0
        %v4350 = vadd.f32 %v3685, %v4349
        %4351 = vmatmul.bf16.gmra.mxu0 %v3531
        %v4352 = vpop.f32.mrf.mxu0
        %v4353 = vadd.f32 %v3685, %v4352
        %v4354 = vpop.f32.mrf.mxu0
        %v4355 = vadd.f32 %v3685, %v4354
        %4356 = vmatmul.bf16.gmra.mxu0 %v3535
        %v4357 = vpop.f32.mrf.mxu0
        %v4358 = vadd.f32 %v3685, %v4357
        %v4359 = vpop.f32.mrf.mxu0
        %v4360 = vadd.f32 %v3685, %v4359
        %4361 = vmatmul.bf16.gmra.mxu0 %v3539
        %v4362 = vpop.f32.mrf.mxu0
        %v4363 = vadd.f32 %v3685, %v4362
        %v4364 = vpop.f32.mrf.mxu0
        %v4365 = vadd.f32 %v3685, %v4364
        %4366 = vmatmul.bf16.gmra.mxu0 %v3543
        %v4367 = vpop.f32.mrf.mxu0
        %v4368 = vadd.f32 %v3685, %v4367
        %v4369 = vpop.f32.mrf.mxu0
        %v4370 = vadd.f32 %v3685, %v4369
        %4371 = vmatmul.bf16.gmra.mxu0 %v3547
        %v4372 = vpop.f32.mrf.mxu0
        %v4373 = vadd.f32 %v3685, %v4372
        %v4374 = vpop.f32.mrf.mxu0
        %v4375 = vadd.f32 %v3685, %v4374
        %4376 = vmatmul.bf16.gmra.mxu0 %v3551
        %v4377 = vpop.f32.mrf.mxu0
        %v4378 = vadd.f32 %v3685, %v4377
        %v4379 = vpop.f32.mrf.mxu0
        %v4380 = vadd.f32 %v3685, %v4379
        %4381 = vdwg.mxu0
        %4382 = vmatpush.bf16.msra.mxu0 %v4137
        %4383 = vmatpush.bf16.msra.mxu0 %v4133
        %4384 = vmatpush.bf16.msra.mxu0 %v4129
        %4385 = vmatpush.bf16.msra.mxu0 %v4125
        %4386 = vmatpush.bf16.msra.mxu0 %v4121
        %4387 = vmatpush.bf16.msra.mxu0 %v4117
        %4388 = vmatpush.bf16.msra.mxu0 %v4113
        %4389 = vmatpush.bf16.msra.mxu0 %v4109
        %4390 = vmatmul.bf16.gmra.mxu0 %v3524
        %v4391 = vpop.f32.mrf.mxu0
        %v4392 = vadd.f32 %v4343, %v4391
        %v4393 = vpop.f32.mrf.mxu0
        %v4394 = vadd.f32 %v4345, %v4393
        %4395 = vmatmul.bf16.gmra.mxu0 %v3528
        %v4396 = vpop.f32.mrf.mxu0
        %v4397 = vadd.f32 %v4348, %v4396
        %v4398 = vpop.f32.mrf.mxu0
        %v4399 = vadd.f32 %v4350, %v4398
        %4400 = vmatmul.bf16.gmra.mxu0 %v3532
        %v4401 = vpop.f32.mrf.mxu0
        %v4402 = vadd.f32 %v4353, %v4401
        %v4403 = vpop.f32.mrf.mxu0
        %v4404 = vadd.f32 %v4355, %v4403
        %4405 = vmatmul.bf16.gmra.mxu0 %v3536
        %v4406 = vpop.f32.mrf.mxu0
        %v4407 = vadd.f32 %v4358, %v4406
        %v4408 = vpop.f32.mrf.mxu0
        %v4409 = vadd.f32 %v4360, %v4408
        %4410 = vmatmul.bf16.gmra.mxu0 %v3540
        %v4411 = vpop.f32.mrf.mxu0
        %v4412 = vadd.f32 %v4363, %v4411
        %v4413 = vpop.f32.mrf.mxu0
        %v4414 = vadd.f32 %v4365, %v4413
        %4415 = vmatmul.bf16.gmra.mxu0 %v3544
        %v4416 = vpop.f32.mrf.mxu0
        %v4417 = vadd.f32 %v4368, %v4416
        %v4418 = vpop.f32.mrf.mxu0
        %v4419 = vadd.f32 %v4370, %v4418
        %4420 = vmatmul.bf16.gmra.mxu0 %v3548
        %v4421 = vpop.f32.mrf.mxu0
        %v4422 = vadd.f32 %v4373, %v4421
        %v4423 = vpop.f32.mrf.mxu0
        %v4424 = vadd.f32 %v4375, %v4423
        %4425 = vmatmul.bf16.gmra.mxu0 %v3552
        %v4426 = vpop.f32.mrf.mxu0
        %v4427 = vadd.f32 %v4378, %v4426
        %v4428 = vpop.f32.mrf.mxu0
        %v4429 = vadd.f32 %v4380, %v4428
        %4430 = vdwg.mxu0
        %4431 = vmatpush.bf16.msra.mxu0 %v4169
        %4432 = vmatpush.bf16.msra.mxu0 %v4165
        %4433 = vmatpush.bf16.msra.mxu0 %v4161
        %4434 = vmatpush.bf16.msra.mxu0 %v4157
        %4435 = vmatpush.bf16.msra.mxu0 %v4153
        %4436 = vmatpush.bf16.msra.mxu0 %v4149
        %4437 = vmatpush.bf16.msra.mxu0 %v4145
        %4438 = vmatpush.bf16.msra.mxu0 %v4141
        %4439 = vmatmul.bf16.gmra.mxu0 %v3525
        %v4440 = vpop.f32.mrf.mxu0
        %v4441 = vadd.f32 %v4392, %v4440
        %v4442 = vpop.f32.mrf.mxu0
        %v4443 = vadd.f32 %v4394, %v4442
        %4444 = vmatmul.bf16.gmra.mxu0 %v3529
        %v4445 = vpop.f32.mrf.mxu0
        %v4446 = vadd.f32 %v4397, %v4445
        %v4447 = vpop.f32.mrf.mxu0
        %v4448 = vadd.f32 %v4399, %v4447
        %4449 = vmatmul.bf16.gmra.mxu0 %v3533
        %v4450 = vpop.f32.mrf.mxu0
        %v4451 = vadd.f32 %v4402, %v4450
        %v4452 = vpop.f32.mrf.mxu0
        %v4453 = vadd.f32 %v4404, %v4452
        %4454 = vmatmul.bf16.gmra.mxu0 %v3537
        %v4455 = vpop.f32.mrf.mxu0
        %v4456 = vadd.f32 %v4407, %v4455
        %v4457 = vpop.f32.mrf.mxu0
        %v4458 = vadd.f32 %v4409, %v4457
        %4459 = vmatmul.bf16.gmra.mxu0 %v3541
        %v4460 = vpop.f32.mrf.mxu0
        %v4461 = vadd.f32 %v4412, %v4460
        %v4462 = vpop.f32.mrf.mxu0
        %v4463 = vadd.f32 %v4414, %v4462
        %4464 = vmatmul.bf16.gmra.mxu0 %v3545
        %v4465 = vpop.f32.mrf.mxu0
        %v4466 = vadd.f32 %v4417, %v4465
        %v4467 = vpop.f32.mrf.mxu0
        %v4468 = vadd.f32 %v4419, %v4467
        %4469 = vmatmul.bf16.gmra.mxu0 %v3549
        %v4470 = vpop.f32.mrf.mxu0
        %v4471 = vadd.f32 %v4422, %v4470
        %v4472 = vpop.f32.mrf.mxu0
        %v4473 = vadd.f32 %v4424, %v4472
        %4474 = vmatmul.bf16.gmra.mxu0 %v3553
        %v4475 = vpop.f32.mrf.mxu0
        %v4476 = vadd.f32 %v4427, %v4475
        %v4477 = vpop.f32.mrf.mxu0
        %v4478 = vadd.f32 %v4429, %v4477
        %4479 = vdwg.mxu0
        %4480 = vmatpush.bf16.msra.mxu0 %v4201
        %4481 = vmatpush.bf16.msra.mxu0 %v4197
        %4482 = vmatpush.bf16.msra.mxu0 %v4193
        %4483 = vmatpush.bf16.msra.mxu0 %v4189
        %4484 = vmatpush.bf16.msra.mxu0 %v4185
        %4485 = vmatpush.bf16.msra.mxu0 %v4181
        %4486 = vmatpush.bf16.msra.mxu0 %v4177
        %4487 = vmatpush.bf16.msra.mxu0 %v4173
        %4488 = vmatmul.bf16.gmra.mxu0 %v3526
        %v4489 = vpop.f32.mrf.mxu0
        %v4490 = vadd.f32 %v4441, %v4489
        %v4491 = vpop.f32.mrf.mxu0
        %v4492 = vadd.f32 %v4443, %v4491
        %4493 = vmatmul.bf16.gmra.mxu0 %v3530
        %v4494 = vpop.f32.mrf.mxu0
        %v4495 = vadd.f32 %v4446, %v4494
        %v4496 = vpop.f32.mrf.mxu0
        %v4497 = vadd.f32 %v4448, %v4496
        %4498 = vmatmul.bf16.gmra.mxu0 %v3534
        %v4499 = vpop.f32.mrf.mxu0
        %v4500 = vadd.f32 %v4451, %v4499
        %v4501 = vpop.f32.mrf.mxu0
        %v4502 = vadd.f32 %v4453, %v4501
        %4503 = vmatmul.bf16.gmra.mxu0 %v3538
        %v4504 = vpop.f32.mrf.mxu0
        %v4505 = vadd.f32 %v4456, %v4504
        %v4506 = vpop.f32.mrf.mxu0
        %v4507 = vadd.f32 %v4458, %v4506
        %4508 = vmatmul.bf16.gmra.mxu0 %v3542
        %v4509 = vpop.f32.mrf.mxu0
        %v4510 = vadd.f32 %v4461, %v4509
        %v4511 = vpop.f32.mrf.mxu0
        %v4512 = vadd.f32 %v4463, %v4511
        %4513 = vmatmul.bf16.gmra.mxu0 %v3546
        %v4514 = vpop.f32.mrf.mxu0
        %v4515 = vadd.f32 %v4466, %v4514
        %v4516 = vpop.f32.mrf.mxu0
        %v4517 = vadd.f32 %v4468, %v4516
        %4518 = vmatmul.bf16.gmra.mxu0 %v3550
        %v4519 = vpop.f32.mrf.mxu0
        %v4520 = vadd.f32 %v4471, %v4519
        %v4521 = vpop.f32.mrf.mxu0
        %v4522 = vadd.f32 %v4473, %v4521
        %4523 = vmatmul.bf16.gmra.mxu0 %v3554
        %v4524 = vpop.f32.mrf.mxu0
        %v4525 = vadd.f32 %v4476, %v4524
        %v4526 = vpop.f32.mrf.mxu0
        %v4527 = vadd.f32 %v4478, %v4526
        %4528 = vdwg.mxu0
        %4529 = vmatpush.bf16.msra.mxu0 %v4106
        %4530 = vmatpush.bf16.msra.mxu0 %v4102
        %4531 = vmatpush.bf16.msra.mxu0 %v4098
        %4532 = vmatpush.bf16.msra.mxu0 %v4094
        %4533 = vmatpush.bf16.msra.mxu0 %v4090
        %4534 = vmatpush.bf16.msra.mxu0 %v4086
        %4535 = vmatpush.bf16.msra.mxu0 %v4082
        %4536 = vmatpush.bf16.msra.mxu0 %v4078
        %4537 = vmatmul.bf16.gmra.mxu0 %v3523
        %v4538 = vpop.f32.mrf.mxu0
        %v4539 = vadd.f32 %v3686, %v4538
        %v4540 = vpop.f32.mrf.mxu0
        %v4541 = vadd.f32 %v3686, %v4540
        %4542 = vmatmul.bf16.gmra.mxu0 %v3527
        %v4543 = vpop.f32.mrf.mxu0
        %v4544 = vadd.f32 %v3686, %v4543
        %v4545 = vpop.f32.mrf.mxu0
        %v4546 = vadd.f32 %v3686, %v4545
        %4547 = vmatmul.bf16.gmra.mxu0 %v3531
        %v4548 = vpop.f32.mrf.mxu0
        %v4549 = vadd.f32 %v3686, %v4548
        %v4550 = vpop.f32.mrf.mxu0
        %v4551 = vadd.f32 %v3686, %v4550
        %4552 = vmatmul.bf16.gmra.mxu0 %v3535
        %v4553 = vpop.f32.mrf.mxu0
        %v4554 = vadd.f32 %v3686, %v4553
        %v4555 = vpop.f32.mrf.mxu0
        %v4556 = vadd.f32 %v3686, %v4555
        %4557 = vmatmul.bf16.gmra.mxu0 %v3539
        %v4558 = vpop.f32.mrf.mxu0
        %v4559 = vadd.f32 %v3686, %v4558
        %v4560 = vpop.f32.mrf.mxu0
        %v4561 = vadd.f32 %v3686, %v4560
        %4562 = vmatmul.bf16.gmra.mxu0 %v3543
        %v4563 = vpop.f32.mrf.mxu0
        %v4564 = vadd.f32 %v3686, %v4563
        %v4565 = vpop.f32.mrf.mxu0
        %v4566 = vadd.f32 %v3686, %v4565
        %4567 = vmatmul.bf16.gmra.mxu0 %v3547
        %v4568 = vpop.f32.mrf.mxu0
        %v4569 = vadd.f32 %v3686, %v4568
        %v4570 = vpop.f32.mrf.mxu0
        %v4571 = vadd.f32 %v3686, %v4570
        %4572 = vmatmul.bf16.gmra.mxu0 %v3551
        %v4573 = vpop.f32.mrf.mxu0
        %v4574 = vadd.f32 %v3686, %v4573
        %v4575 = vpop.f32.mrf.mxu0
        %v4576 = vadd.f32 %v3686, %v4575
        %4577 = vdwg.mxu0
        %4578 = vmatpush.bf16.msra.mxu0 %v4138
        %4579 = vmatpush.bf16.msra.mxu0 %v4134
        %4580 = vmatpush.bf16.msra.mxu0 %v4130
        %4581 = vmatpush.bf16.msra.mxu0 %v4126
        %4582 = vmatpush.bf16.msra.mxu0 %v4122
        %4583 = vmatpush.bf16.msra.mxu0 %v4118
        %4584 = vmatpush.bf16.msra.mxu0 %v4114
        %4585 = vmatpush.bf16.msra.mxu0 %v4110
        %4586 = vmatmul.bf16.gmra.mxu0 %v3524
        %v4587 = vpop.f32.mrf.mxu0
        %v4588 = vadd.f32 %v4539, %v4587
        %v4589 = vpop.f32.mrf.mxu0
        %v4590 = vadd.f32 %v4541, %v4589
        %4591 = vmatmul.bf16.gmra.mxu0 %v3528
        %v4592 = vpop.f32.mrf.mxu0
        %v4593 = vadd.f32 %v4544, %v4592
        %v4594 = vpop.f32.mrf.mxu0
        %v4595 = vadd.f32 %v4546, %v4594
        %4596 = vmatmul.bf16.gmra.mxu0 %v3532
        %v4597 = vpop.f32.mrf.mxu0
        %v4598 = vadd.f32 %v4549, %v4597
        %v4599 = vpop.f32.mrf.mxu0
        %v4600 = vadd.f32 %v4551, %v4599
        %4601 = vmatmul.bf16.gmra.mxu0 %v3536
        %v4602 = vpop.f32.mrf.mxu0
        %v4603 = vadd.f32 %v4554, %v4602
        %v4604 = vpop.f32.mrf.mxu0
        %v4605 = vadd.f32 %v4556, %v4604
        %4606 = vmatmul.bf16.gmra.mxu0 %v3540
        %v4607 = vpop.f32.mrf.mxu0
        %v4608 = vadd.f32 %v4559, %v4607
        %v4609 = vpop.f32.mrf.mxu0
        %v4610 = vadd.f32 %v4561, %v4609
        %4611 = vmatmul.bf16.gmra.mxu0 %v3544
        %v4612 = vpop.f32.mrf.mxu0
        %v4613 = vadd.f32 %v4564, %v4612
        %v4614 = vpop.f32.mrf.mxu0
        %v4615 = vadd.f32 %v4566, %v4614
        %4616 = vmatmul.bf16.gmra.mxu0 %v3548
        %v4617 = vpop.f32.mrf.mxu0
        %v4618 = vadd.f32 %v4569, %v4617
        %v4619 = vpop.f32.mrf.mxu0
        %v4620 = vadd.f32 %v4571, %v4619
        %4621 = vmatmul.bf16.gmra.mxu0 %v3552
        %v4622 = vpop.f32.mrf.mxu0
        %v4623 = vadd.f32 %v4574, %v4622
        %v4624 = vpop.f32.mrf.mxu0
        %v4625 = vadd.f32 %v4576, %v4624
        %4626 = vdwg.mxu0
        %4627 = vmatpush.bf16.msra.mxu0 %v4170
        %4628 = vmatpush.bf16.msra.mxu0 %v4166
        %4629 = vmatpush.bf16.msra.mxu0 %v4162
        %4630 = vmatpush.bf16.msra.mxu0 %v4158
        %4631 = vmatpush.bf16.msra.mxu0 %v4154
        %4632 = vmatpush.bf16.msra.mxu0 %v4150
        %4633 = vmatpush.bf16.msra.mxu0 %v4146
        %4634 = vmatpush.bf16.msra.mxu0 %v4142
        %4635 = vmatmul.bf16.gmra.mxu0 %v3525
        %v4636 = vpop.f32.mrf.mxu0
        %v4637 = vadd.f32 %v4588, %v4636
        %v4638 = vpop.f32.mrf.mxu0
        %v4639 = vadd.f32 %v4590, %v4638
        %4640 = vmatmul.bf16.gmra.mxu0 %v3529
        %v4641 = vpop.f32.mrf.mxu0
        %v4642 = vadd.f32 %v4593, %v4641
        %v4643 = vpop.f32.mrf.mxu0
        %v4644 = vadd.f32 %v4595, %v4643
        %4645 = vmatmul.bf16.gmra.mxu0 %v3533
        %v4646 = vpop.f32.mrf.mxu0
        %v4647 = vadd.f32 %v4598, %v4646
        %v4648 = vpop.f32.mrf.mxu0
        %v4649 = vadd.f32 %v4600, %v4648
        %4650 = vmatmul.bf16.gmra.mxu0 %v3537
        %v4651 = vpop.f32.mrf.mxu0
        %v4652 = vadd.f32 %v4603, %v4651
        %v4653 = vpop.f32.mrf.mxu0
        %v4654 = vadd.f32 %v4605, %v4653
        %4655 = vmatmul.bf16.gmra.mxu0 %v3541
        %v4656 = vpop.f32.mrf.mxu0
        %v4657 = vadd.f32 %v4608, %v4656
        %v4658 = vpop.f32.mrf.mxu0
        %v4659 = vadd.f32 %v4610, %v4658
        %4660 = vmatmul.bf16.gmra.mxu0 %v3545
        %v4661 = vpop.f32.mrf.mxu0
        %v4662 = vadd.f32 %v4613, %v4661
        %v4663 = vpop.f32.mrf.mxu0
        %v4664 = vadd.f32 %v4615, %v4663
        %4665 = vmatmul.bf16.gmra.mxu0 %v3549
        %v4666 = vpop.f32.mrf.mxu0
        %v4667 = vadd.f32 %v4618, %v4666
        %v4668 = vpop.f32.mrf.mxu0
        %v4669 = vadd.f32 %v4620, %v4668
        %4670 = vmatmul.bf16.gmra.mxu0 %v3553
        %v4671 = vpop.f32.mrf.mxu0
        %v4672 = vadd.f32 %v4623, %v4671
        %v4673 = vpop.f32.mrf.mxu0
        %v4674 = vadd.f32 %v4625, %v4673
        %4675 = vdwg.mxu0
        %4676 = vmatpush.bf16.msra.mxu0 %v4202
        %4677 = vmatpush.bf16.msra.mxu0 %v4198
        %4678 = vmatpush.bf16.msra.mxu0 %v4194
        %4679 = vmatpush.bf16.msra.mxu0 %v4190
        %4680 = vmatpush.bf16.msra.mxu0 %v4186
        %4681 = vmatpush.bf16.msra.mxu0 %v4182
        %4682 = vmatpush.bf16.msra.mxu0 %v4178
        %4683 = vmatpush.bf16.msra.mxu0 %v4174
        %4684 = vmatmul.bf16.gmra.mxu0 %v3526
        %v4685 = vpop.f32.mrf.mxu0
        %v4686 = vadd.f32 %v4637, %v4685
        %v4687 = vpop.f32.mrf.mxu0
        %v4688 = vadd.f32 %v4639, %v4687
        %4689 = vmatmul.bf16.gmra.mxu0 %v3530
        %v4690 = vpop.f32.mrf.mxu0
        %v4691 = vadd.f32 %v4642, %v4690
        %v4692 = vpop.f32.mrf.mxu0
        %v4693 = vadd.f32 %v4644, %v4692
        %4694 = vmatmul.bf16.gmra.mxu0 %v3534
        %v4695 = vpop.f32.mrf.mxu0
        %v4696 = vadd.f32 %v4647, %v4695
        %v4697 = vpop.f32.mrf.mxu0
        %v4698 = vadd.f32 %v4649, %v4697
        %4699 = vmatmul.bf16.gmra.mxu0 %v3538
        %v4700 = vpop.f32.mrf.mxu0
        %v4701 = vadd.f32 %v4652, %v4700
        %v4702 = vpop.f32.mrf.mxu0
        %v4703 = vadd.f32 %v4654, %v4702
        %4704 = vmatmul.bf16.gmra.mxu0 %v3542
        %v4705 = vpop.f32.mrf.mxu0
        %v4706 = vadd.f32 %v4657, %v4705
        %v4707 = vpop.f32.mrf.mxu0
        %v4708 = vadd.f32 %v4659, %v4707
        %4709 = vmatmul.bf16.gmra.mxu0 %v3546
        %v4710 = vpop.f32.mrf.mxu0
        %v4711 = vadd.f32 %v4662, %v4710
        %v4712 = vpop.f32.mrf.mxu0
        %v4713 = vadd.f32 %v4664, %v4712
        %4714 = vmatmul.bf16.gmra.mxu0 %v3550
        %v4715 = vpop.f32.mrf.mxu0
        %v4716 = vadd.f32 %v4667, %v4715
        %v4717 = vpop.f32.mrf.mxu0
        %v4718 = vadd.f32 %v4669, %v4717
        %4719 = vmatmul.bf16.gmra.mxu0 %v3554
        %v4720 = vpop.f32.mrf.mxu0
        %v4721 = vadd.f32 %v4672, %v4720
        %v4722 = vpop.f32.mrf.mxu0
        %v4723 = vadd.f32 %v4674, %v4722
        %4724 = vdwg.mxu0
        %4725 = vmatpush.bf16.msra.mxu0 %v4107
        %4726 = vmatpush.bf16.msra.mxu0 %v4103
        %4727 = vmatpush.bf16.msra.mxu0 %v4099
        %4728 = vmatpush.bf16.msra.mxu0 %v4095
        %4729 = vmatpush.bf16.msra.mxu0 %v4091
        %4730 = vmatpush.bf16.msra.mxu0 %v4087
        %4731 = vmatpush.bf16.msra.mxu0 %v4083
        %4732 = vmatpush.bf16.msra.mxu0 %v4079
        %4733 = vmatmul.bf16.gmra.mxu0 %v3523
        %v4734 = vpop.f32.mrf.mxu0
        %v4735 = vadd.f32 %v3687, %v4734
        %v4736 = vpop.f32.mrf.mxu0
        %v4737 = vadd.f32 %v3687, %v4736
        %4738 = vmatmul.bf16.gmra.mxu0 %v3527
        %v4739 = vpop.f32.mrf.mxu0
        %v4740 = vadd.f32 %v3687, %v4739
        %v4741 = vpop.f32.mrf.mxu0
        %v4742 = vadd.f32 %v3687, %v4741
        %4743 = vmatmul.bf16.gmra.mxu0 %v3531
        %v4744 = vpop.f32.mrf.mxu0
        %v4745 = vadd.f32 %v3687, %v4744
        %v4746 = vpop.f32.mrf.mxu0
        %v4747 = vadd.f32 %v3687, %v4746
        %4748 = vmatmul.bf16.gmra.mxu0 %v3535
        %v4749 = vpop.f32.mrf.mxu0
        %v4750 = vadd.f32 %v3687, %v4749
        %v4751 = vpop.f32.mrf.mxu0
        %v4752 = vadd.f32 %v3687, %v4751
        %4753 = vmatmul.bf16.gmra.mxu0 %v3539
        %v4754 = vpop.f32.mrf.mxu0
        %v4755 = vadd.f32 %v3687, %v4754
        %v4756 = vpop.f32.mrf.mxu0
        %v4757 = vadd.f32 %v3687, %v4756
        %4758 = vmatmul.bf16.gmra.mxu0 %v3543
        %v4759 = vpop.f32.mrf.mxu0
        %v4760 = vadd.f32 %v3687, %v4759
        %v4761 = vpop.f32.mrf.mxu0
        %v4762 = vadd.f32 %v3687, %v4761
        %4763 = vmatmul.bf16.gmra.mxu0 %v3547
        %v4764 = vpop.f32.mrf.mxu0
        %v4765 = vadd.f32 %v3687, %v4764
        %v4766 = vpop.f32.mrf.mxu0
        %v4767 = vadd.f32 %v3687, %v4766
        %4768 = vmatmul.bf16.gmra.mxu0 %v3551
        %v4769 = vpop.f32.mrf.mxu0
        %v4770 = vadd.f32 %v3687, %v4769
        %v4771 = vpop.f32.mrf.mxu0
        %v4772 = vadd.f32 %v3687, %v4771
        %4773 = vdwg.mxu0
        %4774 = vmatpush.bf16.msra.mxu0 %v4139
        %4775 = vmatpush.bf16.msra.mxu0 %v4135
        %4776 = vmatpush.bf16.msra.mxu0 %v4131
        %4777 = vmatpush.bf16.msra.mxu0 %v4127
        %4778 = vmatpush.bf16.msra.mxu0 %v4123
        %4779 = vmatpush.bf16.msra.mxu0 %v4119
        %4780 = vmatpush.bf16.msra.mxu0 %v4115
        %4781 = vmatpush.bf16.msra.mxu0 %v4111
        %4782 = vmatmul.bf16.gmra.mxu0 %v3524
        %v4783 = vpop.f32.mrf.mxu0
        %v4784 = vadd.f32 %v4735, %v4783
        %v4785 = vpop.f32.mrf.mxu0
        %v4786 = vadd.f32 %v4737, %v4785
        %4787 = vmatmul.bf16.gmra.mxu0 %v3528
        %v4788 = vpop.f32.mrf.mxu0
        %v4789 = vadd.f32 %v4740, %v4788
        %v4790 = vpop.f32.mrf.mxu0
        %v4791 = vadd.f32 %v4742, %v4790
        %4792 = vmatmul.bf16.gmra.mxu0 %v3532
        %v4793 = vpop.f32.mrf.mxu0
        %v4794 = vadd.f32 %v4745, %v4793
        %v4795 = vpop.f32.mrf.mxu0
        %v4796 = vadd.f32 %v4747, %v4795
        %4797 = vmatmul.bf16.gmra.mxu0 %v3536
        %v4798 = vpop.f32.mrf.mxu0
        %v4799 = vadd.f32 %v4750, %v4798
        %v4800 = vpop.f32.mrf.mxu0
        %v4801 = vadd.f32 %v4752, %v4800
        %4802 = vmatmul.bf16.gmra.mxu0 %v3540
        %v4803 = vpop.f32.mrf.mxu0
        %v4804 = vadd.f32 %v4755, %v4803
        %v4805 = vpop.f32.mrf.mxu0
        %v4806 = vadd.f32 %v4757, %v4805
        %4807 = vmatmul.bf16.gmra.mxu0 %v3544
        %v4808 = vpop.f32.mrf.mxu0
        %v4809 = vadd.f32 %v4760, %v4808
        %v4810 = vpop.f32.mrf.mxu0
        %v4811 = vadd.f32 %v4762, %v4810
        %4812 = vmatmul.bf16.gmra.mxu0 %v3548
        %v4813 = vpop.f32.mrf.mxu0
        %v4814 = vadd.f32 %v4765, %v4813
        %v4815 = vpop.f32.mrf.mxu0
        %v4816 = vadd.f32 %v4767, %v4815
        %4817 = vmatmul.bf16.gmra.mxu0 %v3552
        %v4818 = vpop.f32.mrf.mxu0
        %v4819 = vadd.f32 %v4770, %v4818
        %v4820 = vpop.f32.mrf.mxu0
        %v4821 = vadd.f32 %v4772, %v4820
        %4822 = vdwg.mxu0
        %4823 = vmatpush.bf16.msra.mxu0 %v4171
        %4824 = vmatpush.bf16.msra.mxu0 %v4167
        %4825 = vmatpush.bf16.msra.mxu0 %v4163
        %4826 = vmatpush.bf16.msra.mxu0 %v4159
        %4827 = vmatpush.bf16.msra.mxu0 %v4155
        %4828 = vmatpush.bf16.msra.mxu0 %v4151
        %4829 = vmatpush.bf16.msra.mxu0 %v4147
        %4830 = vmatpush.bf16.msra.mxu0 %v4143
        %4831 = vmatmul.bf16.gmra.mxu0 %v3525
        %v4832 = vpop.f32.mrf.mxu0
        %v4833 = vadd.f32 %v4784, %v4832
        %v4834 = vpop.f32.mrf.mxu0
        %v4835 = vadd.f32 %v4786, %v4834
        %4836 = vmatmul.bf16.gmra.mxu0 %v3529
        %v4837 = vpop.f32.mrf.mxu0
        %v4838 = vadd.f32 %v4789, %v4837
        %v4839 = vpop.f32.mrf.mxu0
        %v4840 = vadd.f32 %v4791, %v4839
        %4841 = vmatmul.bf16.gmra.mxu0 %v3533
        %v4842 = vpop.f32.mrf.mxu0
        %v4843 = vadd.f32 %v4794, %v4842
        %v4844 = vpop.f32.mrf.mxu0
        %v4845 = vadd.f32 %v4796, %v4844
        %4846 = vmatmul.bf16.gmra.mxu0 %v3537
        %v4847 = vpop.f32.mrf.mxu0
        %v4848 = vadd.f32 %v4799, %v4847
        %v4849 = vpop.f32.mrf.mxu0
        %v4850 = vadd.f32 %v4801, %v4849
        %4851 = vmatmul.bf16.gmra.mxu0 %v3541
        %v4852 = vpop.f32.mrf.mxu0
        %v4853 = vadd.f32 %v4804, %v4852
        %v4854 = vpop.f32.mrf.mxu0
        %v4855 = vadd.f32 %v4806, %v4854
        %4856 = vmatmul.bf16.gmra.mxu0 %v3545
        %v4857 = vpop.f32.mrf.mxu0
        %v4858 = vadd.f32 %v4809, %v4857
        %v4859 = vpop.f32.mrf.mxu0
        %v4860 = vadd.f32 %v4811, %v4859
        %4861 = vmatmul.bf16.gmra.mxu0 %v3549
        %v4862 = vpop.f32.mrf.mxu0
        %v4863 = vadd.f32 %v4814, %v4862
        %v4864 = vpop.f32.mrf.mxu0
        %v4865 = vadd.f32 %v4816, %v4864
        %4866 = vmatmul.bf16.gmra.mxu0 %v3553
        %v4867 = vpop.f32.mrf.mxu0
        %v4868 = vadd.f32 %v4819, %v4867
        %v4869 = vpop.f32.mrf.mxu0
        %v4870 = vadd.f32 %v4821, %v4869
        %4871 = vdwg.mxu0
        %4872 = vmatpush.bf16.msra.mxu0 %v4203
        %4873 = vmatpush.bf16.msra.mxu0 %v4199
        %4874 = vmatpush.bf16.msra.mxu0 %v4195
        %4875 = vmatpush.bf16.msra.mxu0 %v4191
        %4876 = vmatpush.bf16.msra.mxu0 %v4187
        %4877 = vmatpush.bf16.msra.mxu0 %v4183
        %4878 = vmatpush.bf16.msra.mxu0 %v4179
        %4879 = vmatpush.bf16.msra.mxu0 %v4175
        %4880 = vmatmul.bf16.gmra.mxu0 %v3526
        %v4881 = vpop.f32.mrf.mxu0
        %v4882 = vadd.f32 %v4833, %v4881
        %v4883 = vpop.f32.mrf.mxu0
        %v4884 = vadd.f32 %v4835, %v4883
        %4885 = vmatmul.bf16.gmra.mxu0 %v3530
        %v4886 = vpop.f32.mrf.mxu0
        %v4887 = vadd.f32 %v4838, %v4886
        %v4888 = vpop.f32.mrf.mxu0
        %v4889 = vadd.f32 %v4840, %v4888
        %4890 = vmatmul.bf16.gmra.mxu0 %v3534
        %v4891 = vpop.f32.mrf.mxu0
        %v4892 = vadd.f32 %v4843, %v4891
        %v4893 = vpop.f32.mrf.mxu0
        %v4894 = vadd.f32 %v4845, %v4893
        %4895 = vmatmul.bf16.gmra.mxu0 %v3538
        %v4896 = vpop.f32.mrf.mxu0
        %v4897 = vadd.f32 %v4848, %v4896
        %v4898 = vpop.f32.mrf.mxu0
        %v4899 = vadd.f32 %v4850, %v4898
        %4900 = vmatmul.bf16.gmra.mxu0 %v3542
        %v4901 = vpop.f32.mrf.mxu0
        %v4902 = vadd.f32 %v4853, %v4901
        %v4903 = vpop.f32.mrf.mxu0
        %v4904 = vadd.f32 %v4855, %v4903
        %4905 = vmatmul.bf16.gmra.mxu0 %v3546
        %v4906 = vpop.f32.mrf.mxu0
        %v4907 = vadd.f32 %v4858, %v4906
        %v4908 = vpop.f32.mrf.mxu0
        %v4909 = vadd.f32 %v4860, %v4908
        %4910 = vmatmul.bf16.gmra.mxu0 %v3550
        %v4911 = vpop.f32.mrf.mxu0
        %v4912 = vadd.f32 %v4863, %v4911
        %v4913 = vpop.f32.mrf.mxu0
        %v4914 = vadd.f32 %v4865, %v4913
        %4915 = vmatmul.bf16.gmra.mxu0 %v3554
        %v4916 = vpop.f32.mrf.mxu0
        %v4917 = vadd.f32 %v4868, %v4916
        %v4918 = vpop.f32.mrf.mxu0
        %v4919 = vadd.f32 %v4870, %v4918
        %4920 = vdwg.mxu0
        %4921 = vmatpush.bf16.msra.mxu0 %v4108
        %4922 = vmatpush.bf16.msra.mxu0 %v4104
        %4923 = vmatpush.bf16.msra.mxu0 %v4100
        %4924 = vmatpush.bf16.msra.mxu0 %v4096
        %4925 = vmatpush.bf16.msra.mxu0 %v4092
        %4926 = vmatpush.bf16.msra.mxu0 %v4088
        %4927 = vmatpush.bf16.msra.mxu0 %v4084
        %4928 = vmatpush.bf16.msra.mxu0 %v4080
        %4929 = vmatmul.bf16.gmra.mxu0 %v3523
        %v4930 = vpop.f32.mrf.mxu0
        %v4931 = vadd.f32 %v3688, %v4930
        %v4932 = vpop.f32.mrf.mxu0
        %v4933 = vadd.f32 %v3688, %v4932
        %4934 = vmatmul.bf16.gmra.mxu0 %v3527
        %v4935 = vpop.f32.mrf.mxu0
        %v4936 = vadd.f32 %v3688, %v4935
        %v4937 = vpop.f32.mrf.mxu0
        %v4938 = vadd.f32 %v3688, %v4937
        %4939 = vmatmul.bf16.gmra.mxu0 %v3531
        %v4940 = vpop.f32.mrf.mxu0
        %v4941 = vadd.f32 %v3688, %v4940
        %v4942 = vpop.f32.mrf.mxu0
        %v4943 = vadd.f32 %v3688, %v4942
        %4944 = vmatmul.bf16.gmra.mxu0 %v3535
        %v4945 = vpop.f32.mrf.mxu0
        %v4946 = vadd.f32 %v3688, %v4945
        %v4947 = vpop.f32.mrf.mxu0
        %v4948 = vadd.f32 %v3688, %v4947
        %4949 = vmatmul.bf16.gmra.mxu0 %v3539
        %v4950 = vpop.f32.mrf.mxu0
        %v4951 = vadd.f32 %v3688, %v4950
        %v4952 = vpop.f32.mrf.mxu0
        %v4953 = vadd.f32 %v3688, %v4952
        %4954 = vmatmul.bf16.gmra.mxu0 %v3543
        %v4955 = vpop.f32.mrf.mxu0
        %v4956 = vadd.f32 %v3688, %v4955
        %v4957 = vpop.f32.mrf.mxu0
        %v4958 = vadd.f32 %v3688, %v4957
        %4959 = vmatmul.bf16.gmra.mxu0 %v3547
        %v4960 = vpop.f32.mrf.mxu0
        %v4961 = vadd.f32 %v3688, %v4960
        %v4962 = vpop.f32.mrf.mxu0
        %v4963 = vadd.f32 %v3688, %v4962
        %4964 = vmatmul.bf16.gmra.mxu0 %v3551
        %v4965 = vpop.f32.mrf.mxu0
        %v4966 = vadd.f32 %v3688, %v4965
        %v4967 = vpop.f32.mrf.mxu0
        %v4968 = vadd.f32 %v3688, %v4967
        %4969 = vdwg.mxu0
        %4970 = vmatpush.bf16.msra.mxu0 %v4140
        %4971 = vmatpush.bf16.msra.mxu0 %v4136
        %4972 = vmatpush.bf16.msra.mxu0 %v4132
        %4973 = vmatpush.bf16.msra.mxu0 %v4128
        %4974 = vmatpush.bf16.msra.mxu0 %v4124
        %4975 = vmatpush.bf16.msra.mxu0 %v4120
        %4976 = vmatpush.bf16.msra.mxu0 %v4116
        %4977 = vmatpush.bf16.msra.mxu0 %v4112
        %4978 = vmatmul.bf16.gmra.mxu0 %v3524
        %v4979 = vpop.f32.mrf.mxu0
        %v4980 = vadd.f32 %v4931, %v4979
        %v4981 = vpop.f32.mrf.mxu0
        %v4982 = vadd.f32 %v4933, %v4981
        %4983 = vmatmul.bf16.gmra.mxu0 %v3528
        %v4984 = vpop.f32.mrf.mxu0
        %v4985 = vadd.f32 %v4936, %v4984
        %v4986 = vpop.f32.mrf.mxu0
        %v4987 = vadd.f32 %v4938, %v4986
        %4988 = vmatmul.bf16.gmra.mxu0 %v3532
        %v4989 = vpop.f32.mrf.mxu0
        %v4990 = vadd.f32 %v4941, %v4989
        %v4991 = vpop.f32.mrf.mxu0
        %v4992 = vadd.f32 %v4943, %v4991
        %4993 = vmatmul.bf16.gmra.mxu0 %v3536
        %v4994 = vpop.f32.mrf.mxu0
        %v4995 = vadd.f32 %v4946, %v4994
        %v4996 = vpop.f32.mrf.mxu0
        %v4997 = vadd.f32 %v4948, %v4996
        %4998 = vmatmul.bf16.gmra.mxu0 %v3540
        %v4999 = vpop.f32.mrf.mxu0
        %v5000 = vadd.f32 %v4951, %v4999
        %v5001 = vpop.f32.mrf.mxu0
        %v5002 = vadd.f32 %v4953, %v5001
        %5003 = vmatmul.bf16.gmra.mxu0 %v3544
        %v5004 = vpop.f32.mrf.mxu0
        %v5005 = vadd.f32 %v4956, %v5004
        %v5006 = vpop.f32.mrf.mxu0
        %v5007 = vadd.f32 %v4958, %v5006
        %5008 = vmatmul.bf16.gmra.mxu0 %v3548
        %v5009 = vpop.f32.mrf.mxu0
        %v5010 = vadd.f32 %v4961, %v5009
        %v5011 = vpop.f32.mrf.mxu0
        %v5012 = vadd.f32 %v4963, %v5011
        %5013 = vmatmul.bf16.gmra.mxu0 %v3552
        %v5014 = vpop.f32.mrf.mxu0
        %v5015 = vadd.f32 %v4966, %v5014
        %v5016 = vpop.f32.mrf.mxu0
        %v5017 = vadd.f32 %v4968, %v5016
        %5018 = vdwg.mxu0
        %5019 = vmatpush.bf16.msra.mxu0 %v4172
        %5020 = vmatpush.bf16.msra.mxu0 %v4168
        %5021 = vmatpush.bf16.msra.mxu0 %v4164
        %5022 = vmatpush.bf16.msra.mxu0 %v4160
        %5023 = vmatpush.bf16.msra.mxu0 %v4156
        %5024 = vmatpush.bf16.msra.mxu0 %v4152
        %5025 = vmatpush.bf16.msra.mxu0 %v4148
        %5026 = vmatpush.bf16.msra.mxu0 %v4144
        %5027 = vmatmul.bf16.gmra.mxu0 %v3525
        %v5028 = vpop.f32.mrf.mxu0
        %v5029 = vadd.f32 %v4980, %v5028
        %v5030 = vpop.f32.mrf.mxu0
        %v5031 = vadd.f32 %v4982, %v5030
        %5032 = vmatmul.bf16.gmra.mxu0 %v3529
        %v5033 = vpop.f32.mrf.mxu0
        %v5034 = vadd.f32 %v4985, %v5033
        %v5035 = vpop.f32.mrf.mxu0
        %v5036 = vadd.f32 %v4987, %v5035
        %5037 = vmatmul.bf16.gmra.mxu0 %v3533
        %v5038 = vpop.f32.mrf.mxu0
        %v5039 = vadd.f32 %v4990, %v5038
        %v5040 = vpop.f32.mrf.mxu0
        %v5041 = vadd.f32 %v4992, %v5040
        %5042 = vmatmul.bf16.gmra.mxu0 %v3537
        %v5043 = vpop.f32.mrf.mxu0
        %v5044 = vadd.f32 %v4995, %v5043
        %v5045 = vpop.f32.mrf.mxu0
        %v5046 = vadd.f32 %v4997, %v5045
        %5047 = vmatmul.bf16.gmra.mxu0 %v3541
        %v5048 = vpop.f32.mrf.mxu0
        %v5049 = vadd.f32 %v5000, %v5048
        %v5050 = vpop.f32.mrf.mxu0
        %v5051 = vadd.f32 %v5002, %v5050
        %5052 = vmatmul.bf16.gmra.mxu0 %v3545
        %v5053 = vpop.f32.mrf.mxu0
        %v5054 = vadd.f32 %v5005, %v5053
        %v5055 = vpop.f32.mrf.mxu0
        %v5056 = vadd.f32 %v5007, %v5055
        %5057 = vmatmul.bf16.gmra.mxu0 %v3549
        %v5058 = vpop.f32.mrf.mxu0
        %v5059 = vadd.f32 %v5010, %v5058
        %v5060 = vpop.f32.mrf.mxu0
        %v5061 = vadd.f32 %v5012, %v5060
        %5062 = vmatmul.bf16.gmra.mxu0 %v3553
        %v5063 = vpop.f32.mrf.mxu0
        %v5064 = vadd.f32 %v5015, %v5063
        %v5065 = vpop.f32.mrf.mxu0
        %v5066 = vadd.f32 %v5017, %v5065
        %5067 = vdwg.mxu0
        %5068 = vmatpush.bf16.msra.mxu0 %v4204
        %5069 = vmatpush.bf16.msra.mxu0 %v4200
        %5070 = vmatpush.bf16.msra.mxu0 %v4196
        %5071 = vmatpush.bf16.msra.mxu0 %v4192
        %5072 = vmatpush.bf16.msra.mxu0 %v4188
        %5073 = vmatpush.bf16.msra.mxu0 %v4184
        %5074 = vmatpush.bf16.msra.mxu0 %v4180
        %5075 = vmatpush.bf16.msra.mxu0 %v4176
        %5076 = vmatmul.bf16.gmra.mxu0 %v3526
        %v5077 = vpop.f32.mrf.mxu0
        %v5078 = vadd.f32 %v5029, %v5077
        %v5079 = vpop.f32.mrf.mxu0
        %v5080 = vadd.f32 %v5031, %v5079
        %5081 = vmatmul.bf16.gmra.mxu0 %v3530
        %v5082 = vpop.f32.mrf.mxu0
        %v5083 = vadd.f32 %v5034, %v5082
        %v5084 = vpop.f32.mrf.mxu0
        %v5085 = vadd.f32 %v5036, %v5084
        %5086 = vmatmul.bf16.gmra.mxu0 %v3534
        %v5087 = vpop.f32.mrf.mxu0
        %v5088 = vadd.f32 %v5039, %v5087
        %v5089 = vpop.f32.mrf.mxu0
        %v5090 = vadd.f32 %v5041, %v5089
        %5091 = vmatmul.bf16.gmra.mxu0 %v3538
        %v5092 = vpop.f32.mrf.mxu0
        %v5093 = vadd.f32 %v5044, %v5092
        %v5094 = vpop.f32.mrf.mxu0
        %v5095 = vadd.f32 %v5046, %v5094
        %5096 = vmatmul.bf16.gmra.mxu0 %v3542
        %v5097 = vpop.f32.mrf.mxu0
        %v5098 = vadd.f32 %v5049, %v5097
        %v5099 = vpop.f32.mrf.mxu0
        %v5100 = vadd.f32 %v5051, %v5099
        %5101 = vmatmul.bf16.gmra.mxu0 %v3546
        %v5102 = vpop.f32.mrf.mxu0
        %v5103 = vadd.f32 %v5054, %v5102
        %v5104 = vpop.f32.mrf.mxu0
        %v5105 = vadd.f32 %v5056, %v5104
        %5106 = vmatmul.bf16.gmra.mxu0 %v3550
        %v5107 = vpop.f32.mrf.mxu0
        %v5108 = vadd.f32 %v5059, %v5107
        %v5109 = vpop.f32.mrf.mxu0
        %v5110 = vadd.f32 %v5061, %v5109
        %5111 = vmatmul.bf16.gmra.mxu0 %v3554
        %v5112 = vpop.f32.mrf.mxu0
        %v5113 = vadd.f32 %v5064, %v5112
        %v5114 = vpop.f32.mrf.mxu0
        %v5115 = vadd.f32 %v5066, %v5114
        %5116 = vdwg.mxu0
        %v5117 = vmax.f32 %v4490, 0.0
        %v5118 = vmax.f32 %v4686, 0.0
        %v5119 = vmax.f32 %v4882, 0.0
        %v5120 = vmax.f32 %v5078, 0.0
        %v5121 = vmax.f32 %v4492, 0.0
        %v5122 = vmax.f32 %v4688, 0.0
        %v5123 = vmax.f32 %v4884, 0.0
        %v5124 = vmax.f32 %v5080, 0.0
        %v5125 = vmax.f32 %v4495, 0.0
        %v5126 = vmax.f32 %v4691, 0.0
        %v5127 = vmax.f32 %v4887, 0.0
        %v5128 = vmax.f32 %v5083, 0.0
        %v5129 = vmax.f32 %v4497, 0.0
        %v5130 = vmax.f32 %v4693, 0.0
        %v5131 = vmax.f32 %v4889, 0.0
        %v5132 = vmax.f32 %v5085, 0.0
        %v5133 = vmax.f32 %v4500, 0.0
        %v5134 = vmax.f32 %v4696, 0.0
        %v5135 = vmax.f32 %v4892, 0.0
        %v5136 = vmax.f32 %v5088, 0.0
        %v5137 = vmax.f32 %v4502, 0.0
        %v5138 = vmax.f32 %v4698, 0.0
        %v5139 = vmax.f32 %v4894, 0.0
        %v5140 = vmax.f32 %v5090, 0.0
        %v5141 = vmax.f32 %v4505, 0.0
        %v5142 = vmax.f32 %v4701, 0.0
        %v5143 = vmax.f32 %v4897, 0.0
        %v5144 = vmax.f32 %v5093, 0.0
        %v5145 = vmax.f32 %v4507, 0.0
        %v5146 = vmax.f32 %v4703, 0.0
        %v5147 = vmax.f32 %v4899, 0.0
        %v5148 = vmax.f32 %v5095, 0.0
        %v5149 = vmax.f32 %v4510, 0.0
        %v5150 = vmax.f32 %v4706, 0.0
        %v5151 = vmax.f32 %v4902, 0.0
        %v5152 = vmax.f32 %v5098, 0.0
        %v5153 = vmax.f32 %v4512, 0.0
        %v5154 = vmax.f32 %v4708, 0.0
        %v5155 = vmax.f32 %v4904, 0.0
        %v5156 = vmax.f32 %v5100, 0.0
        %v5157 = vmax.f32 %v4515, 0.0
        %v5158 = vmax.f32 %v4711, 0.0
        %v5159 = vmax.f32 %v4907, 0.0
        %v5160 = vmax.f32 %v5103, 0.0
        %v5161 = vmax.f32 %v4517, 0.0
        %v5162 = vmax.f32 %v4713, 0.0
        %v5163 = vmax.f32 %v4909, 0.0
        %v5164 = vmax.f32 %v5105, 0.0
        %v5165 = vmax.f32 %v4520, 0.0
        %v5166 = vmax.f32 %v4716, 0.0
        %v5167 = vmax.f32 %v4912, 0.0
        %v5168 = vmax.f32 %v5108, 0.0
        %v5169 = vmax.f32 %v4522, 0.0
        %v5170 = vmax.f32 %v4718, 0.0
        %v5171 = vmax.f32 %v4914, 0.0
        %v5172 = vmax.f32 %v5110, 0.0
        %v5173 = vmax.f32 %v4525, 0.0
        %v5174 = vmax.f32 %v4721, 0.0
        %v5175 = vmax.f32 %v4917, 0.0
        %v5176 = vmax.f32 %v5113, 0.0
        %v5177 = vmax.f32 %v4527, 0.0
        %v5178 = vmax.f32 %v4723, 0.0
        %v5179 = vmax.f32 %v4919, 0.0
        %v5180 = vmax.f32 %v5115, 0.0
        %v5181 = vpack.c.bf16 %v5121, %v5117
        %v5182 = vpack.c.bf16 %v5122, %v5118
        %v5183 = vpack.c.bf16 %v5123, %v5119
        %v5184 = vpack.c.bf16 %v5124, %v5120
        %v5185 = vpack.c.bf16 %v5129, %v5125
        %v5186 = vpack.c.bf16 %v5130, %v5126
        %v5187 = vpack.c.bf16 %v5131, %v5127
        %v5188 = vpack.c.bf16 %v5132, %v5128
        %v5189 = vpack.c.bf16 %v5137, %v5133
        %v5190 = vpack.c.bf16 %v5138, %v5134
        %v5191 = vpack.c.bf16 %v5139, %v5135
        %v5192 = vpack.c.bf16 %v5140, %v5136
        %v5193 = vpack.c.bf16 %v5145, %v5141
        %v5194 = vpack.c.bf16 %v5146, %v5142
        %v5195 = vpack.c.bf16 %v5147, %v5143
        %v5196 = vpack.c.bf16 %v5148, %v5144
        %v5197 = vpack.c.bf16 %v5153, %v5149
        %v5198 = vpack.c.bf16 %v5154, %v5150
        %v5199 = vpack.c.bf16 %v5155, %v5151
        %v5200 = vpack.c.bf16 %v5156, %v5152
        %v5201 = vpack.c.bf16 %v5161, %v5157
        %v5202 = vpack.c.bf16 %v5162, %v5158
        %v5203 = vpack.c.bf16 %v5163, %v5159
        %v5204 = vpack.c.bf16 %v5164, %v5160
        %v5205 = vpack.c.bf16 %v5169, %v5165
        %v5206 = vpack.c.bf16 %v5170, %v5166
        %v5207 = vpack.c.bf16 %v5171, %v5167
        %v5208 = vpack.c.bf16 %v5172, %v5168
        %v5209 = vpack.c.bf16 %v5177, %v5173
        %v5210 = vpack.c.bf16 %v5178, %v5174
        %v5211 = vpack.c.bf16 %v5179, %v5175
        %v5212 = vpack.c.bf16 %v5180, %v5176
        %v5213 = vld [vmem:[#allocation11] sm:$0xf]
        %v5214 = vld [vmem:[#allocation11 + $0x4] sm:$0xf]
        %v5215 = vld [vmem:[#allocation11 + $0x8] sm:$0xf]
        %v5216 = vld [vmem:[#allocation11 + $0xc] sm:$0xf]
        %v5217 = vld [vmem:[#allocation11 + $0x10] sm:$0xf]
        %v5218 = vld [vmem:[#allocation11 + $0x14] sm:$0xf]
        %v5219 = vld [vmem:[#allocation11 + $0x18] sm:$0xf]
        %v5220 = vld [vmem:[#allocation11 + $0x1c] sm:$0xf]
        %v5221 = vld [vmem:[#allocation11 + $0x20] sm:$0xf]
        %v5222 = vld [vmem:[#allocation11 + $0x24] sm:$0xf]
        %v5223 = vld [vmem:[#allocation11 + $0x28] sm:$0xf]
        %v5224 = vld [vmem:[#allocation11 + $0x2c] sm:$0xf]
        %v5225 = vld [vmem:[#allocation11 + $0x30] sm:$0xf]
        %v5226 = vld [vmem:[#allocation11 + $0x34] sm:$0xf]
        %v5227 = vld [vmem:[#allocation11 + $0x38] sm:$0xf]
        %v5228 = vld [vmem:[#allocation11 + $0x3c] sm:$0xf]
        %v5229 = vld [vmem:[#allocation11 + $0x40] sm:$0xf]
        %v5230 = vld [vmem:[#allocation11 + $0x44] sm:$0xf]
        %v5231 = vld [vmem:[#allocation11 + $0x48] sm:$0xf]
        %v5232 = vld [vmem:[#allocation11 + $0x4c] sm:$0xf]
        %v5233 = vld [vmem:[#allocation11 + $0x50] sm:$0xf]
        %v5234 = vld [vmem:[#allocation11 + $0x54] sm:$0xf]
        %v5235 = vld [vmem:[#allocation11 + $0x58] sm:$0xf]
        %v5236 = vld [vmem:[#allocation11 + $0x5c] sm:$0xf]
        %v5237 = vld [vmem:[#allocation11 + $0x60] sm:$0xf]
        %v5238 = vld [vmem:[#allocation11 + $0x64] sm:$0xf]
        %v5239 = vld [vmem:[#allocation11 + $0x68] sm:$0xf]
        %v5240 = vld [vmem:[#allocation11 + $0x6c] sm:$0xf]
        %v5241 = vld [vmem:[#allocation11 + $0x70] sm:$0xf]
        %v5242 = vld [vmem:[#allocation11 + $0x74] sm:$0xf]
        %v5243 = vld [vmem:[#allocation11 + $0x78] sm:$0xf]
        %v5244 = vld [vmem:[#allocation11 + $0x7c] sm:$0xf]
        %v5245 = vld [vmem:[#allocation11 + $0x80] sm:$0xf]
        %v5246 = vld [vmem:[#allocation11 + $0x84] sm:$0xf]
        %v5247 = vld [vmem:[#allocation11 + $0x88] sm:$0xf]
        %v5248 = vld [vmem:[#allocation11 + $0x8c] sm:$0xf]
        %v5249 = vld [vmem:[#allocation11 + $0x90] sm:$0xf]
        %v5250 = vld [vmem:[#allocation11 + $0x94] sm:$0xf]
        %v5251 = vld [vmem:[#allocation11 + $0x98] sm:$0xf]
        %v5252 = vld [vmem:[#allocation11 + $0x9c] sm:$0xf]
        %v5253 = vld [vmem:[#allocation11 + $0xa0] sm:$0xf]
        %v5254 = vld [vmem:[#allocation11 + $0xa4] sm:$0xf]
        %v5255 = vld [vmem:[#allocation11 + $0xa8] sm:$0xf]
        %v5256 = vld [vmem:[#allocation11 + $0xac] sm:$0xf]
        %v5257 = vld [vmem:[#allocation11 + $0xb0] sm:$0xf]
        %v5258 = vld [vmem:[#allocation11 + $0xb4] sm:$0xf]
        %v5259 = vld [vmem:[#allocation11 + $0xb8] sm:$0xf]
        %v5260 = vld [vmem:[#allocation11 + $0xbc] sm:$0xf]
        %v5261 = vld [vmem:[#allocation11 + $0xc0] sm:$0xf]
        %v5262 = vld [vmem:[#allocation11 + $0xc4] sm:$0xf]
        %v5263 = vld [vmem:[#allocation11 + $0xc8] sm:$0xf]
        %v5264 = vld [vmem:[#allocation11 + $0xcc] sm:$0xf]
        %v5265 = vld [vmem:[#allocation11 + $0xd0] sm:$0xf]
        %v5266 = vld [vmem:[#allocation11 + $0xd4] sm:$0xf]
        %v5267 = vld [vmem:[#allocation11 + $0xd8] sm:$0xf]
        %v5268 = vld [vmem:[#allocation11 + $0xdc] sm:$0xf]
        %v5269 = vld [vmem:[#allocation11 + $0xe0] sm:$0xf]
        %v5270 = vld [vmem:[#allocation11 + $0xe4] sm:$0xf]
        %v5271 = vld [vmem:[#allocation11 + $0xe8] sm:$0xf]
        %v5272 = vld [vmem:[#allocation11 + $0xec] sm:$0xf]
        %v5273 = vld [vmem:[#allocation11 + $0xf0] sm:$0xf]
        %v5274 = vld [vmem:[#allocation11 + $0xf4] sm:$0xf]
        %v5275 = vld [vmem:[#allocation11 + $0xf8] sm:$0xf]
        %v5276 = vld [vmem:[#allocation11 + $0xfc] sm:$0xf]
        %v5277 = vld [vmem:[%s6] sm:$0x1]
        %v5279 = vperm.slane %v5277, 0
        %v5345 = vunpack.c.l.b16 %v5213
        %v5346 = vunpack.c.l.b16 %v5214
        %v5347 = vunpack.c.l.b16 %v5215
        %v5348 = vunpack.c.l.b16 %v5216
        %v5349 = vunpack.c.l.b16 %v5217
        %v5350 = vunpack.c.l.b16 %v5218
        %v5351 = vunpack.c.l.b16 %v5219
        %v5352 = vunpack.c.l.b16 %v5220
        %v5353 = vunpack.c.l.b16 %v5221
        %v5354 = vunpack.c.l.b16 %v5222
        %v5355 = vunpack.c.l.b16 %v5223
        %v5356 = vunpack.c.l.b16 %v5224
        %v5357 = vunpack.c.l.b16 %v5225
        %v5358 = vunpack.c.l.b16 %v5226
        %v5359 = vunpack.c.l.b16 %v5227
        %v5360 = vunpack.c.l.b16 %v5228
        %v5361 = vunpack.c.l.b16 %v5229
        %v5362 = vunpack.c.l.b16 %v5230
        %v5363 = vunpack.c.l.b16 %v5231
        %v5364 = vunpack.c.l.b16 %v5232
        %v5365 = vunpack.c.l.b16 %v5233
        %v5366 = vunpack.c.l.b16 %v5234
        %v5367 = vunpack.c.l.b16 %v5235
        %v5368 = vunpack.c.l.b16 %v5236
        %v5369 = vunpack.c.l.b16 %v5237
        %v5370 = vunpack.c.l.b16 %v5238
        %v5371 = vunpack.c.l.b16 %v5239
        %v5372 = vunpack.c.l.b16 %v5240
        %v5373 = vunpack.c.l.b16 %v5241
        %v5374 = vunpack.c.l.b16 %v5242
        %v5375 = vunpack.c.l.b16 %v5243
        %v5376 = vunpack.c.l.b16 %v5244
        %v5377 = vunpack.c.l.b16 %v5245
        %v5378 = vunpack.c.l.b16 %v5246
        %v5379 = vunpack.c.l.b16 %v5247
        %v5380 = vunpack.c.l.b16 %v5248
        %v5381 = vunpack.c.l.b16 %v5249
        %v5382 = vunpack.c.l.b16 %v5250
        %v5383 = vunpack.c.l.b16 %v5251
        %v5384 = vunpack.c.l.b16 %v5252
        %v5385 = vunpack.c.l.b16 %v5253
        %v5386 = vunpack.c.l.b16 %v5254
        %v5387 = vunpack.c.l.b16 %v5255
        %v5388 = vunpack.c.l.b16 %v5256
        %v5389 = vunpack.c.l.b16 %v5257
        %v5390 = vunpack.c.l.b16 %v5258
        %v5391 = vunpack.c.l.b16 %v5259
        %v5392 = vunpack.c.l.b16 %v5260
        %v5393 = vunpack.c.l.b16 %v5261
        %v5394 = vunpack.c.l.b16 %v5262
        %v5395 = vunpack.c.l.b16 %v5263
        %v5396 = vunpack.c.l.b16 %v5264
        %v5397 = vunpack.c.l.b16 %v5265
        %v5398 = vunpack.c.l.b16 %v5266
        %v5399 = vunpack.c.l.b16 %v5267
        %v5400 = vunpack.c.l.b16 %v5268
        %v5401 = vunpack.c.l.b16 %v5269
        %v5402 = vunpack.c.l.b16 %v5270
        %v5403 = vunpack.c.l.b16 %v5271
        %v5404 = vunpack.c.l.b16 %v5272
        %v5405 = vunpack.c.l.b16 %v5273
        %v5406 = vunpack.c.l.b16 %v5274
        %v5407 = vunpack.c.l.b16 %v5275
        %v5408 = vunpack.c.l.b16 %v5276
        %v5409 = vpack.c.b16 %v5346, %v5345
        %v5410 = vpack.c.b16 %v5348, %v5347
        %v5411 = vpack.c.b16 %v5350, %v5349
        %v5412 = vpack.c.b16 %v5352, %v5351
        %v5413 = vpack.c.b16 %v5354, %v5353
        %v5414 = vpack.c.b16 %v5356, %v5355
        %v5415 = vpack.c.b16 %v5358, %v5357
        %v5416 = vpack.c.b16 %v5360, %v5359
        %v5417 = vpack.c.b16 %v5362, %v5361
        %v5418 = vpack.c.b16 %v5364, %v5363
        %v5419 = vpack.c.b16 %v5366, %v5365
        %v5420 = vpack.c.b16 %v5368, %v5367
        %v5421 = vpack.c.b16 %v5370, %v5369
        %v5422 = vpack.c.b16 %v5372, %v5371
        %v5423 = vpack.c.b16 %v5374, %v5373
        %v5424 = vpack.c.b16 %v5376, %v5375
        %v5425 = vpack.c.b16 %v5378, %v5377
        %v5426 = vpack.c.b16 %v5380, %v5379
        %v5427 = vpack.c.b16 %v5382, %v5381
        %v5428 = vpack.c.b16 %v5384, %v5383
        %v5429 = vpack.c.b16 %v5386, %v5385
        %v5430 = vpack.c.b16 %v5388, %v5387
        %v5431 = vpack.c.b16 %v5390, %v5389
        %v5432 = vpack.c.b16 %v5392, %v5391
        %v5433 = vpack.c.b16 %v5394, %v5393
        %v5434 = vpack.c.b16 %v5396, %v5395
        %v5435 = vpack.c.b16 %v5398, %v5397
        %v5436 = vpack.c.b16 %v5400, %v5399
        %v5437 = vpack.c.b16 %v5402, %v5401
        %v5438 = vpack.c.b16 %v5404, %v5403
        %v5439 = vpack.c.b16 %v5406, %v5405
        %v5440 = vpack.c.b16 %v5408, %v5407
        %5473 = vmatpush.bf16.msra.mxu0 %v5416
        %5474 = vmatpush.bf16.msra.mxu0 %v5415
        %5475 = vmatpush.bf16.msra.mxu0 %v5414
        %5476 = vmatpush.bf16.msra.mxu0 %v5413
        %5477 = vmatpush.bf16.msra.mxu0 %v5412
        %5478 = vmatpush.bf16.msra.mxu0 %v5411
        %5479 = vmatpush.bf16.msra.mxu0 %v5410
        %5480 = vmatpush.bf16.msra.mxu0 %v5409
        %5481 = vmatmul.bf16.gmra.mxu0 %v5181
        %v5482 = vpop.f32.mrf.mxu0
        %v5483 = vadd.f32 %v5279, %v5482
        %v5484 = vpop.f32.mrf.mxu0
        %v5485 = vadd.f32 %v5279, %v5484
        %5486 = vmatmul.bf16.gmra.mxu0 %v5185
        %v5487 = vpop.f32.mrf.mxu0
        %v5488 = vadd.f32 %v5279, %v5487
        %v5489 = vpop.f32.mrf.mxu0
        %v5490 = vadd.f32 %v5279, %v5489
        %5491 = vmatmul.bf16.gmra.mxu0 %v5189
        %v5492 = vpop.f32.mrf.mxu0
        %v5493 = vadd.f32 %v5279, %v5492
        %v5494 = vpop.f32.mrf.mxu0
        %v5495 = vadd.f32 %v5279, %v5494
        %5496 = vmatmul.bf16.gmra.mxu0 %v5193
        %v5497 = vpop.f32.mrf.mxu0
        %v5498 = vadd.f32 %v5279, %v5497
        %v5499 = vpop.f32.mrf.mxu0
        %v5500 = vadd.f32 %v5279, %v5499
        %5501 = vmatmul.bf16.gmra.mxu0 %v5197
        %v5502 = vpop.f32.mrf.mxu0
        %v5503 = vadd.f32 %v5279, %v5502
        %v5504 = vpop.f32.mrf.mxu0
        %v5505 = vadd.f32 %v5279, %v5504
        %5506 = vmatmul.bf16.gmra.mxu0 %v5201
        %v5507 = vpop.f32.mrf.mxu0
        %v5508 = vadd.f32 %v5279, %v5507
        %v5509 = vpop.f32.mrf.mxu0
        %v5510 = vadd.f32 %v5279, %v5509
        %5511 = vmatmul.bf16.gmra.mxu0 %v5205
        %v5512 = vpop.f32.mrf.mxu0
        %v5513 = vadd.f32 %v5279, %v5512
        %v5514 = vpop.f32.mrf.mxu0
        %v5515 = vadd.f32 %v5279, %v5514
        %5516 = vmatmul.bf16.gmra.mxu0 %v5209
        %v5517 = vpop.f32.mrf.mxu0
        %v5518 = vadd.f32 %v5279, %v5517
        %v5519 = vpop.f32.mrf.mxu0
        %v5520 = vadd.f32 %v5279, %v5519
        %5521 = vdwg.mxu0
        %5522 = vmatpush.bf16.msra.mxu0 %v5424
        %5523 = vmatpush.bf16.msra.mxu0 %v5423
        %5524 = vmatpush.bf16.msra.mxu0 %v5422
        %5525 = vmatpush.bf16.msra.mxu0 %v5421
        %5526 = vmatpush.bf16.msra.mxu0 %v5420
        %5527 = vmatpush.bf16.msra.mxu0 %v5419
        %5528 = vmatpush.bf16.msra.mxu0 %v5418
        %5529 = vmatpush.bf16.msra.mxu0 %v5417
        %5530 = vmatmul.bf16.gmra.mxu0 %v5182
        %v5531 = vpop.f32.mrf.mxu0
        %v5532 = vadd.f32 %v5483, %v5531
        %v5533 = vpop.f32.mrf.mxu0
        %v5534 = vadd.f32 %v5485, %v5533
        %5535 = vmatmul.bf16.gmra.mxu0 %v5186
        %v5536 = vpop.f32.mrf.mxu0
        %v5537 = vadd.f32 %v5488, %v5536
        %v5538 = vpop.f32.mrf.mxu0
        %v5539 = vadd.f32 %v5490, %v5538
        %5540 = vmatmul.bf16.gmra.mxu0 %v5190
        %v5541 = vpop.f32.mrf.mxu0
        %v5542 = vadd.f32 %v5493, %v5541
        %v5543 = vpop.f32.mrf.mxu0
        %v5544 = vadd.f32 %v5495, %v5543
        %5545 = vmatmul.bf16.gmra.mxu0 %v5194
        %v5546 = vpop.f32.mrf.mxu0
        %v5547 = vadd.f32 %v5498, %v5546
        %v5548 = vpop.f32.mrf.mxu0
        %v5549 = vadd.f32 %v5500, %v5548
        %5550 = vmatmul.bf16.gmra.mxu0 %v5198
        %v5551 = vpop.f32.mrf.mxu0
        %v5552 = vadd.f32 %v5503, %v5551
        %v5553 = vpop.f32.mrf.mxu0
        %v5554 = vadd.f32 %v5505, %v5553
        %5555 = vmatmul.bf16.gmra.mxu0 %v5202
        %v5556 = vpop.f32.mrf.mxu0
        %v5557 = vadd.f32 %v5508, %v5556
        %v5558 = vpop.f32.mrf.mxu0
        %v5559 = vadd.f32 %v5510, %v5558
        %5560 = vmatmul.bf16.gmra.mxu0 %v5206
        %v5561 = vpop.f32.mrf.mxu0
        %v5562 = vadd.f32 %v5513, %v5561
        %v5563 = vpop.f32.mrf.mxu0
        %v5564 = vadd.f32 %v5515, %v5563
        %5565 = vmatmul.bf16.gmra.mxu0 %v5210
        %v5566 = vpop.f32.mrf.mxu0
        %v5567 = vadd.f32 %v5518, %v5566
        %v5568 = vpop.f32.mrf.mxu0
        %v5569 = vadd.f32 %v5520, %v5568
        %5570 = vdwg.mxu0
        %5571 = vmatpush.bf16.msra.mxu0 %v5432
        %5572 = vmatpush.bf16.msra.mxu0 %v5431
        %5573 = vmatpush.bf16.msra.mxu0 %v5430
        %5574 = vmatpush.bf16.msra.mxu0 %v5429
        %5575 = vmatpush.bf16.msra.mxu0 %v5428
        %5576 = vmatpush.bf16.msra.mxu0 %v5427
        %5577 = vmatpush.bf16.msra.mxu0 %v5426
        %5578 = vmatpush.bf16.msra.mxu0 %v5425
        %5579 = vmatmul.bf16.gmra.mxu0 %v5183
        %v5580 = vpop.f32.mrf.mxu0
        %v5581 = vadd.f32 %v5532, %v5580
        %v5582 = vpop.f32.mrf.mxu0
        %v5583 = vadd.f32 %v5534, %v5582
        %5584 = vmatmul.bf16.gmra.mxu0 %v5187
        %v5585 = vpop.f32.mrf.mxu0
        %v5586 = vadd.f32 %v5537, %v5585
        %v5587 = vpop.f32.mrf.mxu0
        %v5588 = vadd.f32 %v5539, %v5587
        %5589 = vmatmul.bf16.gmra.mxu0 %v5191
        %v5590 = vpop.f32.mrf.mxu0
        %v5591 = vadd.f32 %v5542, %v5590
        %v5592 = vpop.f32.mrf.mxu0
        %v5593 = vadd.f32 %v5544, %v5592
        %5594 = vmatmul.bf16.gmra.mxu0 %v5195
        %v5595 = vpop.f32.mrf.mxu0
        %v5596 = vadd.f32 %v5547, %v5595
        %v5597 = vpop.f32.mrf.mxu0
        %v5598 = vadd.f32 %v5549, %v5597
        %5599 = vmatmul.bf16.gmra.mxu0 %v5199
        %v5600 = vpop.f32.mrf.mxu0
        %v5601 = vadd.f32 %v5552, %v5600
        %v5602 = vpop.f32.mrf.mxu0
        %v5603 = vadd.f32 %v5554, %v5602
        %5604 = vmatmul.bf16.gmra.mxu0 %v5203
        %v5605 = vpop.f32.mrf.mxu0
        %v5606 = vadd.f32 %v5557, %v5605
        %v5607 = vpop.f32.mrf.mxu0
        %v5608 = vadd.f32 %v5559, %v5607
        %5609 = vmatmul.bf16.gmra.mxu0 %v5207
        %v5610 = vpop.f32.mrf.mxu0
        %v5611 = vadd.f32 %v5562, %v5610
        %v5612 = vpop.f32.mrf.mxu0
        %v5613 = vadd.f32 %v5564, %v5612
        %5614 = vmatmul.bf16.gmra.mxu0 %v5211
        %v5615 = vpop.f32.mrf.mxu0
        %v5616 = vadd.f32 %v5567, %v5615
        %v5617 = vpop.f32.mrf.mxu0
        %v5618 = vadd.f32 %v5569, %v5617
        %5619 = vdwg.mxu0
        %5620 = vmatpush.bf16.msra.mxu0 %v5440
        %5621 = vmatpush.bf16.msra.mxu0 %v5439
        %5622 = vmatpush.bf16.msra.mxu0 %v5438
        %5623 = vmatpush.bf16.msra.mxu0 %v5437
        %5624 = vmatpush.bf16.msra.mxu0 %v5436
        %5625 = vmatpush.bf16.msra.mxu0 %v5435
        %5626 = vmatpush.bf16.msra.mxu0 %v5434
        %5627 = vmatpush.bf16.msra.mxu0 %v5433
        %5628 = vmatmul.bf16.gmra.mxu0 %v5184
        %v5629 = vpop.f32.mrf.mxu0
        %v5630 = vadd.f32 %v5581, %v5629
        %v5631 = vpop.f32.mrf.mxu0
        %v5632 = vadd.f32 %v5583, %v5631
        %5633 = vmatmul.bf16.gmra.mxu0 %v5188
        %v5634 = vpop.f32.mrf.mxu0
        %v5635 = vadd.f32 %v5586, %v5634
        %v5636 = vpop.f32.mrf.mxu0
        %v5637 = vadd.f32 %v5588, %v5636
        %5638 = vmatmul.bf16.gmra.mxu0 %v5192
        %v5639 = vpop.f32.mrf.mxu0
        %v5640 = vadd.f32 %v5591, %v5639
        %v5641 = vpop.f32.mrf.mxu0
        %v5642 = vadd.f32 %v5593, %v5641
        %5643 = vmatmul.bf16.gmra.mxu0 %v5196
        %v5644 = vpop.f32.mrf.mxu0
        %v5645 = vadd.f32 %v5596, %v5644
        %v5646 = vpop.f32.mrf.mxu0
        %v5647 = vadd.f32 %v5598, %v5646
        %5648 = vmatmul.bf16.gmra.mxu0 %v5200
        %v5649 = vpop.f32.mrf.mxu0
        %v5650 = vadd.f32 %v5601, %v5649
        %v5651 = vpop.f32.mrf.mxu0
        %v5652 = vadd.f32 %v5603, %v5651
        %5653 = vmatmul.bf16.gmra.mxu0 %v5204
        %v5654 = vpop.f32.mrf.mxu0
        %v5655 = vadd.f32 %v5606, %v5654
        %v5656 = vpop.f32.mrf.mxu0
        %v5657 = vadd.f32 %v5608, %v5656
        %5658 = vmatmul.bf16.gmra.mxu0 %v5208
        %v5659 = vpop.f32.mrf.mxu0
        %v5660 = vadd.f32 %v5611, %v5659
        %v5661 = vpop.f32.mrf.mxu0
        %v5662 = vadd.f32 %v5613, %v5661
        %5663 = vmatmul.bf16.gmra.mxu0 %v5212
        %v5664 = vpop.f32.mrf.mxu0
        %v5665 = vadd.f32 %v5616, %v5664
        %v5666 = vpop.f32.mrf.mxu0
        %v5667 = vadd.f32 %v5618, %v5666
        %5668 = vdwg.mxu0
        %5669 = vst [vmem:[%s378] sm:$0xff] %v5630
        %5670 = vst [vmem:[%s378 + $0x8] sm:$0xff] %v5632
        %5671 = vst [vmem:[%s378 + $0x10] sm:$0xff] %v5635
        %5672 = vst [vmem:[%s378 + $0x18] sm:$0xff] %v5637
        %5673 = vst [vmem:[%s378 + $0x20] sm:$0xff] %v5640
        %5674 = vst [vmem:[%s378 + $0x28] sm:$0xff] %v5642
        %5675 = vst [vmem:[%s378 + $0x30] sm:$0xff] %v5645
        %5676 = vst [vmem:[%s378 + $0x38] sm:$0xff] %v5647
        %5677 = vst [vmem:[%s378 + $0x40] sm:$0xff] %v5650
        %5678 = vst [vmem:[%s378 + $0x48] sm:$0xff] %v5652
        %5679 = vst [vmem:[%s378 + $0x50] sm:$0xff] %v5655
        %5680 = vst [vmem:[%s378 + $0x58] sm:$0xff] %v5657
        %5681 = vst [vmem:[%s378 + $0x60] sm:$0xff] %v5660
        %5682 = vst [vmem:[%s378 + $0x68] sm:$0xff] %v5662
        %5683 = vst [vmem:[%s378 + $0x70] sm:$0xff] %v5665
        %5684 = vst [vmem:[%s378 + $0x78] sm:$0xff] %v5667
        %s5685 = sand.u32 %s187, 1
        %s5686 = scalar_lea.sflag [#allocation4], %s5685
        %s5687 = sand.u32 %s187, 1
        %s5688 = smul.addr %s5687, 128
        %s5689 = scalar_lea.vmem [#allocation13], %s5688
        // Predicated region
        $region73: #{tpu_custom_call.1} parent=47 // pred_check
          %p5690 = pneg %p197
        $region74: #{tpu_custom_call.1} parent=47 // pred_check_branch
          %5692 = sbr.rel (%p5690) target = $region76
        $region75: #{tpu_custom_call.1} parent=47 // pred_region
          %s5693 = smul.u32 16, %s27
          %5695 = vsyncadd %s5686, 0
          %s5696 = smul.addr %s5693, 8
          %s5697 = scalar_lea.hbm %s7, %s5696
          %s5698 = sshll.u32 %s5689, 4
          %s5699 = int_to_ptr.vmem [resolvable:$true] %s5698
          %s5700 = sshll.u32 %s5697, 4
          %s5701 = int_to_ptr.hbm [resolvable:$true] %s5700
          %5706 = dma.vmem_to_hbm [thread:$0]  %s5699, 2048, %s5701, %s5686, 128, 128, 8
        $region76: #{tpu_custom_call.1} parent=47 // pred_fallthru
          _
      $region48: #{tpu_custom_call.1} parent=5 // pred_fallthru
        _
      %p5707 = scmp.le.s32.totalorder 2, %s22
      // Predicated region
      $region77: #{tpu_custom_call.1} parent=5 // pred_check
        %p5708 = pneg %p5707
      $region78: #{tpu_custom_call.1} parent=5 // pred_check_branch
        %5710 = sbr.rel (%p5708) target = $region80
      $region79: #{tpu_custom_call.1} parent=5 // pred_region
        %s5711 = ssub.s32 %s22, 2
        // Predicated region
        $region81: #{tpu_custom_call.1} parent=79 // pred_check
          %p5712 = pneg %p203
        $region82: #{tpu_custom_call.1} parent=79 // pred_check_branch
          %5714 = sbr.rel (%p5712) target = $region84
        $region83: #{tpu_custom_call.1} parent=79 // pred_region
          %s5715 = sand.u32 %s188, 1
          %s5716 = scalar_lea.sflag [#allocation4], %s5715
          %s5717 = sand.u32 %s188, 1
          %s5718 = smul.addr %s5717, 128
          %s5719 = scalar_lea.vmem [#allocation13], %s5718
          %5721 = dma.done %s5716, 2048
        $region84: #{tpu_custom_call.1} parent=79 // pred_fallthru
          _
      $region80: #{tpu_custom_call.1} parent=5 // pred_fallthru
        _
    $region6: #{tpu_custom_call.1} parent=1 // loop_footer
      %s26 = sadd.s32 1, %s22
    $region7: #{tpu_custom_call.1} parent=1 // loop_footer_branch
      %21 = sbr.rel target = $region3
    $region8: #{tpu_custom_call.1} parent=1 // loop_exit
      _
    %5722 = vsyncpa [#allocation3], 1
    %s5723 = scalar_lea.sflag [#allocation3], 1
    %5724 = vsyncpa %s5723, 1
    %5725 = vsyncpa [#allocation6], 1
    %5726 = vsyncpa [#allocation9], 1
    %5727 = vsyncpa [#allocation12], 1
    %5728 = vsyncpa [#allocation4], 1
    %s5729 = scalar_lea.sflag [#allocation4], 1
    %5730 = vsyncpa %s5729, 1

</llo_original>
